<compile_context>
chip_gen: v7x
topology: tpu7x:2x2x1
jax: 0.10.0
libtpu: 0.0.40
codegen_flags: <defaults>
</compile_context>

<pallas_src>
import functools

import jax
import jax.numpy as jnp
from jax import lax
from jax.experimental import pallas as pl
from jax.experimental.pallas import tpu as pltpu


def hat_head_kernel(x_ref,
                    wqkv_l_ref, bqkv_l_ref, wo_l_ref, bo_l_ref,
                    wq_g_ref, bq_g_ref, wkv_g_ref, bkv_g_ref, wo_g_ref, bo_g_ref,
                    hsel_ref, hsel_t_ref,
                    w1l_ref, w1g_ref, b1_ref, w2f_ref, bf2_ref,
                    out_ref,
                    *, num_heads, center, win_start, win_len, j_lo, j_hi,
                    local_len, scale):
    f32, bf16 = jnp.float32, jnp.bfloat16
    bblk, seq, hid = x_ref.shape
    nh, wp = num_heads, win_len

    # ---------------- local attention over the aligned window -----------------
    xw = x_ref[:, win_start:win_start + wp, :]                      # (Bblk, wp, H) bf16
    qkv = jnp.dot(xw.reshape(bblk * wp, hid), wqkv_l_ref[...],
                  preferred_element_type=f32) + bqkv_l_ref[...]     # (Bblk*wp, 3H) f32
    q_l = (qkv[:, :hid] * scale).astype(bf16).reshape(bblk, wp, hid)
    k_l = qkv[:, hid:2 * hid].astype(bf16).reshape(bblk, wp, hid)
    v_l = qkv[:, 2 * hid:].reshape(bblk, wp, hid)                   # f32

    # per-head scores via the head-selection matrix (no lane slicing / head loop)
    prod = q_l[:, :, None, :] * k_l[:, None, :, :]                  # (Bblk, wp, wp, H) bf16
    scores = jnp.dot(prod.reshape(bblk * wp * wp, hid), hsel_ref[...],
                     preferred_element_type=f32).reshape(bblk, wp, wp, nh)

    kidx = lax.broadcasted_iota(jnp.int32, (wp, nh), 0)             # key index
    kmask = (kidx >= j_lo) & (kidx < j_hi)
    scores = jnp.where(kmask, scores, -1e30)

    m_l = jnp.max(scores, axis=2, keepdims=True)
    p_l = jnp.exp(scores - m_l)
    p_l = p_l * pl.reciprocal(jnp.sum(p_l, axis=2, keepdims=True), approx=True)

    p_full = jnp.dot(p_l.reshape(bblk * wp * wp, nh).astype(bf16), hsel_t_ref[...],
                     preferred_element_type=f32).reshape(bblk, wp, wp, hid)
    ctx_l = jnp.sum(p_full * v_l[:, None, :, :], axis=2)            # (Bblk, wp, H) f32

    # mean over valid query rows, then the (commuting) output projection
    qidx = lax.broadcasted_iota(jnp.int32, (wp, hid), 0)            # query index
    qmask = ((qidx >= j_lo) & (qidx < j_hi)).astype(f32)
    ctx_mean = jnp.sum(ctx_l * qmask, axis=1) * (1.0 / local_len)   # (Bblk, H)
    local_pooled = jnp.dot(ctx_mean.astype(bf16), wo_l_ref[...],
                           preferred_element_type=f32) + bo_l_ref[...]

    # -------- global attention: only the center-position query is consumed ----
    kv = jnp.dot(x_ref[...].reshape(bblk * seq, hid), wkv_g_ref[...],
                 preferred_element_type=f32) + bkv_g_ref[...]       # (Bblk*S, 2H) f32
    k_g = kv[:, :hid].astype(bf16).reshape(bblk, seq, hid)
    v_g = kv[:, hid:].reshape(bblk, seq, hid)                       # f32

    xc = x_ref[:, center:center + 1, :].reshape(bblk, hid)          # (Bblk, H) bf16
    q_g = ((jnp.dot(xc, wq_g_ref[...], preferred_element_type=f32)
            + bq_g_ref[...]) * scale).astype(bf16)                  # (Bblk, H)

    qk = q_g[:, None, :] * k_g                                      # (Bblk, S, H) bf16
    s_g = jnp.dot(qk.reshape(bblk * seq, hid), hsel_ref[...],
                  preferred_element_type=f32).reshape(bblk, seq, nh)
    m_g = jnp.max(s_g, axis=1, keepdims=True)
    p_g = jnp.exp(s_g - m_g)
    p_g = p_g * pl.reciprocal(jnp.sum(p_g, axis=1, keepdims=True), approx=True)
    p_gf = jnp.dot(p_g.reshape(bblk * seq, nh).astype(bf16), hsel_t_ref[...],
                   preferred_element_type=f32).reshape(bblk, seq, hid)
    ctx_g = jnp.sum(p_gf * v_g, axis=1)                             # (Bblk, H) f32
    global_pooled = jnp.dot(ctx_g.astype(bf16), wo_g_ref[...],
                            preferred_element_type=f32) + bo_g_ref[...]

    # ----------------- fused motif heads + final classifier -------------------
    hidden = (jnp.dot(local_pooled.astype(bf16), w1l_ref[...],
                      preferred_element_type=f32)
              + jnp.dot(global_pooled.astype(bf16), w1g_ref[...],
                        preferred_element_type=f32)
              + b1_ref[...])
    hidden = jnp.maximum(hidden, 0.0)                               # (Bblk, n_motif*64)
    final = jnp.sum(hidden * w2f_ref[...], axis=-1, keepdims=True) + bf2_ref[...]

    # Lane-dense broadcast store (unmasked vst); the wrapper reads lane 0.
    out_ref[...] = jnp.broadcast_to(final.reshape(1, bblk, 1), out_ref.shape)


def hierarchical_attention_head(sequence_output, params, *, num_heads=8,
                                context_window=3, batch_block=2):
    """sequence_output: (B, S, H) encoder output (bf16). Returns (B,) predictions."""
    f32, bf16 = jnp.float32, jnp.bfloat16
    x = sequence_output if sequence_output.dtype == bf16 else sequence_output.astype(bf16)
    B, S, H = x.shape
    assert H % num_heads == 0
    dh = H // num_heads
    scale = 1.0 / (dh ** 0.5)

    center = S // 2
    local_start = max(0, center - context_window)
    local_end = min(S, center + context_window + 1)
    local_len = local_end - local_start
    # sublane-aligned padded window; extra rows are masked inside the kernel
    win_start = (local_start // 8) * 8
    win_len = min(S - win_start, -(-(local_end - win_start) // 8) * 8)
    j_lo = local_start - win_start
    j_hi = local_end - win_start

    batch_block = max(1, min(batch_block, B))
    while B % batch_block:
        batch_block -= 1
    n_blocks = B // batch_block

    la, ga = params['local_attn'], params['global_attn']
    wqkv_l = jnp.concatenate([la['wq'], la['wk'], la['wv']], axis=1).astype(bf16)
    bqkv_l = jnp.concatenate([la['bq'], la['bk'], la['bv']]).reshape(1, 3 * H).astype(f32)
    wo_l = la['wo'].astype(bf16)
    bo_l = la['bo'].reshape(1, H).astype(f32)
    wq_g = ga['wq'].astype(bf16)
    bq_g = ga['bq'].reshape(1, H).astype(f32)
    wkv_g = jnp.concatenate([ga['wk'], ga['wv']], axis=1).astype(bf16)
    bkv_g = jnp.concatenate([ga['bk'], ga['bv']]).reshape(1, 2 * H).astype(f32)
    wo_g = ga['wo'].astype(bf16)
    bo_g = ga['bo'].reshape(1, H).astype(f32)

    # head-selection matrix: hsel[h, n] = 1 iff feature h belongs to head n
    hsel = (jnp.arange(H)[:, None] // dh == jnp.arange(num_heads)[None, :]).astype(bf16)
    hsel_t = hsel.T

    motif = params['motif_heads']
    n_motif = len(motif)
    mh = motif[0]['w1'].shape[1]
    w1l = jnp.concatenate([m['w1'][:H, :] for m in motif], axis=1).astype(bf16)   # (H, n*mh)
    w1g = jnp.concatenate([m['w1'][H:, :] for m in motif], axis=1).astype(bf16)   # (H, n*mh)
    b1 = jnp.concatenate([m['b1'] for m in motif]).reshape(1, n_motif * mh).astype(f32)
    wf = params['final']['w'].astype(f32)                                          # (n_motif, 1)
    bf = params['final']['b'].astype(f32)                                          # (1,)
    # fold the per-head Linear(64->1) and the final Linear(4->1) into one lane vector
    w2f = jnp.concatenate([motif[i]['w2'][:, 0] * wf[i, 0]
                           for i in range(n_motif)]).reshape(1, n_motif * mh).astype(f32)
    bf2 = (jnp.stack([m['b2'][0] for m in motif]) @ wf[:, 0] + bf[0]).reshape(1, 1).astype(f32)

    weights = (wqkv_l, bqkv_l, wo_l, bo_l,
               wq_g, bq_g, wkv_g, bkv_g, wo_g, bo_g,
               hsel, hsel_t,
               w1l, w1g, b1, w2f, bf2)

    def _resident(a):   # full-array block, constant index_map -> fetched once
        return pl.BlockSpec(a.shape, lambda b, _nd=a.ndim: (0,) * _nd)

    x_tile_bytes = batch_block * S * H * 2            # bf16 x tile
    out_tile_bytes = batch_block * 128 * 4
    weight_bytes = int(sum(w.size * w.dtype.itemsize for w in weights))
    vmem_limit = int(max(32 << 20,
                         min(100 << 20,
                             2 * (weight_bytes + x_tile_bytes + out_tile_bytes) + (8 << 20))))

    kernel = functools.partial(
        hat_head_kernel, num_heads=num_heads, center=center,
        win_start=win_start, win_len=win_len, j_lo=j_lo, j_hi=j_hi,
        local_len=local_len, scale=scale)

    out = pl.pallas_call(
        kernel,
        out_shape=jax.ShapeDtypeStruct((n_blocks, batch_block, 128), jnp.float32),
        grid=(n_blocks,),
        in_specs=[pl.BlockSpec((batch_block, S, H), lambda b: (b, 0, 0))]
                 + [_resident(w) for w in weights],
        out_specs=pl.BlockSpec((1, batch_block, 128), lambda b: (b, 0, 0)),
        compiler_params=pltpu.CompilerParams(
            dimension_semantics=("parallel",),
            vmem_limit_bytes=vmem_limit),
    )(x, *weights)
    return out[:, :, 0].reshape(B)


# ----------------------------- plain-JAX reference -----------------------------
def reference_forward(sequence_output, params, *, num_heads=8, context_window=3):
    x = sequence_output.astype(jnp.float32)
    B, S, H = x.shape
    dh = H // num_heads
    center = S // 2
    ls = max(0, center - context_window)
    le = min(S, center + context_window + 1)

    def mha(xq, xkv, p):
        q = xq @ p['wq'] + p['bq']
        k = xkv @ p['wk'] + p['bk']
        v = xkv @ p['wv'] + p['bv']

        def split(t):
            return t.reshape(B, t.shape[1], num_heads, dh).transpose(0, 2, 1, 3)

        qh, kh, vh = split(q), split(k), split(v)
        s = jnp.einsum('bhqd,bhkd->bhqk', qh, kh) / (dh ** 0.5)
        a = jax.nn.softmax(s, axis=-1)
        ctx = jnp.einsum('bhqk,bhkd->bhqd', a, vh)
        ctx = ctx.transpose(0, 2, 1, 3).reshape(B, -1, H)
        return ctx @ p['wo'] + p['bo']

    xl = x[:, ls:le, :]
    local_pooled = mha(xl, xl, params['local_attn']).mean(axis=1)            # (B, H)
    global_pooled = mha(x, x, params['global_attn'])[:, center, :]           # (B, H)
    combined = jnp.concatenate([local_pooled, global_pooled], axis=-1)       # (B, 2H)
    preds = []
    for m in params['motif_heads']:
        hdn = jax.nn.relu(combined @ m['w1'] + m['b1'])
        preds.append(hdn @ m['w2'] + m['b2'])
    motif_preds = jnp.concatenate(preds, axis=-1)                            # (B, 4)
    final = motif_preds @ params['final']['w'] + params['final']['b']
    return final[:, 0]


def init_params(key, hidden_size, num_motif_heads=4, motif_hidden=64):
    def linear(k, fan_in, fan_out):
        kw, kb = jax.random.split(k)
        s = 1.0 / (fan_in ** 0.5)
        return (jax.random.uniform(kw, (fan_in, fan_out), jnp.float32, -s, s),
                jax.random.uniform(kb, (fan_out,), jnp.float32, -s, s))

    def mha_params(k):
        ks = jax.random.split(k, 4)
        wq, bq = linear(ks[0], hidden_size, hidden_size)
        wk, bk = linear(ks[1], hidden_size, hidden_size)
        wv, bv = linear(ks[2], hidden_size, hidden_size)
        wo, bo = linear(ks[3], hidden_size, hidden_size)
        return dict(wq=wq, bq=bq, wk=wk, bk=bk, wv=wv, bv=bv, wo=wo, bo=bo)

    keys = jax.random.split(key, 3 + num_motif_heads)
    motif_heads = []
    for i in range(num_motif_heads):
        k1, k2 = jax.random.split(keys[2 + i])
        w1, b1 = linear(k1, 2 * hidden_size, motif_hidden)
        w2, b2 = linear(k2, motif_hidden, 1)
        motif_heads.append(dict(w1=w1, b1=b1, w2=w2, b2=b2))
    wf, bf = linear(keys[2 + num_motif_heads], num_motif_heads, 1)
    return dict(local_attn=mha_params(keys[0]), global_attn=mha_params(keys[1]),
                motif_heads=motif_heads, final=dict(w=wf, b=bf))


if __name__ == "__main__":
    # Small demo shapes implied by the forward: (batch, seq, hidden), 8 heads.
    B, S, H = 4, 16, 128
    NUM_HEADS, CTX = 8, 3

    key = jax.random.PRNGKey(0)
    k_x, k_p = jax.random.split(key)
    # The encoder would emit bf16 activations; the kernel consumes them directly (no upcast).
    sequence_output = jax.random.normal(k_x, (B, S, H), dtype=jnp.float32).astype(jnp.bfloat16)
    params = init_params(k_p, H)

    out = hierarchical_attention_head(sequence_output, params,
                                      num_heads=NUM_HEADS, context_window=CTX,
                                      batch_block=2)
    out = jax.block_until_ready(out)

    ref = jax.block_until_ready(
        reference_forward(sequence_output.astype(jnp.float32), params,
                          num_heads=NUM_HEADS, context_window=CTX))

    assert out.shape == (B,)
    # Tolerance absorbs bf16-operand / f32-accumulate MXU precision vs. the f32 reference.
    assert jnp.allclose(out, ref, atol=3e-2, rtol=3e-2), (out, ref)

    print("KERNEL_OK")
</pallas_src>

<mosaic_0001>
module attributes {stable_mosaic.version = 11 : i64} {
  func.func @hat_head_kernel(%arg0: i32, %arg1: memref<2x16x128xbf16, #tpu.memory_space<vmem>>, %arg2: memref<128x384xbf16, #tpu.memory_space<vmem>>, %arg3: memref<1x384xf32, #tpu.memory_space<vmem>>, %arg4: memref<128x128xbf16, #tpu.memory_space<vmem>>, %arg5: memref<1x128xf32, #tpu.memory_space<vmem>>, %arg6: memref<128x128xbf16, #tpu.memory_space<vmem>>, %arg7: memref<1x128xf32, #tpu.memory_space<vmem>>, %arg8: memref<128x256xbf16, #tpu.memory_space<vmem>>, %arg9: memref<1x256xf32, #tpu.memory_space<vmem>>, %arg10: memref<128x128xbf16, #tpu.memory_space<vmem>>, %arg11: memref<1x128xf32, #tpu.memory_space<vmem>>, %arg12: memref<128x8xbf16, #tpu.memory_space<vmem>>, %arg13: memref<8x128xbf16, #tpu.memory_space<vmem>>, %arg14: memref<128x256xbf16, #tpu.memory_space<vmem>>, %arg15: memref<128x256xbf16, #tpu.memory_space<vmem>>, %arg16: memref<1x256xf32, #tpu.memory_space<vmem>>, %arg17: memref<1x256xf32, #tpu.memory_space<vmem>>, %arg18: memref<1x1xf32, #tpu.memory_space<vmem>>, %arg19: memref<1x2x128xf32, #tpu.memory_space<vmem>>) attributes {dimension_semantics = [#tpu.dimension_semantics<parallel>], iteration_bounds = array<i64: 2>, scalar_prefetch = 0 : i64, scratch_operands = 0 : i64, tpu.core_type = #tpu.core_type<tc>, window_params = [{transform_indices = @transform_0, window_bounds = array<i64: 2, 16, 128>}, {pipeline_mode = #tpu.pipeline_mode<synchronous>, transform_indices = @transform_1, window_bounds = array<i64: 128, 384>}, {pipeline_mode = #tpu.pipeline_mode<synchronous>, transform_indices = @transform_2, window_bounds = array<i64: 1, 384>}, {pipeline_mode = #tpu.pipeline_mode<synchronous>, transform_indices = @transform_3, window_bounds = array<i64: 128, 128>}, {pipeline_mode = #tpu.pipeline_mode<synchronous>, transform_indices = @transform_4, window_bounds = array<i64: 1, 128>}, {pipeline_mode = #tpu.pipeline_mode<synchronous>, transform_indices = @transform_5, window_bounds = array<i64: 128, 128>}, {pipeline_mode = #tpu.pipeline_mode<synchronous>, transform_indices = @transform_6, window_bounds = array<i64: 1, 128>}, {pipeline_mode = #tpu.pipeline_mode<synchronous>, transform_indices = @transform_7, window_bounds = array<i64: 128, 256>}, {pipeline_mode = #tpu.pipeline_mode<synchronous>, transform_indices = @transform_8, window_bounds = array<i64: 1, 256>}, {pipeline_mode = #tpu.pipeline_mode<synchronous>, transform_indices = @transform_9, window_bounds = array<i64: 128, 128>}, {pipeline_mode = #tpu.pipeline_mode<synchronous>, transform_indices = @transform_10, window_bounds = array<i64: 1, 128>}, {pipeline_mode = #tpu.pipeline_mode<synchronous>, transform_indices = @transform_11, window_bounds = array<i64: 128, 8>}, {pipeline_mode = #tpu.pipeline_mode<synchronous>, transform_indices = @transform_12, window_bounds = array<i64: 8, 128>}, {pipeline_mode = #tpu.pipeline_mode<synchronous>, transform_indices = @transform_13, window_bounds = array<i64: 128, 256>}, {pipeline_mode = #tpu.pipeline_mode<synchronous>, transform_indices = @transform_14, window_bounds = array<i64: 128, 256>}, {pipeline_mode = #tpu.pipeline_mode<synchronous>, transform_indices = @transform_15, window_bounds = array<i64: 1, 256>}, {pipeline_mode = #tpu.pipeline_mode<synchronous>, transform_indices = @transform_16, window_bounds = array<i64: 1, 256>}, {pipeline_mode = #tpu.pipeline_mode<synchronous>, transform_indices = @transform_17, window_bounds = array<i64: 1, 1>}, {transform_indices = @transform_18, window_bounds = array<i64: 1, 2, 128>}]} {
    %c0 = arith.constant 0 : index
    %c0_0 = arith.constant 0 : index
    %c0_1 = arith.constant 0 : index
    %0 = vector.load %arg1[%c0, %c0_0, %c0_1] : memref<2x16x128xbf16, #tpu.memory_space<vmem>>, vector<2x16x128xbf16>
    %1 = vector.shape_cast %0 : vector<2x16x128xbf16> to vector<32x128xbf16>
    %c0_2 = arith.constant 0 : index
    %c0_3 = arith.constant 0 : index
    %2 = vector.load %arg2[%c0_2, %c0_3] : memref<128x384xbf16, #tpu.memory_space<vmem>>, vector<128x384xbf16>
    %cst = arith.constant dense<0.000000e+00> : vector<32x384xf32>
    %3 = tpu.matmul %1, %2, %cst {dimension_numbers = #tpu.dot_dimension_numbers<[1], [0], [0], [1], [0, 0, 1, 1], [], []>} : vector<32x128xbf16>, vector<128x384xbf16>, vector<32x384xf32> -> vector<32x384xf32>
    %c0_4 = arith.constant 0 : index
    %c0_5 = arith.constant 0 : index
    %4 = vector.load %arg3[%c0_4, %c0_5] : memref<1x384xf32, #tpu.memory_space<vmem>>, vector<1x384xf32>
    %5 = vector.broadcast %4 : vector<1x384xf32> to vector<32x384xf32>
    %6 = arith.addf %3, %5 : vector<32x384xf32>
    %7 = vector.extract_strided_slice %6 {offsets = [0, 0], sizes = [32, 128], strides = [1, 1]} : vector<32x384xf32> to vector<32x128xf32>
    %cst_6 = arith.constant 2.500000e-01 : f32
    %8 = vector.broadcast %cst_6 : f32 to vector<32x128xf32>
    %9 = arith.mulf %7, %8 : vector<32x128xf32>
    %10 = arith.truncf %9 : vector<32x128xf32> to vector<32x128xbf16>
    %11 = vector.shape_cast %10 : vector<32x128xbf16> to vector<2x16x128xbf16>
    %12 = vector.extract_strided_slice %6 {offsets = [0, 128], sizes = [32, 128], strides = [1, 1]} : vector<32x384xf32> to vector<32x128xf32>
    %13 = arith.truncf %12 : vector<32x128xf32> to vector<32x128xbf16>
    %14 = vector.shape_cast %13 : vector<32x128xbf16> to vector<2x16x128xbf16>
    %15 = vector.extract_strided_slice %6 {offsets = [0, 256], sizes = [32, 128], strides = [1, 1]} : vector<32x384xf32> to vector<32x128xf32>
    %16 = vector.shape_cast %15 : vector<32x128xf32> to vector<2x16x128xf32>
    %17 = vector.shape_cast %11 : vector<2x16x128xbf16> to vector<2x16x1x128xbf16>
    %18 = vector.shape_cast %14 : vector<2x16x128xbf16> to vector<2x1x16x128xbf16>
    %19 = vector.broadcast %17 : vector<2x16x1x128xbf16> to vector<2x16x16x128xbf16>
    %20 = vector.broadcast %18 : vector<2x1x16x128xbf16> to vector<2x16x16x128xbf16>
    %21 = arith.mulf %19, %20 : vector<2x16x16x128xbf16>
    %22 = vector.shape_cast %21 : vector<2x16x16x128xbf16> to vector<512x128xbf16>
    %c0_7 = arith.constant 0 : index
    %c0_8 = arith.constant 0 : index
    %23 = vector.load %arg12[%c0_7, %c0_8] : memref<128x8xbf16, #tpu.memory_space<vmem>>, vector<128x8xbf16>
    %cst_9 = arith.constant dense<0.000000e+00> : vector<512x8xf32>
    %24 = tpu.matmul %22, %23, %cst_9 {dimension_numbers = #tpu.dot_dimension_numbers<[1], [0], [0], [1], [0, 0, 1, 1], [], []>} : vector<512x128xbf16>, vector<128x8xbf16>, vector<512x8xf32> -> vector<512x8xf32>
    %25 = vector.shape_cast %24 : vector<512x8xf32> to vector<2x16x16x8xf32>
    %26 = tpu.iota {dimensions = array<i32: 0>} : vector<16x8xi32>
    %c5_i32 = arith.constant 5 : i32
    %27 = vector.broadcast %c5_i32 : i32 to vector<16x8xi32>
    %28 = arith.cmpi sge, %26, %27 : vector<16x8xi32>
    %c12_i32 = arith.constant 12 : i32
    %29 = vector.broadcast %c12_i32 : i32 to vector<16x8xi32>
    %30 = arith.cmpi slt, %26, %29 : vector<16x8xi32>
    %31 = arith.andi %28, %30 : vector<16x8xi1>
    %cst_10 = arith.constant -1.000000e+30 : f32
    %32 = vector.shape_cast %31 : vector<16x8xi1> to vector<1x1x16x8xi1>
    %33 = vector.broadcast %32 : vector<1x1x16x8xi1> to vector<2x16x16x8xi1>
    %34 = vector.broadcast %cst_10 : f32 to vector<2x16x16x8xf32>
    %35 = arith.select %33, %25, %34 : vector<2x16x16x8xi1>, vector<2x16x16x8xf32>
    %cst_11 = arith.constant dense<0xFF800000> : vector<2x16x8xf32>
    %36 = vector.multi_reduction <maximumf>, %35, %cst_11 [2] : vector<2x16x16x8xf32> to vector<2x16x8xf32>
    %37 = vector.shape_cast %36 : vector<2x16x8xf32> to vector<2x16x1x8xf32>
    %38 = vector.broadcast %37 : vector<2x16x1x8xf32> to vector<2x16x16x8xf32>
    %39 = arith.subf %35, %38 : vector<2x16x16x8xf32>
    %40 = math.exp %39 : vector<2x16x16x8xf32>
    %cst_12 = arith.constant dense<0.000000e+00> : vector<2x16x8xf32>
    %41 = vector.multi_reduction <add>, %40, %cst_12 [2] : vector<2x16x16x8xf32> to vector<2x16x8xf32>
    %42 = vector.shape_cast %41 : vector<2x16x8xf32> to vector<2x16x1x8xf32>
    %43 = tpu.reciprocal %42 {approx = true} : vector<2x16x1x8xf32> -> vector<2x16x1x8xf32>
    %44 = vector.broadcast %43 : vector<2x16x1x8xf32> to vector<2x16x16x8xf32>
    %45 = arith.mulf %40, %44 : vector<2x16x16x8xf32>
    %46 = vector.shape_cast %45 : vector<2x16x16x8xf32> to vector<512x8xf32>
    %47 = arith.truncf %46 : vector<512x8xf32> to vector<512x8xbf16>
    %c0_13 = arith.constant 0 : index
    %c0_14 = arith.constant 0 : index
    %48 = vector.load %arg13[%c0_13, %c0_14] : memref<8x128xbf16, #tpu.memory_space<vmem>>, vector<8x128xbf16>
    %cst_15 = arith.constant dense<0.000000e+00> : vector<512x128xf32>
    %49 = tpu.matmul %47, %48, %cst_15 {dimension_numbers = #tpu.dot_dimension_numbers<[1], [0], [0], [1], [0, 0, 1, 1], [], []>} : vector<512x8xbf16>, vector<8x128xbf16>, vector<512x128xf32> -> vector<512x128xf32>
    %50 = vector.shape_cast %49 : vector<512x128xf32> to vector<2x16x16x128xf32>
    %51 = vector.shape_cast %16 : vector<2x16x128xf32> to vector<2x1x16x128xf32>
    %52 = vector.broadcast %51 : vector<2x1x16x128xf32> to vector<2x16x16x128xf32>
    %53 = arith.mulf %50, %52 : vector<2x16x16x128xf32>
    %cst_16 = arith.constant dense<0.000000e+00> : vector<2x16x128xf32>
    %54 = vector.multi_reduction <add>, %53, %cst_16 [2] : vector<2x16x16x128xf32> to vector<2x16x128xf32>
    %55 = tpu.iota {dimensions = array<i32: 0>} : vector<16x128xi32>
    %c5_i32_17 = arith.constant 5 : i32
    %56 = vector.broadcast %c5_i32_17 : i32 to vector<16x128xi32>
    %57 = arith.cmpi sge, %55, %56 : vector<16x128xi32>
    %c12_i32_18 = arith.constant 12 : i32
    %58 = vector.broadcast %c12_i32_18 : i32 to vector<16x128xi32>
    %59 = arith.cmpi slt, %55, %58 : vector<16x128xi32>
    %60 = arith.andi %57, %59 : vector<16x128xi1>
    %61 = arith.extui %60 : vector<16x128xi1> to vector<16x128xi32>
    %62 = arith.sitofp %61 : vector<16x128xi32> to vector<16x128xf32>
    %63 = vector.shape_cast %62 : vector<16x128xf32> to vector<1x16x128xf32>
    %64 = vector.broadcast %63 : vector<1x16x128xf32> to vector<2x16x128xf32>
    %65 = arith.mulf %54, %64 : vector<2x16x128xf32>
    %cst_19 = arith.constant dense<0.000000e+00> : vector<2x128xf32>
    %66 = vector.multi_reduction <add>, %65, %cst_19 [1] : vector<2x16x128xf32> to vector<2x128xf32>
    %cst_20 = arith.constant 0.142857149 : f32
    %67 = vector.broadcast %cst_20 : f32 to vector<2x128xf32>
    %68 = arith.mulf %66, %67 : vector<2x128xf32>
    %69 = arith.truncf %68 : vector<2x128xf32> to vector<2x128xbf16>
    %c0_21 = arith.constant 0 : index
    %c0_22 = arith.constant 0 : index
    %70 = vector.load %arg4[%c0_21, %c0_22] : memref<128x128xbf16, #tpu.memory_space<vmem>>, vector<128x128xbf16>
    %cst_23 = arith.constant dense<0.000000e+00> : vector<2x128xf32>
    %71 = tpu.matmul %69, %70, %cst_23 {dimension_numbers = #tpu.dot_dimension_numbers<[1], [0], [0], [1], [0, 0, 1, 1], [], []>} : vector<2x128xbf16>, vector<128x128xbf16>, vector<2x128xf32> -> vector<2x128xf32>
    %c0_24 = arith.constant 0 : index
    %c0_25 = arith.constant 0 : index
    %72 = vector.load %arg5[%c0_24, %c0_25] : memref<1x128xf32, #tpu.memory_space<vmem>>, vector<1x128xf32>
    %73 = vector.broadcast %72 : vector<1x128xf32> to vector<2x128xf32>
    %74 = arith.addf %71, %73 : vector<2x128xf32>
    %c0_26 = arith.constant 0 : index
    %c0_27 = arith.constant 0 : index
    %c0_28 = arith.constant 0 : index
    %75 = vector.load %arg1[%c0_26, %c0_27, %c0_28] : memref<2x16x128xbf16, #tpu.memory_space<vmem>>, vector<2x16x128xbf16>
    %76 = vector.shape_cast %75 : vector<2x16x128xbf16> to vector<32x128xbf16>
    %c0_29 = arith.constant 0 : index
    %c0_30 = arith.constant 0 : index
    %77 = vector.load %arg8[%c0_29, %c0_30] : memref<128x256xbf16, #tpu.memory_space<vmem>>, vector<128x256xbf16>
    %cst_31 = arith.constant dense<0.000000e+00> : vector<32x256xf32>
    %78 = tpu.matmul %76, %77, %cst_31 {dimension_numbers = #tpu.dot_dimension_numbers<[1], [0], [0], [1], [0, 0, 1, 1], [], []>} : vector<32x128xbf16>, vector<128x256xbf16>, vector<32x256xf32> -> vector<32x256xf32>
    %c0_32 = arith.constant 0 : index
    %c0_33 = arith.constant 0 : index
    %79 = vector.load %arg9[%c0_32, %c0_33] : memref<1x256xf32, #tpu.memory_space<vmem>>, vector<1x256xf32>
    %80 = vector.broadcast %79 : vector<1x256xf32> to vector<32x256xf32>
    %81 = arith.addf %78, %80 : vector<32x256xf32>
    %82 = vector.extract_strided_slice %81 {offsets = [0, 0], sizes = [32, 128], strides = [1, 1]} : vector<32x256xf32> to vector<32x128xf32>
    %83 = arith.truncf %82 : vector<32x128xf32> to vector<32x128xbf16>
    %84 = vector.shape_cast %83 : vector<32x128xbf16> to vector<2x16x128xbf16>
    %85 = vector.extract_strided_slice %81 {offsets = [0, 128], sizes = [32, 128], strides = [1, 1]} : vector<32x256xf32> to vector<32x128xf32>
    %86 = vector.shape_cast %85 : vector<32x128xf32> to vector<2x16x128xf32>
    %c0_34 = arith.constant 0 : index
    %c8 = arith.constant 8 : index
    %c0_35 = arith.constant 0 : index
    %87 = vector.load %arg1[%c0_34, %c8, %c0_35] : memref<2x16x128xbf16, #tpu.memory_space<vmem>>, vector<2x1x128xbf16>
    %88 = vector.shape_cast %87 : vector<2x1x128xbf16> to vector<2x128xbf16>
    %c0_36 = arith.constant 0 : index
    %c0_37 = arith.constant 0 : index
    %89 = vector.load %arg6[%c0_36, %c0_37] : memref<128x128xbf16, #tpu.memory_space<vmem>>, vector<128x128xbf16>
    %cst_38 = arith.constant dense<0.000000e+00> : vector<2x128xf32>
    %90 = tpu.matmul %88, %89, %cst_38 {dimension_numbers = #tpu.dot_dimension_numbers<[1], [0], [0], [1], [0, 0, 1, 1], [], []>} : vector<2x128xbf16>, vector<128x128xbf16>, vector<2x128xf32> -> vector<2x128xf32>
    %c0_39 = arith.constant 0 : index
    %c0_40 = arith.constant 0 : index
    %91 = vector.load %arg7[%c0_39, %c0_40] : memref<1x128xf32, #tpu.memory_space<vmem>>, vector<1x128xf32>
    %92 = vector.broadcast %91 : vector<1x128xf32> to vector<2x128xf32>
    %93 = arith.addf %90, %92 : vector<2x128xf32>
    %cst_41 = arith.constant 2.500000e-01 : f32
    %94 = vector.broadcast %cst_41 : f32 to vector<2x128xf32>
    %95 = arith.mulf %93, %94 : vector<2x128xf32>
    %96 = arith.truncf %95 : vector<2x128xf32> to vector<2x128xbf16>
    %97 = vector.shape_cast %96 : vector<2x128xbf16> to vector<2x1x128xbf16>
    %98 = vector.broadcast %97 : vector<2x1x128xbf16> to vector<2x16x128xbf16>
    %99 = arith.mulf %98, %84 : vector<2x16x128xbf16>
    %100 = vector.shape_cast %99 : vector<2x16x128xbf16> to vector<32x128xbf16>
    %c0_42 = arith.constant 0 : index
    %c0_43 = arith.constant 0 : index
    %101 = vector.load %arg12[%c0_42, %c0_43] : memref<128x8xbf16, #tpu.memory_space<vmem>>, vector<128x8xbf16>
    %cst_44 = arith.constant dense<0.000000e+00> : vector<32x8xf32>
    %102 = tpu.matmul %100, %101, %cst_44 {dimension_numbers = #tpu.dot_dimension_numbers<[1], [0], [0], [1], [0, 0, 1, 1], [], []>} : vector<32x128xbf16>, vector<128x8xbf16>, vector<32x8xf32> -> vector<32x8xf32>
    %103 = vector.shape_cast %102 : vector<32x8xf32> to vector<2x16x8xf32>
    %cst_45 = arith.constant dense<0xFF800000> : vector<2x8xf32>
    %104 = vector.multi_reduction <maximumf>, %103, %cst_45 [1] : vector<2x16x8xf32> to vector<2x8xf32>
    %105 = vector.shape_cast %104 : vector<2x8xf32> to vector<2x1x8xf32>
    %106 = vector.broadcast %105 : vector<2x1x8xf32> to vector<2x16x8xf32>
    %107 = arith.subf %103, %106 : vector<2x16x8xf32>
    %108 = math.exp %107 : vector<2x16x8xf32>
    %cst_46 = arith.constant dense<0.000000e+00> : vector<2x8xf32>
    %109 = vector.multi_reduction <add>, %108, %cst_46 [1] : vector<2x16x8xf32> to vector<2x8xf32>
    %110 = vector.shape_cast %109 : vector<2x8xf32> to vector<2x1x8xf32>
    %111 = tpu.reciprocal %110 {approx = true} : vector<2x1x8xf32> -> vector<2x1x8xf32>
    %112 = vector.broadcast %111 : vector<2x1x8xf32> to vector<2x16x8xf32>
    %113 = arith.mulf %108, %112 : vector<2x16x8xf32>
    %114 = vector.shape_cast %113 : vector<2x16x8xf32> to vector<32x8xf32>
    %115 = arith.truncf %114 : vector<32x8xf32> to vector<32x8xbf16>
    %c0_47 = arith.constant 0 : index
    %c0_48 = arith.constant 0 : index
    %116 = vector.load %arg13[%c0_47, %c0_48] : memref<8x128xbf16, #tpu.memory_space<vmem>>, vector<8x128xbf16>
    %cst_49 = arith.constant dense<0.000000e+00> : vector<32x128xf32>
    %117 = tpu.matmul %115, %116, %cst_49 {dimension_numbers = #tpu.dot_dimension_numbers<[1], [0], [0], [1], [0, 0, 1, 1], [], []>} : vector<32x8xbf16>, vector<8x128xbf16>, vector<32x128xf32> -> vector<32x128xf32>
    %118 = vector.shape_cast %117 : vector<32x128xf32> to vector<2x16x128xf32>
    %119 = arith.mulf %118, %86 : vector<2x16x128xf32>
    %cst_50 = arith.constant dense<0.000000e+00> : vector<2x128xf32>
    %120 = vector.multi_reduction <add>, %119, %cst_50 [1] : vector<2x16x128xf32> to vector<2x128xf32>
    %121 = arith.truncf %120 : vector<2x128xf32> to vector<2x128xbf16>
    %c0_51 = arith.constant 0 : index
    %c0_52 = arith.constant 0 : index
    %122 = vector.load %arg10[%c0_51, %c0_52] : memref<128x128xbf16, #tpu.memory_space<vmem>>, vector<128x128xbf16>
    %cst_53 = arith.constant dense<0.000000e+00> : vector<2x128xf32>
    %123 = tpu.matmul %121, %122, %cst_53 {dimension_numbers = #tpu.dot_dimension_numbers<[1], [0], [0], [1], [0, 0, 1, 1], [], []>} : vector<2x128xbf16>, vector<128x128xbf16>, vector<2x128xf32> -> vector<2x128xf32>
    %c0_54 = arith.constant 0 : index
    %c0_55 = arith.constant 0 : index
    %124 = vector.load %arg11[%c0_54, %c0_55] : memref<1x128xf32, #tpu.memory_space<vmem>>, vector<1x128xf32>
    %125 = vector.broadcast %124 : vector<1x128xf32> to vector<2x128xf32>
    %126 = arith.addf %123, %125 : vector<2x128xf32>
    %127 = arith.truncf %74 : vector<2x128xf32> to vector<2x128xbf16>
    %c0_56 = arith.constant 0 : index
    %c0_57 = arith.constant 0 : index
    %128 = vector.load %arg14[%c0_56, %c0_57] : memref<128x256xbf16, #tpu.memory_space<vmem>>, vector<128x256xbf16>
    %cst_58 = arith.constant dense<0.000000e+00> : vector<2x256xf32>
    %129 = tpu.matmul %127, %128, %cst_58 {dimension_numbers = #tpu.dot_dimension_numbers<[1], [0], [0], [1], [0, 0, 1, 1], [], []>} : vector<2x128xbf16>, vector<128x256xbf16>, vector<2x256xf32> -> vector<2x256xf32>
    %130 = arith.truncf %126 : vector<2x128xf32> to vector<2x128xbf16>
    %c0_59 = arith.constant 0 : index
    %c0_60 = arith.constant 0 : index
    %131 = vector.load %arg15[%c0_59, %c0_60] : memref<128x256xbf16, #tpu.memory_space<vmem>>, vector<128x256xbf16>
    %cst_61 = arith.constant dense<0.000000e+00> : vector<2x256xf32>
    %132 = tpu.matmul %130, %131, %cst_61 {dimension_numbers = #tpu.dot_dimension_numbers<[1], [0], [0], [1], [0, 0, 1, 1], [], []>} : vector<2x128xbf16>, vector<128x256xbf16>, vector<2x256xf32> -> vector<2x256xf32>
    %133 = arith.addf %129, %132 : vector<2x256xf32>
    %c0_62 = arith.constant 0 : index
    %c0_63 = arith.constant 0 : index
    %134 = vector.load %arg16[%c0_62, %c0_63] : memref<1x256xf32, #tpu.memory_space<vmem>>, vector<1x256xf32>
    %135 = vector.broadcast %134 : vector<1x256xf32> to vector<2x256xf32>
    %136 = arith.addf %133, %135 : vector<2x256xf32>
    %cst_64 = arith.constant 0.000000e+00 : f32
    %137 = vector.broadcast %cst_64 : f32 to vector<2x256xf32>
    %138 = arith.maximumf %136, %137 : vector<2x256xf32>
    %c0_65 = arith.constant 0 : index
    %c0_66 = arith.constant 0 : index
    %139 = vector.load %arg17[%c0_65, %c0_66] : memref<1x256xf32, #tpu.memory_space<vmem>>, vector<1x256xf32>
    %140 = vector.broadcast %139 : vector<1x256xf32> to vector<2x256xf32>
    %141 = arith.mulf %138, %140 : vector<2x256xf32>
    %cst_67 = arith.constant dense<0.000000e+00> : vector<2xf32>
    %142 = vector.multi_reduction <add>, %141, %cst_67 [1] : vector<2x256xf32> to vector<2xf32>
    %143 = vector.shape_cast %142 : vector<2xf32> to vector<2x1xf32>
    %c0_68 = arith.constant 0 : index
    %c0_69 = arith.constant 0 : index
    %144 = vector.load %arg18[%c0_68, %c0_69] : memref<1x1xf32, #tpu.memory_space<vmem>>, vector<1x1xf32>
    %145 = vector.broadcast %144 : vector<1x1xf32> to vector<2x1xf32>
    %146 = arith.addf %143, %145 : vector<2x1xf32>
    %147 = vector.shape_cast %146 : vector<2x1xf32> to vector<1x2x1xf32>
    %148 = vector.shape_cast %147 : vector<1x2x1xf32> to vector<1x2x1xf32>
    %149 = vector.broadcast %148 : vector<1x2x1xf32> to vector<1x2x128xf32>
    %c0_70 = arith.constant 0 : index
    %c0_71 = arith.constant 0 : index
    %c0_72 = arith.constant 0 : index
    %150 = vector.load %arg19[%c0_70, %c0_71, %c0_72] : memref<1x2x128xf32, #tpu.memory_space<vmem>>, vector<1x2x128xf32>
    tpu.vector_store %arg19[%c0_70, %c0_71, %c0_72], %149 {strides = array<i32>} : memref<1x2x128xf32, #tpu.memory_space<vmem>>, vector<1x2x128xf32>,
    return
  }
  func.func @transform_0(%arg0: i32) -> (i32, i32, i32) {
    %c0_i32 = arith.constant 0 : i32
    %c0_i32_0 = arith.constant 0 : i32
    %c0_i32_1 = arith.constant 0 : i32
    return %arg0, %c0_i32, %c0_i32_0 : i32, i32, i32
  }
  func.func @transform_1(%arg0: i32) -> (i32, i32) {
    %c0_i32 = arith.constant 0 : i32
    %c0_i32_0 = arith.constant 0 : i32
    %c0_i32_1 = arith.constant 0 : i32
    return %c0_i32, %c0_i32_0 : i32, i32
  }
  func.func @transform_2(%arg0: i32) -> (i32, i32) {
    %c0_i32 = arith.constant 0 : i32
    %c0_i32_0 = arith.constant 0 : i32
    %c0_i32_1 = arith.constant 0 : i32
    return %c0_i32, %c0_i32_0 : i32, i32
  }
  func.func @transform_3(%arg0: i32) -> (i32, i32) {
    %c0_i32 = arith.constant 0 : i32
    %c0_i32_0 = arith.constant 0 : i32
    %c0_i32_1 = arith.constant 0 : i32
    return %c0_i32, %c0_i32_0 : i32, i32
  }
  func.func @transform_4(%arg0: i32) -> (i32, i32) {
    %c0_i32 = arith.constant 0 : i32
    %c0_i32_0 = arith.constant 0 : i32
    %c0_i32_1 = arith.constant 0 : i32
    return %c0_i32, %c0_i32_0 : i32, i32
  }
  func.func @transform_5(%arg0: i32) -> (i32, i32) {
    %c0_i32 = arith.constant 0 : i32
    %c0_i32_0 = arith.constant 0 : i32
    %c0_i32_1 = arith.constant 0 : i32
    return %c0_i32, %c0_i32_0 : i32, i32
  }
  func.func @transform_6(%arg0: i32) -> (i32, i32) {
    %c0_i32 = arith.constant 0 : i32
    %c0_i32_0 = arith.constant 0 : i32
    %c0_i32_1 = arith.constant 0 : i32
    return %c0_i32, %c0_i32_0 : i32, i32
  }
  func.func @transform_7(%arg0: i32) -> (i32, i32) {
    %c0_i32 = arith.constant 0 : i32
    %c0_i32_0 = arith.constant 0 : i32
    %c0_i32_1 = arith.constant 0 : i32
    return %c0_i32, %c0_i32_0 : i32, i32
  }
  func.func @transform_8(%arg0: i32) -> (i32, i32) {
    %c0_i32 = arith.constant 0 : i32
    %c0_i32_0 = arith.constant 0 : i32
    %c0_i32_1 = arith.constant 0 : i32
    return %c0_i32, %c0_i32_0 : i32, i32
  }
  func.func @transform_9(%arg0: i32) -> (i32, i32) {
    %c0_i32 = arith.constant 0 : i32
    %c0_i32_0 = arith.constant 0 : i32
    %c0_i32_1 = arith.constant 0 : i32
    return %c0_i32, %c0_i32_0 : i32, i32
  }
  func.func @transform_10(%arg0: i32) -> (i32, i32) {
    %c0_i32 = arith.constant 0 : i32
    %c0_i32_0 = arith.constant 0 : i32
    %c0_i32_1 = arith.constant 0 : i32
    return %c0_i32, %c0_i32_0 : i32, i32
  }
  func.func @transform_11(%arg0: i32) -> (i32, i32) {
    %c0_i32 = arith.constant 0 : i32
    %c0_i32_0 = arith.constant 0 : i32
    %c0_i32_1 = arith.constant 0 : i32
    return %c0_i32, %c0_i32_0 : i32, i32
  }
  func.func @transform_12(%arg0: i32) -> (i32, i32) {
    %c0_i32 = arith.constant 0 : i32
    %c0_i32_0 = arith.constant 0 : i32
    %c0_i32_1 = arith.constant 0 : i32
    return %c0_i32, %c0_i32_0 : i32, i32
  }
  func.func @transform_13(%arg0: i32) -> (i32, i32) {
    %c0_i32 = arith.constant 0 : i32
    %c0_i32_0 = arith.constant 0 : i32
    %c0_i32_1 = arith.constant 0 : i32
    return %c0_i32, %c0_i32_0 : i32, i32
  }
  func.func @transform_14(%arg0: i32) -> (i32, i32) {
    %c0_i32 = arith.constant 0 : i32
    %c0_i32_0 = arith.constant 0 : i32
    %c0_i32_1 = arith.constant 0 : i32
    return %c0_i32, %c0_i32_0 : i32, i32
  }
  func.func @transform_15(%arg0: i32) -> (i32, i32) {
    %c0_i32 = arith.constant 0 : i32
    %c0_i32_0 = arith.constant 0 : i32
    %c0_i32_1 = arith.constant 0 : i32
    return %c0_i32, %c0_i32_0 : i32, i32
  }
  func.func @transform_16(%arg0: i32) -> (i32, i32) {
    %c0_i32 = arith.constant 0 : i32
    %c0_i32_0 = arith.constant 0 : i32
    %c0_i32_1 = arith.constant 0 : i32
    return %c0_i32, %c0_i32_0 : i32, i32
  }
  func.func @transform_17(%arg0: i32) -> (i32, i32) {
    %c0_i32 = arith.constant 0 : i32
    %c0_i32_0 = arith.constant 0 : i32
    %c0_i32_1 = arith.constant 0 : i32
    return %c0_i32, %c0_i32_0 : i32, i32
  }
  func.func @transform_18(%arg0: i32) -> (i32, i32, i32) {
    %c0_i32 = arith.constant 0 : i32
    %c0_i32_0 = arith.constant 0 : i32
    %c0_i32_1 = arith.constant 0 : i32
    return %arg0, %c0_i32, %c0_i32_0 : i32, i32, i32
  }
}

</mosaic_0001>

<llo_original>
// kernel: tpu_custom_call.1
$region0: #{tpu_custom_call.1}
  #allocation0 [shape = 'u32[]', space=smem, size = 0x4, offset = 0x4, fixed_abs, tag = 'smem constant byte address 0x4 - core index']
  #allocation1 [shape = 'u32[144,128]{1,0:T(1,128)}', space=vmem, size = 0x12000, scoped, tag = 'internal scratch']
  #allocation2 [shape = 'f32[1,1]{1,0:T(1,128)S(1)}', space=vmem, size = 0x200, scoped, tag = 'scoped memory for tpu_custom_call.1']
  %s0 = inlined_call_operand.hbm [shape: bf16[4,16,128], index: 0, kind: input, shape index: {}]
  %s1 = inlined_call_operand.hbm [shape: bf16[128,384], index: 1, kind: input, shape index: {}]
  %s2 = inlined_call_operand.vmem [shape: f32[1,384], index: 2, kind: input, shape index: {}]
  %s3 = inlined_call_operand.vmem [shape: bf16[128,128], index: 3, kind: input, shape index: {}]
  %s4 = inlined_call_operand.vmem [shape: f32[1,128], index: 4, kind: input, shape index: {}]
  %s5 = inlined_call_operand.hbm [shape: bf16[128,128], index: 5, kind: input, shape index: {}]
  %s6 = inlined_call_operand.vmem [shape: f32[1,128], index: 6, kind: input, shape index: {}]
  %s7 = inlined_call_operand.hbm [shape: bf16[128,256], index: 7, kind: input, shape index: {}]
  %s8 = inlined_call_operand.vmem [shape: f32[1,256], index: 8, kind: input, shape index: {}]
  %s9 = inlined_call_operand.hbm [shape: bf16[128,128], index: 9, kind: input, shape index: {}]
  %s10 = inlined_call_operand.vmem [shape: f32[1,128], index: 10, kind: input, shape index: {}]
  %s11 = inlined_call_operand.vmem [shape: bf16[128,8], index: 11, kind: input, shape index: {}]
  %s12 = inlined_call_operand.vmem [shape: bf16[8,128], index: 12, kind: input, shape index: {}]
  %s13 = inlined_call_operand.hbm [shape: bf16[128,256], index: 13, kind: input, shape index: {}]
  %s14 = inlined_call_operand.hbm [shape: bf16[128,256], index: 14, kind: input, shape index: {}]
  %s15 = inlined_call_operand.vmem [shape: f32[1,256], index: 15, kind: input, shape index: {}]
  %s16 = inlined_call_operand.vmem [shape: f32[1,256], index: 16, kind: input, shape index: {}]
  %s17 = inlined_call_operand.<no memory space> [shape: f32[1,1], index: 17, kind: input, shape index: {}]
  %s18 = inlined_call_operand.hbm [shape: f32[2,2,128], index: 18, kind: output, shape index: {}]
  %s19 = sld [smem:[#allocation0]]
  $region133: #{tpu_custom_call.1} parent=0
    _
  %s21 = ssub.s32 1, %s19
  %s22 = scalar_select 0, %s21, %s19
  %v23 = vstv %s17
  %24 = vst [vmem:[#allocation2] sm:$0x1] %v23
  $region1: #{tpu_custom_call.1} parent=0
    #allocation3 [shape = 'u8[16384]{0}', space=vmem, size = 0x4000, scoped, tag = 'input window, operand 0']
    #allocation4 [shape = 's32[2]{0}', space=sflag, size = 0x8, scoped, tag = 'scoped memory for tpu_custom_call.1']
    #allocation5 [shape = 's32[2]{0}', space=sflag, size = 0x8, scoped, tag = 'scoped memory for tpu_custom_call.1']
    #allocation6 [shape = 'u8[98304]{0}', space=vmem, size = 0x18000, scoped, tag = 'input window, operand 1, single buffered']
    #allocation7 [shape = 's32[1]{0}', space=sflag, size = 0x4, scoped, tag = 'scoped memory for tpu_custom_call.1']
    #allocation8 [shape = 'u8[32768]{0}', space=vmem, size = 0x8000, scoped, tag = 'input window, operand 5, single buffered']
    #allocation9 [shape = 'u8[65536]{0}', space=vmem, size = 0x10000, scoped, tag = 'input window, operand 7, single buffered']
    #allocation10 [shape = 's32[1]{0}', space=sflag, size = 0x4, scoped, tag = 'scoped memory for tpu_custom_call.1']
    #allocation11 [shape = 'u8[32768]{0}', space=vmem, size = 0x8000, scoped, tag = 'input window, operand 9, single buffered']
    #allocation12 [shape = 'u8[65536]{0}', space=vmem, size = 0x10000, scoped, tag = 'input window, operand 13, single buffered']
    #allocation13 [shape = 's32[1]{0}', space=sflag, size = 0x4, scoped, tag = 'scoped memory for tpu_custom_call.1']
    #allocation14 [shape = 'u8[65536]{0}', space=vmem, size = 0x10000, scoped, tag = 'input window, operand 14, single buffered']
    #allocation15 [shape = 'u8[2048]{0}', space=vmem, size = 0x800, scoped, tag = 'output window, operand 0']
    %25 = vsyncpa [#allocation4], 0
    %s26 = scalar_lea.sflag [#allocation4], 1
    %27 = vsyncpa %s26, 0
    %28 = vsyncpa [#allocation7], 0
    %29 = vsyncpa [#allocation10], 0
    %30 = vsyncpa [#allocation13], 0
    %31 = vsyncpa [#allocation5], 0
    %s32 = scalar_lea.sflag [#allocation5], 1
    %33 = vsyncpa %s32, 0
    loop: start=0, step=1, limit=4
    $region2: #{tpu_custom_call.1} parent=1 // loop_pre_header
      _
    $region3: #{tpu_custom_call.1} parent=1 // loop_header
      %s35 = sphi 0, %s39
      %p36 = scmp.ge.s32.totalorder %s35, 4
      %s45 = sphi 0, %s47
      %s48 = sphi 0, %s45
      %s49 = sphi 0, %s48
      %s65 = sphi 0, %s49
      %s69 = sphi 0, %s69
      %s71 = sphi 0, %s69
      %s72 = sphi 0, %s71
      %s86 = sphi 0, %s72
      %s90 = sphi 0, %s90
      %s92 = sphi 0, %s90
      %s93 = sphi 0, %s92
      %s107 = sphi 0, %s93
      %s111 = sphi 0, %s111
      %s113 = sphi 0, %s111
      %s114 = sphi 0, %s113
      %s128 = sphi 0, %s114
      %s132 = sphi 0, %s132
      %s134 = sphi 0, %s132
      %s135 = sphi 0, %s134
      %s149 = sphi 0, %s135
      %s153 = sphi 0, %s153
      %s155 = sphi 0, %s153
      %s156 = sphi 0, %s155
      %s170 = sphi 0, %s156
      %s174 = sphi 0, %s174
      %s176 = sphi 0, %s174
      %s177 = sphi 0, %s176
      %s191 = sphi 0, %s177
      %s195 = sphi 0, %s195
      %s197 = sphi 0, %s195
      %s198 = sphi 0, %s197
      %s212 = sphi 0, %s198
      %s216 = sphi 0, %s216
      %s218 = sphi 0, %s216
      %s219 = sphi 0, %s218
      %s233 = sphi 0, %s219
      %s237 = sphi 0, %s237
      %s239 = sphi 0, %s237
      %s240 = sphi 0, %s239
      %s254 = sphi 0, %s240
      %s258 = sphi 0, %s258
      %s260 = sphi 0, %s258
      %s261 = sphi 0, %s260
      %s275 = sphi 0, %s261
      %s279 = sphi 0, %s279
      %s281 = sphi 0, %s279
      %s282 = sphi 0, %s281
      %s296 = sphi 0, %s282
      %s300 = sphi 0, %s300
      %s302 = sphi 0, %s300
      %s303 = sphi 0, %s302
      %s317 = sphi 0, %s303
      %s321 = sphi 0, %s321
      %s323 = sphi 0, %s321
      %s324 = sphi 0, %s323
      %s338 = sphi 0, %s324
      %s342 = sphi 0, %s342
      %s344 = sphi 0, %s342
      %s345 = sphi 0, %s344
      %s359 = sphi 0, %s345
      %s363 = sphi 0, %s363
      %s365 = sphi 0, %s363
      %s366 = sphi 0, %s365
      %s380 = sphi 0, %s366
      %s384 = sphi 0, %s384
      %s386 = sphi 0, %s384
      %s387 = sphi 0, %s386
      %s401 = sphi 0, %s387
      %s405 = sphi 0, %s405
      %s407 = sphi 0, %s405
      %s408 = sphi 0, %s407
      %s422 = sphi 0, %s408
      %s428 = sphi 0, %s430
      %s431 = sphi 0, %s428
      %s432 = sphi 0, %s431
      %s448 = sphi 0, %s432
    $region4: #{tpu_custom_call.1} parent=1 // loop_header_branch
      %38 = sbr.rel (%p36) target = $region8
    $region5: #{tpu_custom_call.1} parent=1 // loop_body
      %s40 = ssub.s32 %s35, 1
      %s41 = ssub.s32 %s35, 2
      %s42 = sadd.s32 %s35, 1
      %s43 = ssub.s32 %s35, %s42
      %p44 = scmp.eq.s32.totalorder %s43, 0
      %s46 = sadd.s32 %s45, 1
      %s47 = scalar_select %p44, %s45, %s46
      %p50 = pneg %p44
      %p51 = scmp.eq.s32.totalorder %s35, 1
      %p52 = por %p50, %p51
      %p53 = scmp.ne.s32.totalorder %s45, %s48
      %p54 = scmp.eq.s32.totalorder %s35, 0
      %p55 = por %p53, %p54
      %p56 = scmp.ne.s32.totalorder %s45, %s48
      %p57 = scmp.eq.s32.totalorder %s40, 1
      %p58 = por %p56, %p57
      %p59 = scmp.ne.s32.totalorder %s48, %s49
      %p60 = scmp.eq.s32.totalorder %s40, 0
      %p61 = por %p59, %p60
      %p62 = scmp.ne.s32.totalorder %s48, %s49
      %p63 = scmp.eq.s32.totalorder %s41, 1
      %p64 = por %p62, %p63
      %p66 = scmp.ne.s32.totalorder %s49, %s65
      %p67 = scmp.eq.s32.totalorder %s41, 0
      %p68 = por %p66, %p67
      %s70 = sadd.s32 %s69, 1
      %p73 = scmp.eq.s32.totalorder %s35, 1
      %p74 = scmp.ne.s32.totalorder %s69, %s71
      %p75 = scmp.eq.s32.totalorder %s35, 0
      %p76 = por %p74, %p75
      %p77 = scmp.ne.s32.totalorder %s69, %s71
      %p78 = scmp.eq.s32.totalorder %s40, 1
      %p79 = por %p77, %p78
      %p80 = scmp.ne.s32.totalorder %s71, %s72
      %p81 = scmp.eq.s32.totalorder %s40, 0
      %p82 = por %p80, %p81
      %p83 = scmp.ne.s32.totalorder %s71, %s72
      %p84 = scmp.eq.s32.totalorder %s41, 1
      %p85 = por %p83, %p84
      %p87 = scmp.ne.s32.totalorder %s72, %s86
      %p88 = scmp.eq.s32.totalorder %s41, 0
      %p89 = por %p87, %p88
      %s91 = sadd.s32 %s90, 1
      %p94 = scmp.eq.s32.totalorder %s35, 1
      %p95 = scmp.ne.s32.totalorder %s90, %s92
      %p96 = scmp.eq.s32.totalorder %s35, 0
      %p97 = por %p95, %p96
      %p98 = scmp.ne.s32.totalorder %s90, %s92
      %p99 = scmp.eq.s32.totalorder %s40, 1
      %p100 = por %p98, %p99
      %p101 = scmp.ne.s32.totalorder %s92, %s93
      %p102 = scmp.eq.s32.totalorder %s40, 0
      %p103 = por %p101, %p102
      %p104 = scmp.ne.s32.totalorder %s92, %s93
      %p105 = scmp.eq.s32.totalorder %s41, 1
      %p106 = por %p104, %p105
      %p108 = scmp.ne.s32.totalorder %s93, %s107
      %p109 = scmp.eq.s32.totalorder %s41, 0
      %p110 = por %p108, %p109
      %s112 = sadd.s32 %s111, 1
      %p115 = scmp.eq.s32.totalorder %s35, 1
      %p116 = scmp.ne.s32.totalorder %s111, %s113
      %p117 = scmp.eq.s32.totalorder %s35, 0
      %p118 = por %p116, %p117
      %p119 = scmp.ne.s32.totalorder %s111, %s113
      %p120 = scmp.eq.s32.totalorder %s40, 1
      %p121 = por %p119, %p120
      %p122 = scmp.ne.s32.totalorder %s113, %s114
      %p123 = scmp.eq.s32.totalorder %s40, 0
      %p124 = por %p122, %p123
      %p125 = scmp.ne.s32.totalorder %s113, %s114
      %p126 = scmp.eq.s32.totalorder %s41, 1
      %p127 = por %p125, %p126
      %p129 = scmp.ne.s32.totalorder %s114, %s128
      %p130 = scmp.eq.s32.totalorder %s41, 0
      %p131 = por %p129, %p130
      %s133 = sadd.s32 %s132, 1
      %p136 = scmp.eq.s32.totalorder %s35, 1
      %p137 = scmp.ne.s32.totalorder %s132, %s134
      %p138 = scmp.eq.s32.totalorder %s35, 0
      %p139 = por %p137, %p138
      %p140 = scmp.ne.s32.totalorder %s132, %s134
      %p141 = scmp.eq.s32.totalorder %s40, 1
      %p142 = por %p140, %p141
      %p143 = scmp.ne.s32.totalorder %s134, %s135
      %p144 = scmp.eq.s32.totalorder %s40, 0
      %p145 = por %p143, %p144
      %p146 = scmp.ne.s32.totalorder %s134, %s135
      %p147 = scmp.eq.s32.totalorder %s41, 1
      %p148 = por %p146, %p147
      %p150 = scmp.ne.s32.totalorder %s135, %s149
      %p151 = scmp.eq.s32.totalorder %s41, 0
      %p152 = por %p150, %p151
      %s154 = sadd.s32 %s153, 1
      %p157 = scmp.eq.s32.totalorder %s35, 1
      %p158 = scmp.ne.s32.totalorder %s153, %s155
      %p159 = scmp.eq.s32.totalorder %s35, 0
      %p160 = por %p158, %p159
      %p161 = scmp.ne.s32.totalorder %s153, %s155
      %p162 = scmp.eq.s32.totalorder %s40, 1
      %p163 = por %p161, %p162
      %p164 = scmp.ne.s32.totalorder %s155, %s156
      %p165 = scmp.eq.s32.totalorder %s40, 0
      %p166 = por %p164, %p165
      %p167 = scmp.ne.s32.totalorder %s155, %s156
      %p168 = scmp.eq.s32.totalorder %s41, 1
      %p169 = por %p167, %p168
      %p171 = scmp.ne.s32.totalorder %s156, %s170
      %p172 = scmp.eq.s32.totalorder %s41, 0
      %p173 = por %p171, %p172
      %s175 = sadd.s32 %s174, 1
      %p178 = scmp.eq.s32.totalorder %s35, 1
      %p179 = scmp.ne.s32.totalorder %s174, %s176
      %p180 = scmp.eq.s32.totalorder %s35, 0
      %p181 = por %p179, %p180
      %p182 = scmp.ne.s32.totalorder %s174, %s176
      %p183 = scmp.eq.s32.totalorder %s40, 1
      %p184 = por %p182, %p183
      %p185 = scmp.ne.s32.totalorder %s176, %s177
      %p186 = scmp.eq.s32.totalorder %s40, 0
      %p187 = por %p185, %p186
      %p188 = scmp.ne.s32.totalorder %s176, %s177
      %p189 = scmp.eq.s32.totalorder %s41, 1
      %p190 = por %p188, %p189
      %p192 = scmp.ne.s32.totalorder %s177, %s191
      %p193 = scmp.eq.s32.totalorder %s41, 0
      %p194 = por %p192, %p193
      %s196 = sadd.s32 %s195, 1
      %p199 = scmp.eq.s32.totalorder %s35, 1
      %p200 = scmp.ne.s32.totalorder %s195, %s197
      %p201 = scmp.eq.s32.totalorder %s35, 0
      %p202 = por %p200, %p201
      %p203 = scmp.ne.s32.totalorder %s195, %s197
      %p204 = scmp.eq.s32.totalorder %s40, 1
      %p205 = por %p203, %p204
      %p206 = scmp.ne.s32.totalorder %s197, %s198
      %p207 = scmp.eq.s32.totalorder %s40, 0
      %p208 = por %p206, %p207
      %p209 = scmp.ne.s32.totalorder %s197, %s198
      %p210 = scmp.eq.s32.totalorder %s41, 1
      %p211 = por %p209, %p210
      %p213 = scmp.ne.s32.totalorder %s198, %s212
      %p214 = scmp.eq.s32.totalorder %s41, 0
      %p215 = por %p213, %p214
      %s217 = sadd.s32 %s216, 1
      %p220 = scmp.eq.s32.totalorder %s35, 1
      %p221 = scmp.ne.s32.totalorder %s216, %s218
      %p222 = scmp.eq.s32.totalorder %s35, 0
      %p223 = por %p221, %p222
      %p224 = scmp.ne.s32.totalorder %s216, %s218
      %p225 = scmp.eq.s32.totalorder %s40, 1
      %p226 = por %p224, %p225
      %p227 = scmp.ne.s32.totalorder %s218, %s219
      %p228 = scmp.eq.s32.totalorder %s40, 0
      %p229 = por %p227, %p228
      %p230 = scmp.ne.s32.totalorder %s218, %s219
      %p231 = scmp.eq.s32.totalorder %s41, 1
      %p232 = por %p230, %p231
      %p234 = scmp.ne.s32.totalorder %s219, %s233
      %p235 = scmp.eq.s32.totalorder %s41, 0
      %p236 = por %p234, %p235
      %s238 = sadd.s32 %s237, 1
      %p241 = scmp.eq.s32.totalorder %s35, 1
      %p242 = scmp.ne.s32.totalorder %s237, %s239
      %p243 = scmp.eq.s32.totalorder %s35, 0
      %p244 = por %p242, %p243
      %p245 = scmp.ne.s32.totalorder %s237, %s239
      %p246 = scmp.eq.s32.totalorder %s40, 1
      %p247 = por %p245, %p246
      %p248 = scmp.ne.s32.totalorder %s239, %s240
      %p249 = scmp.eq.s32.totalorder %s40, 0
      %p250 = por %p248, %p249
      %p251 = scmp.ne.s32.totalorder %s239, %s240
      %p252 = scmp.eq.s32.totalorder %s41, 1
      %p253 = por %p251, %p252
      %p255 = scmp.ne.s32.totalorder %s240, %s254
      %p256 = scmp.eq.s32.totalorder %s41, 0
      %p257 = por %p255, %p256
      %s259 = sadd.s32 %s258, 1
      %p262 = scmp.eq.s32.totalorder %s35, 1
      %p263 = scmp.ne.s32.totalorder %s258, %s260
      %p264 = scmp.eq.s32.totalorder %s35, 0
      %p265 = por %p263, %p264
      %p266 = scmp.ne.s32.totalorder %s258, %s260
      %p267 = scmp.eq.s32.totalorder %s40, 1
      %p268 = por %p266, %p267
      %p269 = scmp.ne.s32.totalorder %s260, %s261
      %p270 = scmp.eq.s32.totalorder %s40, 0
      %p271 = por %p269, %p270
      %p272 = scmp.ne.s32.totalorder %s260, %s261
      %p273 = scmp.eq.s32.totalorder %s41, 1
      %p274 = por %p272, %p273
      %p276 = scmp.ne.s32.totalorder %s261, %s275
      %p277 = scmp.eq.s32.totalorder %s41, 0
      %p278 = por %p276, %p277
      %s280 = sadd.s32 %s279, 1
      %p283 = scmp.eq.s32.totalorder %s35, 1
      %p284 = scmp.ne.s32.totalorder %s279, %s281
      %p285 = scmp.eq.s32.totalorder %s35, 0
      %p286 = por %p284, %p285
      %p287 = scmp.ne.s32.totalorder %s279, %s281
      %p288 = scmp.eq.s32.totalorder %s40, 1
      %p289 = por %p287, %p288
      %p290 = scmp.ne.s32.totalorder %s281, %s282
      %p291 = scmp.eq.s32.totalorder %s40, 0
      %p292 = por %p290, %p291
      %p293 = scmp.ne.s32.totalorder %s281, %s282
      %p294 = scmp.eq.s32.totalorder %s41, 1
      %p295 = por %p293, %p294
      %p297 = scmp.ne.s32.totalorder %s282, %s296
      %p298 = scmp.eq.s32.totalorder %s41, 0
      %p299 = por %p297, %p298
      %s301 = sadd.s32 %s300, 1
      %p304 = scmp.eq.s32.totalorder %s35, 1
      %p305 = scmp.ne.s32.totalorder %s300, %s302
      %p306 = scmp.eq.s32.totalorder %s35, 0
      %p307 = por %p305, %p306
      %p308 = scmp.ne.s32.totalorder %s300, %s302
      %p309 = scmp.eq.s32.totalorder %s40, 1
      %p310 = por %p308, %p309
      %p311 = scmp.ne.s32.totalorder %s302, %s303
      %p312 = scmp.eq.s32.totalorder %s40, 0
      %p313 = por %p311, %p312
      %p314 = scmp.ne.s32.totalorder %s302, %s303
      %p315 = scmp.eq.s32.totalorder %s41, 1
      %p316 = por %p314, %p315
      %p318 = scmp.ne.s32.totalorder %s303, %s317
      %p319 = scmp.eq.s32.totalorder %s41, 0
      %p320 = por %p318, %p319
      %s322 = sadd.s32 %s321, 1
      %p325 = scmp.eq.s32.totalorder %s35, 1
      %p326 = scmp.ne.s32.totalorder %s321, %s323
      %p327 = scmp.eq.s32.totalorder %s35, 0
      %p328 = por %p326, %p327
      %p329 = scmp.ne.s32.totalorder %s321, %s323
      %p330 = scmp.eq.s32.totalorder %s40, 1
      %p331 = por %p329, %p330
      %p332 = scmp.ne.s32.totalorder %s323, %s324
      %p333 = scmp.eq.s32.totalorder %s40, 0
      %p334 = por %p332, %p333
      %p335 = scmp.ne.s32.totalorder %s323, %s324
      %p336 = scmp.eq.s32.totalorder %s41, 1
      %p337 = por %p335, %p336
      %p339 = scmp.ne.s32.totalorder %s324, %s338
      %p340 = scmp.eq.s32.totalorder %s41, 0
      %p341 = por %p339, %p340
      %s343 = sadd.s32 %s342, 1
      %p346 = scmp.eq.s32.totalorder %s35, 1
      %p347 = scmp.ne.s32.totalorder %s342, %s344
      %p348 = scmp.eq.s32.totalorder %s35, 0
      %p349 = por %p347, %p348
      %p350 = scmp.ne.s32.totalorder %s342, %s344
      %p351 = scmp.eq.s32.totalorder %s40, 1
      %p352 = por %p350, %p351
      %p353 = scmp.ne.s32.totalorder %s344, %s345
      %p354 = scmp.eq.s32.totalorder %s40, 0
      %p355 = por %p353, %p354
      %p356 = scmp.ne.s32.totalorder %s344, %s345
      %p357 = scmp.eq.s32.totalorder %s41, 1
      %p358 = por %p356, %p357
      %p360 = scmp.ne.s32.totalorder %s345, %s359
      %p361 = scmp.eq.s32.totalorder %s41, 0
      %p362 = por %p360, %p361
      %s364 = sadd.s32 %s363, 1
      %p367 = scmp.eq.s32.totalorder %s35, 1
      %p368 = scmp.ne.s32.totalorder %s363, %s365
      %p369 = scmp.eq.s32.totalorder %s35, 0
      %p370 = por %p368, %p369
      %p371 = scmp.ne.s32.totalorder %s363, %s365
      %p372 = scmp.eq.s32.totalorder %s40, 1
      %p373 = por %p371, %p372
      %p374 = scmp.ne.s32.totalorder %s365, %s366
      %p375 = scmp.eq.s32.totalorder %s40, 0
      %p376 = por %p374, %p375
      %p377 = scmp.ne.s32.totalorder %s365, %s366
      %p378 = scmp.eq.s32.totalorder %s41, 1
      %p379 = por %p377, %p378
      %p381 = scmp.ne.s32.totalorder %s366, %s380
      %p382 = scmp.eq.s32.totalorder %s41, 0
      %p383 = por %p381, %p382
      %s385 = sadd.s32 %s384, 1
      %p388 = scmp.eq.s32.totalorder %s35, 1
      %p389 = scmp.ne.s32.totalorder %s384, %s386
      %p390 = scmp.eq.s32.totalorder %s35, 0
      %p391 = por %p389, %p390
      %p392 = scmp.ne.s32.totalorder %s384, %s386
      %p393 = scmp.eq.s32.totalorder %s40, 1
      %p394 = por %p392, %p393
      %p395 = scmp.ne.s32.totalorder %s386, %s387
      %p396 = scmp.eq.s32.totalorder %s40, 0
      %p397 = por %p395, %p396
      %p398 = scmp.ne.s32.totalorder %s386, %s387
      %p399 = scmp.eq.s32.totalorder %s41, 1
      %p400 = por %p398, %p399
      %p402 = scmp.ne.s32.totalorder %s387, %s401
      %p403 = scmp.eq.s32.totalorder %s41, 0
      %p404 = por %p402, %p403
      %s406 = sadd.s32 %s405, 1
      %p409 = scmp.eq.s32.totalorder %s35, 1
      %p410 = scmp.ne.s32.totalorder %s405, %s407
      %p411 = scmp.eq.s32.totalorder %s35, 0
      %p412 = por %p410, %p411
      %p413 = scmp.ne.s32.totalorder %s405, %s407
      %p414 = scmp.eq.s32.totalorder %s40, 1
      %p415 = por %p413, %p414
      %p416 = scmp.ne.s32.totalorder %s407, %s408
      %p417 = scmp.eq.s32.totalorder %s40, 0
      %p418 = por %p416, %p417
      %p419 = scmp.ne.s32.totalorder %s407, %s408
      %p420 = scmp.eq.s32.totalorder %s41, 1
      %p421 = por %p419, %p420
      %p423 = scmp.ne.s32.totalorder %s408, %s422
      %p424 = scmp.eq.s32.totalorder %s41, 0
      %p425 = por %p423, %p424
      %s426 = ssub.s32 %s35, %s42
      %p427 = scmp.eq.s32.totalorder %s426, 0
      %s429 = sadd.s32 %s428, 1
      %s430 = scalar_select %p427, %s428, %s429
      %p433 = pneg %p427
      %p434 = scmp.eq.s32.totalorder %s35, 1
      %p435 = por %p433, %p434
      %p436 = scmp.ne.s32.totalorder %s428, %s431
      %p437 = scmp.eq.s32.totalorder %s35, 0
      %p438 = por %p436, %p437
      %p439 = scmp.ne.s32.totalorder %s428, %s431
      %p440 = scmp.eq.s32.totalorder %s40, 1
      %p441 = por %p439, %p440
      %p442 = scmp.ne.s32.totalorder %s431, %s432
      %p443 = scmp.eq.s32.totalorder %s40, 0
      %p444 = por %p442, %p443
      %p445 = scmp.ne.s32.totalorder %s431, %s432
      %p446 = scmp.eq.s32.totalorder %s41, 1
      %p447 = por %p445, %p446
      %p449 = scmp.ne.s32.totalorder %s432, %s448
      %p450 = scmp.eq.s32.totalorder %s41, 0
      %p451 = por %p449, %p450
      %p452 = scmp.le.s32.totalorder 1, %s35
      %p453 = scmp.lt.s32.totalorder %s35, 3
      %p454 = pnand %p452, %p453
      %p455 = pneg %p454
      // Predicated region
      $region9: #{tpu_custom_call.1} parent=5 // pred_check
        _
      $region10: #{tpu_custom_call.1} parent=5 // pred_check_branch
        %457 = sbr.rel (%p454) target = $region12
      $region11: #{tpu_custom_call.1} parent=5 // pred_region
        %s458 = ssub.s32 %s35, 1
        // Predicated region
        $region13: #{tpu_custom_call.1} parent=11 // pred_check
          %p459 = pneg %p82
        $region14: #{tpu_custom_call.1} parent=11 // pred_check_branch
          %461 = sbr.rel (%p459) target = $region16
        $region15: #{tpu_custom_call.1} parent=11 // pred_region
          %s463 = ssub.s32 3072, 3072
          %464 = vsyncadd [#allocation7], %s463
          %s465 = sshll.u32 [#allocation6], 4
          %s466 = int_to_ptr.vmem [resolvable:$true] %s465
          %471 = dma.hbm_to_vmem [thread:$0]  %s1, 3072, %s466, [#allocation7], 192, 192, 12
        $region16: #{tpu_custom_call.1} parent=11 // pred_fallthru
          _
        // Predicated region
        $region17: #{tpu_custom_call.1} parent=11 // pred_check
          %p472 = pneg %p103
        $region18: #{tpu_custom_call.1} parent=11 // pred_check_branch
          %474 = sbr.rel (%p472) target = $region20
        $region19: #{tpu_custom_call.1} parent=11 // pred_region
          _
        $region20: #{tpu_custom_call.1} parent=11 // pred_fallthru
          _
        // Predicated region
        $region21: #{tpu_custom_call.1} parent=11 // pred_check
          %p475 = pneg %p124
        $region22: #{tpu_custom_call.1} parent=11 // pred_check_branch
          %477 = sbr.rel (%p475) target = $region24
        $region23: #{tpu_custom_call.1} parent=11 // pred_region
          _
        $region24: #{tpu_custom_call.1} parent=11 // pred_fallthru
          _
        // Predicated region
        $region25: #{tpu_custom_call.1} parent=11 // pred_check
          %p478 = pneg %p145
        $region26: #{tpu_custom_call.1} parent=11 // pred_check_branch
          %480 = sbr.rel (%p478) target = $region28
        $region27: #{tpu_custom_call.1} parent=11 // pred_region
          _
        $region28: #{tpu_custom_call.1} parent=11 // pred_fallthru
          _
        // Predicated region
        $region29: #{tpu_custom_call.1} parent=11 // pred_check
          %p481 = pneg %p166
        $region30: #{tpu_custom_call.1} parent=11 // pred_check_branch
          %483 = sbr.rel (%p481) target = $region32
        $region31: #{tpu_custom_call.1} parent=11 // pred_region
          %s485 = ssub.s32 1024, 1024
          %486 = vsyncadd [#allocation7], %s485
          %s487 = sshll.u32 [#allocation8], 4
          %s488 = int_to_ptr.vmem [resolvable:$true] %s487
          %493 = dma.hbm_to_vmem [thread:$0]  %s5, 1024, %s488, [#allocation7], 64, 64, 4
        $region32: #{tpu_custom_call.1} parent=11 // pred_fallthru
          _
        // Predicated region
        $region33: #{tpu_custom_call.1} parent=11 // pred_check
          %p494 = pneg %p187
        $region34: #{tpu_custom_call.1} parent=11 // pred_check_branch
          %496 = sbr.rel (%p494) target = $region36
        $region35: #{tpu_custom_call.1} parent=11 // pred_region
          _
        $region36: #{tpu_custom_call.1} parent=11 // pred_fallthru
          _
        // Predicated region
        $region37: #{tpu_custom_call.1} parent=11 // pred_check
          %p497 = pneg %p208
        $region38: #{tpu_custom_call.1} parent=11 // pred_check_branch
          %499 = sbr.rel (%p497) target = $region40
        $region39: #{tpu_custom_call.1} parent=11 // pred_region
          %s501 = ssub.s32 2048, 2048
          %502 = vsyncadd [#allocation10], %s501
          %s503 = sshll.u32 [#allocation9], 4
          %s504 = int_to_ptr.vmem [resolvable:$true] %s503
          %509 = dma.hbm_to_vmem [thread:$0]  %s7, 2048, %s504, [#allocation10], 128, 128, 8
        $region40: #{tpu_custom_call.1} parent=11 // pred_fallthru
          _
        // Predicated region
        $region41: #{tpu_custom_call.1} parent=11 // pred_check
          %p510 = pneg %p229
        $region42: #{tpu_custom_call.1} parent=11 // pred_check_branch
          %512 = sbr.rel (%p510) target = $region44
        $region43: #{tpu_custom_call.1} parent=11 // pred_region
          _
        $region44: #{tpu_custom_call.1} parent=11 // pred_fallthru
          _
        // Predicated region
        $region45: #{tpu_custom_call.1} parent=11 // pred_check
          %p513 = pneg %p250
        $region46: #{tpu_custom_call.1} parent=11 // pred_check_branch
          %515 = sbr.rel (%p513) target = $region48
        $region47: #{tpu_custom_call.1} parent=11 // pred_region
          %s517 = ssub.s32 1024, 1024
          %518 = vsyncadd [#allocation10], %s517
          %s519 = sshll.u32 [#allocation11], 4
          %s520 = int_to_ptr.vmem [resolvable:$true] %s519
          %525 = dma.hbm_to_vmem [thread:$0]  %s9, 1024, %s520, [#allocation10], 64, 64, 4
        $region48: #{tpu_custom_call.1} parent=11 // pred_fallthru
          _
        // Predicated region
        $region49: #{tpu_custom_call.1} parent=11 // pred_check
          %p526 = pneg %p271
        $region50: #{tpu_custom_call.1} parent=11 // pred_check_branch
          %528 = sbr.rel (%p526) target = $region52
        $region51: #{tpu_custom_call.1} parent=11 // pred_region
          _
        $region52: #{tpu_custom_call.1} parent=11 // pred_fallthru
          _
        // Predicated region
        $region53: #{tpu_custom_call.1} parent=11 // pred_check
          %p529 = pneg %p292
        $region54: #{tpu_custom_call.1} parent=11 // pred_check_branch
          %531 = sbr.rel (%p529) target = $region56
        $region55: #{tpu_custom_call.1} parent=11 // pred_region
          _
        $region56: #{tpu_custom_call.1} parent=11 // pred_fallthru
          _
        // Predicated region
        $region57: #{tpu_custom_call.1} parent=11 // pred_check
          %p532 = pneg %p313
        $region58: #{tpu_custom_call.1} parent=11 // pred_check_branch
          %534 = sbr.rel (%p532) target = $region60
        $region59: #{tpu_custom_call.1} parent=11 // pred_region
          _
        $region60: #{tpu_custom_call.1} parent=11 // pred_fallthru
          _
        // Predicated region
        $region61: #{tpu_custom_call.1} parent=11 // pred_check
          %p535 = pneg %p334
        $region62: #{tpu_custom_call.1} parent=11 // pred_check_branch
          %537 = sbr.rel (%p535) target = $region64
        $region63: #{tpu_custom_call.1} parent=11 // pred_region
          %s539 = ssub.s32 2048, 2048
          %540 = vsyncadd [#allocation13], %s539
          %s541 = sshll.u32 [#allocation12], 4
          %s542 = int_to_ptr.vmem [resolvable:$true] %s541
          %547 = dma.hbm_to_vmem [thread:$0]  %s13, 2048, %s542, [#allocation13], 128, 128, 8
        $region64: #{tpu_custom_call.1} parent=11 // pred_fallthru
          _
        // Predicated region
        $region65: #{tpu_custom_call.1} parent=11 // pred_check
          %p548 = pneg %p355
        $region66: #{tpu_custom_call.1} parent=11 // pred_check_branch
          %550 = sbr.rel (%p548) target = $region68
        $region67: #{tpu_custom_call.1} parent=11 // pred_region
          %s552 = ssub.s32 2048, 2048
          %553 = vsyncadd [#allocation13], %s552
          %s554 = sshll.u32 [#allocation14], 4
          %s555 = int_to_ptr.vmem [resolvable:$true] %s554
          %560 = dma.hbm_to_vmem [thread:$0]  %s14, 2048, %s555, [#allocation13], 128, 128, 8
        $region68: #{tpu_custom_call.1} parent=11 // pred_fallthru
          _
        // Predicated region
        $region69: #{tpu_custom_call.1} parent=11 // pred_check
          %p561 = pneg %p376
        $region70: #{tpu_custom_call.1} parent=11 // pred_check_branch
          %563 = sbr.rel (%p561) target = $region72
        $region71: #{tpu_custom_call.1} parent=11 // pred_region
          _
        $region72: #{tpu_custom_call.1} parent=11 // pred_fallthru
          _
        // Predicated region
        $region73: #{tpu_custom_call.1} parent=11 // pred_check
          %p564 = pneg %p397
        $region74: #{tpu_custom_call.1} parent=11 // pred_check_branch
          %566 = sbr.rel (%p564) target = $region76
        $region75: #{tpu_custom_call.1} parent=11 // pred_region
          _
        $region76: #{tpu_custom_call.1} parent=11 // pred_fallthru
          _
        // Predicated region
        $region77: #{tpu_custom_call.1} parent=11 // pred_check
          %p567 = pneg %p418
        $region78: #{tpu_custom_call.1} parent=11 // pred_check_branch
          %569 = sbr.rel (%p567) target = $region80
        $region79: #{tpu_custom_call.1} parent=11 // pred_region
          _
        $region80: #{tpu_custom_call.1} parent=11 // pred_fallthru
          _
      $region12: #{tpu_custom_call.1} parent=5 // pred_fallthru
        _
      %p570 = scmp.lt.s32.totalorder %s35, 2
      // Predicated region
      $region81: #{tpu_custom_call.1} parent=5 // pred_check
        %p571 = pneg %p570
      $region82: #{tpu_custom_call.1} parent=5 // pred_check_branch
        %573 = sbr.rel (%p571) target = $region84
      $region83: #{tpu_custom_call.1} parent=5 // pred_region
        // Predicated region
        $region85: #{tpu_custom_call.1} parent=83 // pred_check
          %p574 = pneg %p55
        $region86: #{tpu_custom_call.1} parent=83 // pred_check_branch
          %576 = sbr.rel (%p574) target = $region88
        $region87: #{tpu_custom_call.1} parent=83 // pred_region
          %s577 = sand.u32 %s45, 1
          %s578 = scalar_lea.sflag [#allocation4], %s577
          %s579 = sand.u32 %s45, 1
          %s580 = smul.addr %s579, 16
          %s581 = scalar_lea.vmem [#allocation3], %s580
          %s582 = smul.u32 2, %s35
          %s584 = ssub.s32 256, 256
          %585 = vsyncadd %s578, %s584
          %s586 = smul.addr %s582, 2
          %s587 = smul.addr %s586, 64
          %s588 = scalar_lea.hbm %s0, %s587
          %s589 = sshll.u32 %s581, 4
          %s590 = int_to_ptr.vmem [resolvable:$true] %s589
          %595 = dma.hbm_to_vmem [thread:$0]  %s588, 256, %s590, %s578, 64, 64, 4
        $region88: #{tpu_custom_call.1} parent=83 // pred_fallthru
          _
      $region84: #{tpu_custom_call.1} parent=5 // pred_fallthru
        _
      %p596 = scmp.le.s32.totalorder 1, %s35
      %p597 = scmp.lt.s32.totalorder %s35, 3
      %p598 = pnand %p596, %p597
      %p599 = pneg %p598
      // Predicated region
      $region89: #{tpu_custom_call.1} parent=5 // pred_check
        _
      $region90: #{tpu_custom_call.1} parent=5 // pred_check_branch
        %601 = sbr.rel (%p598) target = $region92
      $region91: #{tpu_custom_call.1} parent=5 // pred_region
        %s602 = ssub.s32 %s35, 1
        %s603 = sand.u32 %s48, 1
        %s604 = scalar_lea.sflag [#allocation4], %s603
        %s605 = sand.u32 %s48, 1
        %s606 = smul.addr %s605, 16
        %s607 = scalar_lea.vmem [#allocation3], %s606
        // Predicated region
        $region93: #{tpu_custom_call.1} parent=91 // pred_check
          %p608 = pneg %p61
        $region94: #{tpu_custom_call.1} parent=91 // pred_check_branch
          %610 = sbr.rel (%p608) target = $region96
        $region95: #{tpu_custom_call.1} parent=91 // pred_region
          %611 = dma.done %s604, 256
        $region96: #{tpu_custom_call.1} parent=91 // pred_fallthru
          _
        // Predicated region
        $region97: #{tpu_custom_call.1} parent=91 // pred_check
          %p612 = pneg %p82
        $region98: #{tpu_custom_call.1} parent=91 // pred_check_branch
          %614 = sbr.rel (%p612) target = $region100
        $region99: #{tpu_custom_call.1} parent=91 // pred_region
          %615 = dma.done [#allocation7], 3072
        $region100: #{tpu_custom_call.1} parent=91 // pred_fallthru
          _
        // Predicated region
        $region101: #{tpu_custom_call.1} parent=91 // pred_check
          %p616 = pneg %p166
        $region102: #{tpu_custom_call.1} parent=91 // pred_check_branch
          %618 = sbr.rel (%p616) target = $region104
        $region103: #{tpu_custom_call.1} parent=91 // pred_region
          %619 = dma.done [#allocation7], 1024
        $region104: #{tpu_custom_call.1} parent=91 // pred_fallthru
          _
        // Predicated region
        $region105: #{tpu_custom_call.1} parent=91 // pred_check
          %p620 = pneg %p208
        $region106: #{tpu_custom_call.1} parent=91 // pred_check_branch
          %622 = sbr.rel (%p620) target = $region108
        $region107: #{tpu_custom_call.1} parent=91 // pred_region
          %623 = dma.done [#allocation10], 2048
        $region108: #{tpu_custom_call.1} parent=91 // pred_fallthru
          _
        // Predicated region
        $region109: #{tpu_custom_call.1} parent=91 // pred_check
          %p624 = pneg %p250
        $region110: #{tpu_custom_call.1} parent=91 // pred_check_branch
          %626 = sbr.rel (%p624) target = $region112
        $region111: #{tpu_custom_call.1} parent=91 // pred_region
          %627 = dma.done [#allocation10], 1024
        $region112: #{tpu_custom_call.1} parent=91 // pred_fallthru
          _
        // Predicated region
        $region113: #{tpu_custom_call.1} parent=91 // pred_check
          %p628 = pneg %p334
        $region114: #{tpu_custom_call.1} parent=91 // pred_check_branch
          %630 = sbr.rel (%p628) target = $region116
        $region115: #{tpu_custom_call.1} parent=91 // pred_region
          %631 = dma.done [#allocation13], 2048
        $region116: #{tpu_custom_call.1} parent=91 // pred_fallthru
          _
        // Predicated region
        $region117: #{tpu_custom_call.1} parent=91 // pred_check
          %p632 = pneg %p355
        $region118: #{tpu_custom_call.1} parent=91 // pred_check_branch
          %634 = sbr.rel (%p632) target = $region120
        $region119: #{tpu_custom_call.1} parent=91 // pred_region
          %635 = dma.done [#allocation13], 2048
        $region120: #{tpu_custom_call.1} parent=91 // pred_fallthru
          _
        %s636 = sand.u32 %s48, 1
        %s637 = scalar_lea.sflag [#allocation4], %s636
        %s638 = sand.u32 %s48, 1
        %s639 = smul.addr %s638, 16
        %s640 = scalar_lea.vmem [#allocation3], %s639
        %p641 = pneg %p61
        %p642 = pneg %p58
        %p643 = pneg %p82
        %p644 = pneg %p79
        %p645 = pneg %p103
        %p646 = pneg %p100
        %p647 = pneg %p124
        %p648 = pneg %p121
        %p649 = pneg %p145
        %p650 = pneg %p142
        %p651 = pneg %p166
        %p652 = pneg %p163
        %p653 = pneg %p187
        %p654 = pneg %p184
        %p655 = pneg %p208
        %p656 = pneg %p205
        %p657 = pneg %p229
        %p658 = pneg %p226
        %p659 = pneg %p250
        %p660 = pneg %p247
        %p661 = pneg %p271
        %p662 = pneg %p268
        %p663 = pneg %p292
        %p664 = pneg %p289
        %p665 = pneg %p313
        %p666 = pneg %p310
        %p667 = pneg %p334
        %p668 = pneg %p331
        %p669 = pneg %p355
        %p670 = pneg %p352
        %p671 = pneg %p376
        %p672 = pneg %p373
        %p673 = pneg %p397
        %p674 = pneg %p394
        %p675 = pneg %p418
        %p676 = pneg %p415
        %p677 = pneg %p444
        %p678 = pneg %p441
        %s679 = sand.u32 %s431, 1
        %s680 = scalar_lea.sflag [#allocation5], %s679
        %s681 = sand.u32 %s431, 1
        %s682 = smul.addr %s681, 2
        %s683 = scalar_lea.vmem [#allocation15], %s682
        %s684 = smul.u32 2, %s40
        %v686 = vld [vmem:[%s607] sm:$0xf]
        %v687 = vld [vmem:[%s607 + $0x4] sm:$0xf]
        %v688 = vld [vmem:[%s607 + $0x8] sm:$0xf]
        %v689 = vld [vmem:[%s607 + $0xc] sm:$0xf]
        %v690 = vld [vmem:[#allocation6] sm:$0xff]
        %v691 = vld [vmem:[#allocation6 + $0x8] sm:$0xf]
        %v692 = vld [vmem:[#allocation6 + $0xc] sm:$0xff]
        %v693 = vld [vmem:[#allocation6 + $0x14] sm:$0xf]
        %v694 = vld [vmem:[#allocation6 + $0x18] sm:$0xff]
        %v695 = vld [vmem:[#allocation6 + $0x20] sm:$0xf]
        %v696 = vld [vmem:[#allocation6 + $0x24] sm:$0xff]
        %v697 = vld [vmem:[#allocation6 + $0x2c] sm:$0xf]
        %v698 = vld [vmem:[#allocation6 + $0x30] sm:$0xff]
        %v699 = vld [vmem:[#allocation6 + $0x38] sm:$0xf]
        %v700 = vld [vmem:[#allocation6 + $0x3c] sm:$0xff]
        %v701 = vld [vmem:[#allocation6 + $0x44] sm:$0xf]
        %v702 = vld [vmem:[#allocation6 + $0x48] sm:$0xff]
        %v703 = vld [vmem:[#allocation6 + $0x50] sm:$0xf]
        %v704 = vld [vmem:[#allocation6 + $0x54] sm:$0xff]
        %v705 = vld [vmem:[#allocation6 + $0x5c] sm:$0xf]
        %v706 = vld [vmem:[#allocation6 + $0x60] sm:$0xff]
        %v707 = vld [vmem:[#allocation6 + $0x68] sm:$0xf]
        %v708 = vld [vmem:[#allocation6 + $0x6c] sm:$0xff]
        %v709 = vld [vmem:[#allocation6 + $0x74] sm:$0xf]
        %v710 = vld [vmem:[#allocation6 + $0x78] sm:$0xff]
        %v711 = vld [vmem:[#allocation6 + $0x80] sm:$0xf]
        %v712 = vld [vmem:[#allocation6 + $0x84] sm:$0xff]
        %v713 = vld [vmem:[#allocation6 + $0x8c] sm:$0xf]
        %v714 = vld [vmem:[#allocation6 + $0x90] sm:$0xff]
        %v715 = vld [vmem:[#allocation6 + $0x98] sm:$0xf]
        %v716 = vld [vmem:[#allocation6 + $0x9c] sm:$0xff]
        %v717 = vld [vmem:[#allocation6 + $0xa4] sm:$0xf]
        %v718 = vld [vmem:[#allocation6 + $0xa8] sm:$0xff]
        %v719 = vld [vmem:[#allocation6 + $0xb0] sm:$0xf]
        %v720 = vld [vmem:[#allocation6 + $0xb4] sm:$0xff]
        %v721 = vld [vmem:[#allocation6 + $0xbc] sm:$0xf]
        %v722 = vld [vmem:[%s2] sm:$0x7]
        %v724 = vlaneseq
        %v725 = vshrl.u32 %v724, 7
        %v726 = vsub.s32 0, %v725
        %v727 = vrot.slane %v722, %v726
        %v728 = vlaneseq
        %v729 = vshrl.u32 %v728, 7
        %v730 = vsub.s32 1, %v729
        %v731 = vrot.slane %v722, %v730
        %v732 = vlaneseq
        %v733 = vshrl.u32 %v732, 7
        %v734 = vsub.s32 2, %v733
        %v735 = vrot.slane %v722, %v734
        %v743 = vunpack.c.l.b16 %v686
        %v744 = vunpack.c.l.b16 %v687
        %v745 = vunpack.c.l.b16 %v688
        %v746 = vunpack.c.l.b16 %v689
        %v747 = vpack.c.b16 %v744, %v743
        %v748 = vpack.c.b16 %v746, %v745
        %v783 = vunpack.c.l.b16 %v690
        %v784 = vunpack.c.h.b16 %v690
        %v785 = vunpack.c.l.b16 %v691
        %v786 = vunpack.c.l.b16 %v692
        %v787 = vunpack.c.h.b16 %v692
        %v788 = vunpack.c.l.b16 %v693
        %v789 = vunpack.c.l.b16 %v694
        %v790 = vunpack.c.h.b16 %v694
        %v791 = vunpack.c.l.b16 %v695
        %v792 = vunpack.c.l.b16 %v696
        %v793 = vunpack.c.h.b16 %v696
        %v794 = vunpack.c.l.b16 %v697
        %v795 = vunpack.c.l.b16 %v698
        %v796 = vunpack.c.h.b16 %v698
        %v797 = vunpack.c.l.b16 %v699
        %v798 = vunpack.c.l.b16 %v700
        %v799 = vunpack.c.h.b16 %v700
        %v800 = vunpack.c.l.b16 %v701
        %v801 = vunpack.c.l.b16 %v702
        %v802 = vunpack.c.h.b16 %v702
        %v803 = vunpack.c.l.b16 %v703
        %v804 = vunpack.c.l.b16 %v704
        %v805 = vunpack.c.h.b16 %v704
        %v806 = vunpack.c.l.b16 %v705
        %v807 = vunpack.c.l.b16 %v706
        %v808 = vunpack.c.h.b16 %v706
        %v809 = vunpack.c.l.b16 %v707
        %v810 = vunpack.c.l.b16 %v708
        %v811 = vunpack.c.h.b16 %v708
        %v812 = vunpack.c.l.b16 %v709
        %v813 = vunpack.c.l.b16 %v710
        %v814 = vunpack.c.h.b16 %v710
        %v815 = vunpack.c.l.b16 %v711
        %v816 = vunpack.c.l.b16 %v712
        %v817 = vunpack.c.h.b16 %v712
        %v818 = vunpack.c.l.b16 %v713
        %v819 = vunpack.c.l.b16 %v714
        %v820 = vunpack.c.h.b16 %v714
        %v821 = vunpack.c.l.b16 %v715
        %v822 = vunpack.c.l.b16 %v716
        %v823 = vunpack.c.h.b16 %v716
        %v824 = vunpack.c.l.b16 %v717
        %v825 = vunpack.c.l.b16 %v718
        %v826 = vunpack.c.h.b16 %v718
        %v827 = vunpack.c.l.b16 %v719
        %v828 = vunpack.c.l.b16 %v720
        %v829 = vunpack.c.h.b16 %v720
        %v830 = vunpack.c.l.b16 %v721
        %v831 = vpack.c.b16 %v786, %v783
        %v832 = vpack.c.b16 %v787, %v784
        %v833 = vpack.c.b16 %v788, %v785
        %v834 = vpack.c.b16 %v792, %v789
        %v835 = vpack.c.b16 %v793, %v790
        %v836 = vpack.c.b16 %v794, %v791
        %v837 = vpack.c.b16 %v798, %v795
        %v838 = vpack.c.b16 %v799, %v796
        %v839 = vpack.c.b16 %v800, %v797
        %v840 = vpack.c.b16 %v804, %v801
        %v841 = vpack.c.b16 %v805, %v802
        %v842 = vpack.c.b16 %v806, %v803
        %v843 = vpack.c.b16 %v810, %v807
        %v844 = vpack.c.b16 %v811, %v808
        %v845 = vpack.c.b16 %v812, %v809
        %v846 = vpack.c.b16 %v816, %v813
        %v847 = vpack.c.b16 %v817, %v814
        %v848 = vpack.c.b16 %v818, %v815
        %v849 = vpack.c.b16 %v822, %v819
        %v850 = vpack.c.b16 %v823, %v820
        %v851 = vpack.c.b16 %v824, %v821
        %v852 = vpack.c.b16 %v828, %v825
        %v853 = vpack.c.b16 %v829, %v826
        %v854 = vpack.c.b16 %v830, %v827
        %879 = vmatprep.subr.bf16.mxu0 %v832
        %880 = vmatpush1.bf16.msra.mxu0 %v831
        %881 = vmatprep.subr.bf16.mxu0 %v835
        %882 = vmatpush1.bf16.msra.mxu0 %v834
        %883 = vmatprep.subr.bf16.mxu0 %v838
        %884 = vmatpush1.bf16.msra.mxu0 %v837
        %885 = vmatprep.subr.bf16.mxu0 %v841
        %886 = vmatpush1.bf16.msra.mxu0 %v840
        %887 = vmatprep.subr.bf16.mxu0 %v844
        %888 = vmatpush1.bf16.msra.mxu0 %v843
        %889 = vmatprep.subr.bf16.mxu0 %v847
        %890 = vmatpush1.bf16.msra.mxu0 %v846
        %891 = vmatprep.subr.bf16.mxu0 %v850
        %892 = vmatpush1.bf16.msra.mxu0 %v849
        %893 = vmatprep.subr.bf16.mxu0 %v853
        %894 = vmatpush1.bf16.msra.mxu0 %v852
        %895 = vmatprep.subr.bf16.mxu0 0
        %896 = vmatpush1.bf16.msra.mxu0 0
        %897 = vmatprep.subr.bf16.mxu0 0
        %898 = vmatpush1.bf16.msra.mxu0 0
        %899 = vmatprep.subr.bf16.mxu0 0
        %900 = vmatpush1.bf16.msra.mxu0 0
        %901 = vmatprep.subr.bf16.mxu0 0
        %902 = vmatpush1.bf16.msra.mxu0 0
        %903 = vmatprep.subr.bf16.mxu0 0
        %904 = vmatpush1.bf16.msra.mxu0 0
        %905 = vmatprep.subr.bf16.mxu0 0
        %906 = vmatpush1.bf16.msra.mxu0 0
        %907 = vmatprep.subr.bf16.mxu0 0
        %908 = vmatpush1.bf16.msra.mxu0 0
        %909 = vmatprep.subr.bf16.mxu0 0
        %910 = vmatpush1.bf16.msra.mxu0 0
        %911 = vmatprep.mubr.bf16.mxu0 0
        %912 = vmatmul.mubr.bf16.gmra.mrb[0].mxu0 %v747
        %v913 = vpop.f32.mrb[0].mxu0
        %v914 = vadd.f32 %v727, %v913
        %v915 = vpop.f32.mrb[0].mxu0
        %v916 = vadd.f32 %v731, %v915
        %v917 = vpop.f32.mrb[0].mxu0
        %v918 = vadd.f32 %v727, %v917
        %v919 = vpop.f32.mrb[0].mxu0
        %v920 = vadd.f32 %v731, %v919
        %921 = vmatprep.mubr.bf16.mxu0 0
        %922 = vmatmul.mubr.bf16.gmra.mrb[0].mxu0 %v748
        %v923 = vpop.f32.mrb[0].mxu0
        %v924 = vadd.f32 %v727, %v923
        %v925 = vpop.f32.mrb[0].mxu0
        %v926 = vadd.f32 %v731, %v925
        %v927 = vpop.f32.mrb[0].mxu0
        %v928 = vadd.f32 %v727, %v927
        %v929 = vpop.f32.mrb[0].mxu0
        %v930 = vadd.f32 %v731, %v929
        %931 = vdwg.mxu0
        %932 = vmatprep.subr.bf16.mxu0 0
        %933 = vmatpush1.bf16.msra.mxu0 %v833
        %934 = vmatprep.subr.bf16.mxu0 0
        %935 = vmatpush1.bf16.msra.mxu0 %v836
        %936 = vmatprep.subr.bf16.mxu0 0
        %937 = vmatpush1.bf16.msra.mxu0 %v839
        %938 = vmatprep.subr.bf16.mxu0 0
        %939 = vmatpush1.bf16.msra.mxu0 %v842
        %940 = vmatprep.subr.bf16.mxu0 0
        %941 = vmatpush1.bf16.msra.mxu0 %v845
        %942 = vmatprep.subr.bf16.mxu0 0
        %943 = vmatpush1.bf16.msra.mxu0 %v848
        %944 = vmatprep.subr.bf16.mxu0 0
        %945 = vmatpush1.bf16.msra.mxu0 %v851
        %946 = vmatprep.subr.bf16.mxu0 0
        %947 = vmatpush1.bf16.msra.mxu0 %v854
        %948 = vmatprep.subr.bf16.mxu0 0
        %949 = vmatpush1.bf16.msra.mxu0 0
        %950 = vmatprep.subr.bf16.mxu0 0
        %951 = vmatpush1.bf16.msra.mxu0 0
        %952 = vmatprep.subr.bf16.mxu0 0
        %953 = vmatpush1.bf16.msra.mxu0 0
        %954 = vmatprep.subr.bf16.mxu0 0
        %955 = vmatpush1.bf16.msra.mxu0 0
        %956 = vmatprep.subr.bf16.mxu0 0
        %957 = vmatpush1.bf16.msra.mxu0 0
        %958 = vmatprep.subr.bf16.mxu0 0
        %959 = vmatpush1.bf16.msra.mxu0 0
        %960 = vmatprep.subr.bf16.mxu0 0
        %961 = vmatpush1.bf16.msra.mxu0 0
        %962 = vmatprep.subr.bf16.mxu0 0
        %963 = vmatpush1.bf16.msra.mxu0 0
        %964 = vmatprep.mubr.bf16.mxu0 0
        %965 = vmatmul.mubr.bf16.gmra.mrb[0].mxu0 %v747
        %v966 = vpop.f32.mrb[0].mxu0
        %v967 = vadd.f32 %v735, %v966
        %v968 = vpop.f32.mrb[0].mxu0
        %v969 = vpop.f32.mrb[0].mxu0
        %v970 = vadd.f32 %v735, %v969
        %v971 = vpop.f32.mrb[0].mxu0
        %972 = vmatprep.mubr.bf16.mxu0 0
        %973 = vmatmul.mubr.bf16.gmra.mrb[0].mxu0 %v748
        %v974 = vpop.f32.mrb[0].mxu0
        %v975 = vadd.f32 %v735, %v974
        %v976 = vpop.f32.mrb[0].mxu0
        %v977 = vpop.f32.mrb[0].mxu0
        %v978 = vadd.f32 %v735, %v977
        %v979 = vpop.f32.mrb[0].mxu0
        %980 = vdwg.mxu0
        %v981 = vmul.f32 %v914, 0.25
        %v982 = vmul.f32 %v918, 0.25
        %v983 = vmul.f32 %v924, 0.25
        %v984 = vmul.f32 %v928, 0.25
        %v985 = vpack.c.bf16 %v982, %v981
        %v986 = vpack.c.bf16 %v984, %v983
        %v987 = vpack.c.bf16 %v920, %v916
        %v988 = vpack.c.bf16 %v930, %v926
        %v991 = vcombine.high %v985, %v985
        %v993 = vunpack.c.l.s4 1966171168
        %v994 = vunpack.c.0.s8 %v993
        %v995 = vlaneseq
        %v996 = vshrl.u32 %v995, 7
        %v997 = vsub.s32 %v994, %v996
        %v998 = vrot.slane %v985, %v997
        %v1000 = vunpack.c.l.s4 1966171168
        %v1001 = vunpack.c.0.s8 %v1000
        %v1002 = vlaneseq
        %v1003 = vshrl.u32 %v1002, 7
        %v1004 = vsub.s32 %v1001, %v1003
        %v1005 = vrot.slane %v991, %v1004
        %v1006 = vcombine.high %v998, %v998
        %v1007 = vcombine.high %v1005, %v1005
        %v1009 = vunpack.c.l.s4 1966171168
        %v1010 = vunpack.c.0.s8 %v1009
        %v1011 = vlaneseq
        %v1012 = vshrl.u32 %v1011, 7
        %v1013 = vsub.s32 %v1010, %v1012
        %v1014 = vrot.slane %v998, %v1013
        %v1016 = vunpack.c.l.s4 1966171168
        %v1017 = vunpack.c.0.s8 %v1016
        %v1018 = vlaneseq
        %v1019 = vshrl.u32 %v1018, 7
        %v1020 = vsub.s32 %v1017, %v1019
        %v1021 = vrot.slane %v1005, %v1020
        %v1023 = vunpack.c.l.s4 1966171168
        %v1024 = vunpack.c.0.s8 %v1023
        %v1025 = vlaneseq
        %v1026 = vshrl.u32 %v1025, 7
        %v1027 = vsub.s32 %v1024, %v1026
        %v1028 = vrot.slane %v1006, %v1027
        %v1030 = vunpack.c.l.s4 1966171168
        %v1031 = vunpack.c.0.s8 %v1030
        %v1032 = vlaneseq
        %v1033 = vshrl.u32 %v1032, 7
        %v1034 = vsub.s32 %v1031, %v1033
        %v1035 = vrot.slane %v1007, %v1034
        %v1036 = vcombine.high %v1014, %v1014
        %v1037 = vcombine.high %v1021, %v1021
        %v1038 = vcombine.high %v1028, %v1028
        %v1039 = vcombine.high %v1035, %v1035
        %v1040 = vcombine.high %v986, %v986
        %v1042 = vunpack.c.l.s4 1966171168
        %v1043 = vunpack.c.0.s8 %v1042
        %v1044 = vlaneseq
        %v1045 = vshrl.u32 %v1044, 7
        %v1046 = vsub.s32 %v1043, %v1045
        %v1047 = vrot.slane %v986, %v1046
        %v1049 = vunpack.c.l.s4 1966171168
        %v1050 = vunpack.c.0.s8 %v1049
        %v1051 = vlaneseq
        %v1052 = vshrl.u32 %v1051, 7
        %v1053 = vsub.s32 %v1050, %v1052
        %v1054 = vrot.slane %v1040, %v1053
        %v1055 = vcombine.high %v1047, %v1047
        %v1056 = vcombine.high %v1054, %v1054
        %v1058 = vunpack.c.l.s4 1966171168
        %v1059 = vunpack.c.0.s8 %v1058
        %v1060 = vlaneseq
        %v1061 = vshrl.u32 %v1060, 7
        %v1062 = vsub.s32 %v1059, %v1061
        %v1063 = vrot.slane %v1047, %v1062
        %v1065 = vunpack.c.l.s4 1966171168
        %v1066 = vunpack.c.0.s8 %v1065
        %v1067 = vlaneseq
        %v1068 = vshrl.u32 %v1067, 7
        %v1069 = vsub.s32 %v1066, %v1068
        %v1070 = vrot.slane %v1054, %v1069
        %v1072 = vunpack.c.l.s4 1966171168
        %v1073 = vunpack.c.0.s8 %v1072
        %v1074 = vlaneseq
        %v1075 = vshrl.u32 %v1074, 7
        %v1076 = vsub.s32 %v1073, %v1075
        %v1077 = vrot.slane %v1055, %v1076
        %v1079 = vunpack.c.l.s4 1966171168
        %v1080 = vunpack.c.0.s8 %v1079
        %v1081 = vlaneseq
        %v1082 = vshrl.u32 %v1081, 7
        %v1083 = vsub.s32 %v1080, %v1082
        %v1084 = vrot.slane %v1056, %v1083
        %v1085 = vcombine.high %v1063, %v1063
        %v1086 = vcombine.high %v1070, %v1070
        %v1087 = vcombine.high %v1077, %v1077
        %v1088 = vcombine.high %v1084, %v1084
        %v1089 = vunpack.i.l.s16 %v1014
        %v1090 = vunpack.i.h.s16 %v1014
        %v1091 = vunpack.i.l.s16 %v1028
        %v1092 = vunpack.i.h.s16 %v1028
        %v1093 = vunpack.i.l.s16 %v1036
        %v1094 = vunpack.i.h.s16 %v1036
        %v1095 = vunpack.i.l.s16 %v1038
        %v1096 = vunpack.i.h.s16 %v1038
        %v1097 = vunpack.i.l.s16 %v1021
        %v1098 = vunpack.i.h.s16 %v1021
        %v1099 = vunpack.i.l.s16 %v1035
        %v1100 = vunpack.i.h.s16 %v1035
        %v1101 = vunpack.i.l.s16 %v1037
        %v1102 = vunpack.i.h.s16 %v1037
        %v1103 = vunpack.i.l.s16 %v1039
        %v1104 = vunpack.i.h.s16 %v1039
        %v1105 = vunpack.i.l.s16 %v1063
        %v1106 = vunpack.i.h.s16 %v1063
        %v1107 = vunpack.i.l.s16 %v1077
        %v1108 = vunpack.i.h.s16 %v1077
        %v1109 = vunpack.i.l.s16 %v1085
        %v1110 = vunpack.i.h.s16 %v1085
        %v1111 = vunpack.i.l.s16 %v1087
        %v1112 = vunpack.i.h.s16 %v1087
        %v1113 = vunpack.i.l.s16 %v1070
        %v1114 = vunpack.i.h.s16 %v1070
        %v1115 = vunpack.i.l.s16 %v1084
        %v1116 = vunpack.i.h.s16 %v1084
        %v1117 = vunpack.i.l.s16 %v1086
        %v1118 = vunpack.i.h.s16 %v1086
        %v1119 = vunpack.i.l.s16 %v1088
        %v1120 = vunpack.i.h.s16 %v1088
        %v1121 = vpack.i.b16 %v1089, %v1089
        %v1122 = vpack.i.b16 %v1090, %v1090
        %v1123 = vpack.i.b16 %v1091, %v1091
        %v1124 = vpack.i.b16 %v1092, %v1092
        %v1125 = vpack.i.b16 %v1093, %v1093
        %v1126 = vpack.i.b16 %v1094, %v1094
        %v1127 = vpack.i.b16 %v1095, %v1095
        %v1128 = vpack.i.b16 %v1096, %v1096
        %v1129 = vpack.i.b16 %v1097, %v1097
        %v1130 = vpack.i.b16 %v1098, %v1098
        %v1131 = vpack.i.b16 %v1099, %v1099
        %v1132 = vpack.i.b16 %v1100, %v1100
        %v1133 = vpack.i.b16 %v1101, %v1101
        %v1134 = vpack.i.b16 %v1102, %v1102
        %v1135 = vpack.i.b16 %v1103, %v1103
        %v1136 = vpack.i.b16 %v1104, %v1104
        %v1137 = vpack.i.b16 %v1105, %v1105
        %v1138 = vpack.i.b16 %v1106, %v1106
        %v1139 = vpack.i.b16 %v1107, %v1107
        %v1140 = vpack.i.b16 %v1108, %v1108
        %v1141 = vpack.i.b16 %v1109, %v1109
        %v1142 = vpack.i.b16 %v1110, %v1110
        %v1143 = vpack.i.b16 %v1111, %v1111
        %v1144 = vpack.i.b16 %v1112, %v1112
        %v1145 = vpack.i.b16 %v1113, %v1113
        %v1146 = vpack.i.b16 %v1114, %v1114
        %v1147 = vpack.i.b16 %v1115, %v1115
        %v1148 = vpack.i.b16 %v1116, %v1116
        %v1149 = vpack.i.b16 %v1117, %v1117
        %v1150 = vpack.i.b16 %v1118, %v1118
        %v1151 = vpack.i.b16 %v1119, %v1119
        %v1152 = vpack.i.b16 %v1120, %v1120
        %v1153 = vlaneseq
        %v1154 = vshrl.u32 %v1153, 7
        %v1155 = vsub.s32 0, %v1154
        %v1156 = vrot.slane %v1121, %v1155
        %v1157 = vlaneseq
        %v1158 = vshrl.u32 %v1157, 7
        %v1159 = vsub.s32 0, %v1158
        %v1160 = vrot.slane %v1122, %v1159
        %v1161 = vlaneseq
        %v1162 = vshrl.u32 %v1161, 7
        %v1163 = vsub.s32 0, %v1162
        %v1164 = vrot.slane %v1123, %v1163
        %v1165 = vlaneseq
        %v1166 = vshrl.u32 %v1165, 7
        %v1167 = vsub.s32 0, %v1166
        %v1168 = vrot.slane %v1124, %v1167
        %v1169 = vlaneseq
        %v1170 = vshrl.u32 %v1169, 7
        %v1171 = vsub.s32 0, %v1170
        %v1172 = vrot.slane %v1125, %v1171
        %v1173 = vlaneseq
        %v1174 = vshrl.u32 %v1173, 7
        %v1175 = vsub.s32 0, %v1174
        %v1176 = vrot.slane %v1126, %v1175
        %v1177 = vlaneseq
        %v1178 = vshrl.u32 %v1177, 7
        %v1179 = vsub.s32 0, %v1178
        %v1180 = vrot.slane %v1127, %v1179
        %v1181 = vlaneseq
        %v1182 = vshrl.u32 %v1181, 7
        %v1183 = vsub.s32 0, %v1182
        %v1184 = vrot.slane %v1128, %v1183
        %v1185 = vlaneseq
        %v1186 = vshrl.u32 %v1185, 7
        %v1187 = vsub.s32 0, %v1186
        %v1188 = vrot.slane %v1129, %v1187
        %v1189 = vlaneseq
        %v1190 = vshrl.u32 %v1189, 7
        %v1191 = vsub.s32 0, %v1190
        %v1192 = vrot.slane %v1130, %v1191
        %v1193 = vlaneseq
        %v1194 = vshrl.u32 %v1193, 7
        %v1195 = vsub.s32 0, %v1194
        %v1196 = vrot.slane %v1131, %v1195
        %v1197 = vlaneseq
        %v1198 = vshrl.u32 %v1197, 7
        %v1199 = vsub.s32 0, %v1198
        %v1200 = vrot.slane %v1132, %v1199
        %v1201 = vlaneseq
        %v1202 = vshrl.u32 %v1201, 7
        %v1203 = vsub.s32 0, %v1202
        %v1204 = vrot.slane %v1133, %v1203
        %v1205 = vlaneseq
        %v1206 = vshrl.u32 %v1205, 7
        %v1207 = vsub.s32 0, %v1206
        %v1208 = vrot.slane %v1134, %v1207
        %v1209 = vlaneseq
        %v1210 = vshrl.u32 %v1209, 7
        %v1211 = vsub.s32 0, %v1210
        %v1212 = vrot.slane %v1135, %v1211
        %v1213 = vlaneseq
        %v1214 = vshrl.u32 %v1213, 7
        %v1215 = vsub.s32 0, %v1214
        %v1216 = vrot.slane %v1136, %v1215
        %v1217 = vlaneseq
        %v1218 = vshrl.u32 %v1217, 7
        %v1219 = vsub.s32 0, %v1218
        %v1220 = vrot.slane %v1137, %v1219
        %v1221 = vlaneseq
        %v1222 = vshrl.u32 %v1221, 7
        %v1223 = vsub.s32 0, %v1222
        %v1224 = vrot.slane %v1138, %v1223
        %v1225 = vlaneseq
        %v1226 = vshrl.u32 %v1225, 7
        %v1227 = vsub.s32 0, %v1226
        %v1228 = vrot.slane %v1139, %v1227
        %v1229 = vlaneseq
        %v1230 = vshrl.u32 %v1229, 7
        %v1231 = vsub.s32 0, %v1230
        %v1232 = vrot.slane %v1140, %v1231
        %v1233 = vlaneseq
        %v1234 = vshrl.u32 %v1233, 7
        %v1235 = vsub.s32 0, %v1234
        %v1236 = vrot.slane %v1141, %v1235
        %v1237 = vlaneseq
        %v1238 = vshrl.u32 %v1237, 7
        %v1239 = vsub.s32 0, %v1238
        %v1240 = vrot.slane %v1142, %v1239
        %v1241 = vlaneseq
        %v1242 = vshrl.u32 %v1241, 7
        %v1243 = vsub.s32 0, %v1242
        %v1244 = vrot.slane %v1143, %v1243
        %v1245 = vlaneseq
        %v1246 = vshrl.u32 %v1245, 7
        %v1247 = vsub.s32 0, %v1246
        %v1248 = vrot.slane %v1144, %v1247
        %v1249 = vlaneseq
        %v1250 = vshrl.u32 %v1249, 7
        %v1251 = vsub.s32 0, %v1250
        %v1252 = vrot.slane %v1145, %v1251
        %v1253 = vlaneseq
        %v1254 = vshrl.u32 %v1253, 7
        %v1255 = vsub.s32 0, %v1254
        %v1256 = vrot.slane %v1146, %v1255
        %v1257 = vlaneseq
        %v1258 = vshrl.u32 %v1257, 7
        %v1259 = vsub.s32 0, %v1258
        %v1260 = vrot.slane %v1147, %v1259
        %v1261 = vlaneseq
        %v1262 = vshrl.u32 %v1261, 7
        %v1263 = vsub.s32 0, %v1262
        %v1264 = vrot.slane %v1148, %v1263
        %v1265 = vlaneseq
        %v1266 = vshrl.u32 %v1265, 7
        %v1267 = vsub.s32 0, %v1266
        %v1268 = vrot.slane %v1149, %v1267
        %v1269 = vlaneseq
        %v1270 = vshrl.u32 %v1269, 7
        %v1271 = vsub.s32 0, %v1270
        %v1272 = vrot.slane %v1150, %v1271
        %v1273 = vlaneseq
        %v1274 = vshrl.u32 %v1273, 7
        %v1275 = vsub.s32 0, %v1274
        %v1276 = vrot.slane %v1151, %v1275
        %v1277 = vlaneseq
        %v1278 = vshrl.u32 %v1277, 7
        %v1279 = vsub.s32 0, %v1278
        %v1280 = vrot.slane %v1152, %v1279
        %v1282 = vpack.i.b16 %v1156, %v1156
        %v1284 = vlaneseq
        %v1285 = vshrl.u32 %v1284, 7
        %v1286 = vsub.s32 0, %v1285
        %v1287 = vrot.slane %v1282, %v1286
        %v1289 = vpack.i.b16 %v1160, %v1160
        %v1291 = vlaneseq
        %v1292 = vshrl.u32 %v1291, 7
        %v1293 = vsub.s32 0, %v1292
        %v1294 = vrot.slane %v1289, %v1293
        %v1296 = vpack.i.b16 %v1164, %v1164
        %v1298 = vlaneseq
        %v1299 = vshrl.u32 %v1298, 7
        %v1300 = vsub.s32 0, %v1299
        %v1301 = vrot.slane %v1296, %v1300
        %v1303 = vpack.i.b16 %v1168, %v1168
        %v1305 = vlaneseq
        %v1306 = vshrl.u32 %v1305, 7
        %v1307 = vsub.s32 0, %v1306
        %v1308 = vrot.slane %v1303, %v1307
        %v1310 = vpack.i.b16 %v1172, %v1172
        %v1312 = vlaneseq
        %v1313 = vshrl.u32 %v1312, 7
        %v1314 = vsub.s32 0, %v1313
        %v1315 = vrot.slane %v1310, %v1314
        %v1317 = vpack.i.b16 %v1176, %v1176
        %v1319 = vlaneseq
        %v1320 = vshrl.u32 %v1319, 7
        %v1321 = vsub.s32 0, %v1320
        %v1322 = vrot.slane %v1317, %v1321
        %v1324 = vpack.i.b16 %v1180, %v1180
        %v1326 = vlaneseq
        %v1327 = vshrl.u32 %v1326, 7
        %v1328 = vsub.s32 0, %v1327
        %v1329 = vrot.slane %v1324, %v1328
        %v1331 = vpack.i.b16 %v1184, %v1184
        %v1333 = vlaneseq
        %v1334 = vshrl.u32 %v1333, 7
        %v1335 = vsub.s32 0, %v1334
        %v1336 = vrot.slane %v1331, %v1335
        %v1338 = vpack.i.b16 %v1188, %v1188
        %v1340 = vlaneseq
        %v1341 = vshrl.u32 %v1340, 7
        %v1342 = vsub.s32 0, %v1341
        %v1343 = vrot.slane %v1338, %v1342
        %v1345 = vpack.i.b16 %v1192, %v1192
        %v1347 = vlaneseq
        %v1348 = vshrl.u32 %v1347, 7
        %v1349 = vsub.s32 0, %v1348
        %v1350 = vrot.slane %v1345, %v1349
        %v1352 = vpack.i.b16 %v1196, %v1196
        %v1354 = vlaneseq
        %v1355 = vshrl.u32 %v1354, 7
        %v1356 = vsub.s32 0, %v1355
        %v1357 = vrot.slane %v1352, %v1356
        %v1359 = vpack.i.b16 %v1200, %v1200
        %v1361 = vlaneseq
        %v1362 = vshrl.u32 %v1361, 7
        %v1363 = vsub.s32 0, %v1362
        %v1364 = vrot.slane %v1359, %v1363
        %v1366 = vpack.i.b16 %v1204, %v1204
        %v1368 = vlaneseq
        %v1369 = vshrl.u32 %v1368, 7
        %v1370 = vsub.s32 0, %v1369
        %v1371 = vrot.slane %v1366, %v1370
        %v1373 = vpack.i.b16 %v1208, %v1208
        %v1375 = vlaneseq
        %v1376 = vshrl.u32 %v1375, 7
        %v1377 = vsub.s32 0, %v1376
        %v1378 = vrot.slane %v1373, %v1377
        %v1380 = vpack.i.b16 %v1212, %v1212
        %v1382 = vlaneseq
        %v1383 = vshrl.u32 %v1382, 7
        %v1384 = vsub.s32 0, %v1383
        %v1385 = vrot.slane %v1380, %v1384
        %v1387 = vpack.i.b16 %v1216, %v1216
        %v1389 = vlaneseq
        %v1390 = vshrl.u32 %v1389, 7
        %v1391 = vsub.s32 0, %v1390
        %v1392 = vrot.slane %v1387, %v1391
        %v1394 = vpack.i.b16 %v1220, %v1220
        %v1396 = vlaneseq
        %v1397 = vshrl.u32 %v1396, 7
        %v1398 = vsub.s32 0, %v1397
        %v1399 = vrot.slane %v1394, %v1398
        %v1401 = vpack.i.b16 %v1224, %v1224
        %v1403 = vlaneseq
        %v1404 = vshrl.u32 %v1403, 7
        %v1405 = vsub.s32 0, %v1404
        %v1406 = vrot.slane %v1401, %v1405
        %v1408 = vpack.i.b16 %v1228, %v1228
        %v1410 = vlaneseq
        %v1411 = vshrl.u32 %v1410, 7
        %v1412 = vsub.s32 0, %v1411
        %v1413 = vrot.slane %v1408, %v1412
        %v1415 = vpack.i.b16 %v1232, %v1232
        %v1417 = vlaneseq
        %v1418 = vshrl.u32 %v1417, 7
        %v1419 = vsub.s32 0, %v1418
        %v1420 = vrot.slane %v1415, %v1419
        %v1422 = vpack.i.b16 %v1236, %v1236
        %v1424 = vlaneseq
        %v1425 = vshrl.u32 %v1424, 7
        %v1426 = vsub.s32 0, %v1425
        %v1427 = vrot.slane %v1422, %v1426
        %v1429 = vpack.i.b16 %v1240, %v1240
        %v1431 = vlaneseq
        %v1432 = vshrl.u32 %v1431, 7
        %v1433 = vsub.s32 0, %v1432
        %v1434 = vrot.slane %v1429, %v1433
        %v1436 = vpack.i.b16 %v1244, %v1244
        %v1438 = vlaneseq
        %v1439 = vshrl.u32 %v1438, 7
        %v1440 = vsub.s32 0, %v1439
        %v1441 = vrot.slane %v1436, %v1440
        %v1443 = vpack.i.b16 %v1248, %v1248
        %v1445 = vlaneseq
        %v1446 = vshrl.u32 %v1445, 7
        %v1447 = vsub.s32 0, %v1446
        %v1448 = vrot.slane %v1443, %v1447
        %v1450 = vpack.i.b16 %v1252, %v1252
        %v1452 = vlaneseq
        %v1453 = vshrl.u32 %v1452, 7
        %v1454 = vsub.s32 0, %v1453
        %v1455 = vrot.slane %v1450, %v1454
        %v1457 = vpack.i.b16 %v1256, %v1256
        %v1459 = vlaneseq
        %v1460 = vshrl.u32 %v1459, 7
        %v1461 = vsub.s32 0, %v1460
        %v1462 = vrot.slane %v1457, %v1461
        %v1464 = vpack.i.b16 %v1260, %v1260
        %v1466 = vlaneseq
        %v1467 = vshrl.u32 %v1466, 7
        %v1468 = vsub.s32 0, %v1467
        %v1469 = vrot.slane %v1464, %v1468
        %v1471 = vpack.i.b16 %v1264, %v1264
        %v1473 = vlaneseq
        %v1474 = vshrl.u32 %v1473, 7
        %v1475 = vsub.s32 0, %v1474
        %v1476 = vrot.slane %v1471, %v1475
        %v1478 = vpack.i.b16 %v1268, %v1268
        %v1480 = vlaneseq
        %v1481 = vshrl.u32 %v1480, 7
        %v1482 = vsub.s32 0, %v1481
        %v1483 = vrot.slane %v1478, %v1482
        %v1485 = vpack.i.b16 %v1272, %v1272
        %v1487 = vlaneseq
        %v1488 = vshrl.u32 %v1487, 7
        %v1489 = vsub.s32 0, %v1488
        %v1490 = vrot.slane %v1485, %v1489
        %v1492 = vpack.i.b16 %v1276, %v1276
        %v1494 = vlaneseq
        %v1495 = vshrl.u32 %v1494, 7
        %v1496 = vsub.s32 0, %v1495
        %v1497 = vrot.slane %v1492, %v1496
        %v1499 = vpack.i.b16 %v1280, %v1280
        %v1501 = vlaneseq
        %v1502 = vshrl.u32 %v1501, 7
        %v1503 = vsub.s32 0, %v1502
        %v1504 = vrot.slane %v1499, %v1503
        %v1505 = vmul.bf16 %v1287, %v987
        %v1506 = vmul.bf16 %v1294, %v987
        %v1507 = vmul.bf16 %v1301, %v987
        %v1508 = vmul.bf16 %v1308, %v987
        %v1509 = vmul.bf16 %v1315, %v987
        %v1510 = vmul.bf16 %v1322, %v987
        %v1511 = vmul.bf16 %v1329, %v987
        %v1512 = vmul.bf16 %v1336, %v987
        %v1513 = vmul.bf16 %v1343, %v987
        %v1514 = vmul.bf16 %v1350, %v987
        %v1515 = vmul.bf16 %v1357, %v987
        %v1516 = vmul.bf16 %v1364, %v987
        %v1517 = vmul.bf16 %v1371, %v987
        %v1518 = vmul.bf16 %v1378, %v987
        %v1519 = vmul.bf16 %v1385, %v987
        %v1520 = vmul.bf16 %v1392, %v987
        %v1521 = vmul.bf16 %v1399, %v988
        %v1522 = vmul.bf16 %v1406, %v988
        %v1523 = vmul.bf16 %v1413, %v988
        %v1524 = vmul.bf16 %v1420, %v988
        %v1525 = vmul.bf16 %v1427, %v988
        %v1526 = vmul.bf16 %v1434, %v988
        %v1527 = vmul.bf16 %v1441, %v988
        %v1528 = vmul.bf16 %v1448, %v988
        %v1529 = vmul.bf16 %v1455, %v988
        %v1530 = vmul.bf16 %v1462, %v988
        %v1531 = vmul.bf16 %v1469, %v988
        %v1532 = vmul.bf16 %v1476, %v988
        %v1533 = vmul.bf16 %v1483, %v988
        %v1534 = vmul.bf16 %v1490, %v988
        %v1535 = vmul.bf16 %v1497, %v988
        %v1536 = vmul.bf16 %v1504, %v988
        %v1537 = vld [vmem:[%s11] sm:$0xf]
        %v1538 = vld [vmem:[%s11 + $0x4] sm:$0xf]
        %v1539 = vld [vmem:[%s11 + $0x8] sm:$0xf]
        %v1540 = vld [vmem:[%s11 + $0xc] sm:$0xf]
        %v1541 = vld [vmem:[%s11 + $0x10] sm:$0xf]
        %v1542 = vld [vmem:[%s11 + $0x14] sm:$0xf]
        %v1543 = vld [vmem:[%s11 + $0x18] sm:$0xf]
        %v1544 = vld [vmem:[%s11 + $0x1c] sm:$0xf]
        %v1545 = vld [vmem:[%s11 + $0x20] sm:$0xf]
        %v1546 = vld [vmem:[%s11 + $0x24] sm:$0xf]
        %v1547 = vld [vmem:[%s11 + $0x28] sm:$0xf]
        %v1548 = vld [vmem:[%s11 + $0x2c] sm:$0xf]
        %v1549 = vld [vmem:[%s11 + $0x30] sm:$0xf]
        %v1550 = vld [vmem:[%s11 + $0x34] sm:$0xf]
        %v1551 = vld [vmem:[%s11 + $0x38] sm:$0xf]
        %v1552 = vld [vmem:[%s11 + $0x3c] sm:$0xf]
        %v1569 = vunpack.c.l.b16 %v1537
        %v1570 = vunpack.c.l.b16 %v1538
        %v1571 = vunpack.c.l.b16 %v1539
        %v1572 = vunpack.c.l.b16 %v1540
        %v1573 = vunpack.c.l.b16 %v1541
        %v1574 = vunpack.c.l.b16 %v1542
        %v1575 = vunpack.c.l.b16 %v1543
        %v1576 = vunpack.c.l.b16 %v1544
        %v1577 = vunpack.c.l.b16 %v1545
        %v1578 = vunpack.c.l.b16 %v1546
        %v1579 = vunpack.c.l.b16 %v1547
        %v1580 = vunpack.c.l.b16 %v1548
        %v1581 = vunpack.c.l.b16 %v1549
        %v1582 = vunpack.c.l.b16 %v1550
        %v1583 = vunpack.c.l.b16 %v1551
        %v1584 = vunpack.c.l.b16 %v1552
        %v1585 = vpack.c.b16 %v1570, %v1569
        %v1586 = vpack.c.b16 %v1572, %v1571
        %v1587 = vpack.c.b16 %v1574, %v1573
        %v1588 = vpack.c.b16 %v1576, %v1575
        %v1589 = vpack.c.b16 %v1578, %v1577
        %v1590 = vpack.c.b16 %v1580, %v1579
        %v1591 = vpack.c.b16 %v1582, %v1581
        %v1592 = vpack.c.b16 %v1584, %v1583
        %1601 = vmatprep.subr.bf16.mxu0 0
        %1602 = vmatpush1.bf16.msra.mxu0 %v1585
        %1603 = vmatprep.subr.bf16.mxu0 0
        %1604 = vmatpush1.bf16.msra.mxu0 %v1586
        %1605 = vmatprep.subr.bf16.mxu0 0
        %1606 = vmatpush1.bf16.msra.mxu0 %v1587
        %1607 = vmatprep.subr.bf16.mxu0 0
        %1608 = vmatpush1.bf16.msra.mxu0 %v1588
        %1609 = vmatprep.subr.bf16.mxu0 0
        %1610 = vmatpush1.bf16.msra.mxu0 %v1589
        %1611 = vmatprep.subr.bf16.mxu0 0
        %1612 = vmatpush1.bf16.msra.mxu0 %v1590
        %1613 = vmatprep.subr.bf16.mxu0 0
        %1614 = vmatpush1.bf16.msra.mxu0 %v1591
        %1615 = vmatprep.subr.bf16.mxu0 0
        %1616 = vmatpush1.bf16.msra.mxu0 %v1592
        %1617 = vmatprep.subr.bf16.mxu0 0
        %1618 = vmatpush1.bf16.msra.mxu0 0
        %1619 = vmatprep.subr.bf16.mxu0 0
        %1620 = vmatpush1.bf16.msra.mxu0 0
        %1621 = vmatprep.subr.bf16.mxu0 0
        %1622 = vmatpush1.bf16.msra.mxu0 0
        %1623 = vmatprep.subr.bf16.mxu0 0
        %1624 = vmatpush1.bf16.msra.mxu0 0
        %1625 = vmatprep.subr.bf16.mxu0 0
        %1626 = vmatpush1.bf16.msra.mxu0 0
        %1627 = vmatprep.subr.bf16.mxu0 0
        %1628 = vmatpush1.bf16.msra.mxu0 0
        %1629 = vmatprep.subr.bf16.mxu0 0
        %1630 = vmatpush1.bf16.msra.mxu0 0
        %1631 = vmatprep.subr.bf16.mxu0 0
        %1632 = vmatpush1.bf16.msra.mxu0 0
        %1633 = vmatprep.mubr.bf16.mxu0 0
        %1634 = vmatmul.mubr.bf16.gmra.mrb[0].mxu0 %v1505
        %v1635 = vpop.f32.mrb[0].mxu0
        %v1636 = vadd.f32 0.0, %v1635
        %v1637 = vpop.f32.mrb[0].mxu0
        %v1638 = vpop.f32.mrb[0].mxu0
        %v1639 = vadd.f32 0.0, %v1638
        %v1640 = vpop.f32.mrb[0].mxu0
        %1641 = vmatprep.mubr.bf16.mxu0 0
        %1642 = vmatmul.mubr.bf16.gmra.mrb[0].mxu0 %v1506
        %v1643 = vpop.f32.mrb[0].mxu0
        %v1644 = vadd.f32 0.0, %v1643
        %v1645 = vpop.f32.mrb[0].mxu0
        %v1646 = vpop.f32.mrb[0].mxu0
        %v1647 = vadd.f32 0.0, %v1646
        %v1648 = vpop.f32.mrb[0].mxu0
        %1649 = vmatprep.mubr.bf16.mxu0 0
        %1650 = vmatmul.mubr.bf16.gmra.mrb[0].mxu0 %v1507
        %v1651 = vpop.f32.mrb[0].mxu0
        %v1652 = vadd.f32 0.0, %v1651
        %v1653 = vpop.f32.mrb[0].mxu0
        %v1654 = vpop.f32.mrb[0].mxu0
        %v1655 = vadd.f32 0.0, %v1654
        %v1656 = vpop.f32.mrb[0].mxu0
        %1657 = vmatprep.mubr.bf16.mxu0 0
        %1658 = vmatmul.mubr.bf16.gmra.mrb[0].mxu0 %v1508
        %v1659 = vpop.f32.mrb[0].mxu0
        %v1660 = vadd.f32 0.0, %v1659
        %v1661 = vpop.f32.mrb[0].mxu0
        %v1662 = vpop.f32.mrb[0].mxu0
        %v1663 = vadd.f32 0.0, %v1662
        %v1664 = vpop.f32.mrb[0].mxu0
        %1665 = vmatprep.mubr.bf16.mxu0 0
        %1666 = vmatmul.mubr.bf16.gmra.mrb[0].mxu0 %v1509
        %v1667 = vpop.f32.mrb[0].mxu0
        %v1668 = vadd.f32 0.0, %v1667
        %v1669 = vpop.f32.mrb[0].mxu0
        %v1670 = vpop.f32.mrb[0].mxu0
        %v1671 = vadd.f32 0.0, %v1670
        %v1672 = vpop.f32.mrb[0].mxu0
        %1673 = vmatprep.mubr.bf16.mxu0 0
        %1674 = vmatmul.mubr.bf16.gmra.mrb[0].mxu0 %v1510
        %v1675 = vpop.f32.mrb[0].mxu0
        %v1676 = vadd.f32 0.0, %v1675
        %v1677 = vpop.f32.mrb[0].mxu0
        %v1678 = vpop.f32.mrb[0].mxu0
        %v1679 = vadd.f32 0.0, %v1678
        %v1680 = vpop.f32.mrb[0].mxu0
        %1681 = vmatprep.mubr.bf16.mxu0 0
        %1682 = vmatmul.mubr.bf16.gmra.mrb[0].mxu0 %v1511
        %v1683 = vpop.f32.mrb[0].mxu0
        %v1684 = vadd.f32 0.0, %v1683
        %v1685 = vpop.f32.mrb[0].mxu0
        %v1686 = vpop.f32.mrb[0].mxu0
        %v1687 = vadd.f32 0.0, %v1686
        %v1688 = vpop.f32.mrb[0].mxu0
        %1689 = vmatprep.mubr.bf16.mxu0 0
        %1690 = vmatmul.mubr.bf16.gmra.mrb[0].mxu0 %v1512
        %v1691 = vpop.f32.mrb[0].mxu0
        %v1692 = vadd.f32 0.0, %v1691
        %v1693 = vpop.f32.mrb[0].mxu0
        %v1694 = vpop.f32.mrb[0].mxu0
        %v1695 = vadd.f32 0.0, %v1694
        %v1696 = vpop.f32.mrb[0].mxu0
        %1697 = vmatprep.mubr.bf16.mxu0 0
        %1698 = vmatmul.mubr.bf16.gmra.mrb[0].mxu0 %v1513
        %v1699 = vpop.f32.mrb[0].mxu0
        %v1700 = vadd.f32 0.0, %v1699
        %v1701 = vpop.f32.mrb[0].mxu0
        %v1702 = vpop.f32.mrb[0].mxu0
        %v1703 = vadd.f32 0.0, %v1702
        %v1704 = vpop.f32.mrb[0].mxu0
        %1705 = vmatprep.mubr.bf16.mxu0 0
        %1706 = vmatmul.mubr.bf16.gmra.mrb[0].mxu0 %v1514
        %v1707 = vpop.f32.mrb[0].mxu0
        %v1708 = vadd.f32 0.0, %v1707
        %v1709 = vpop.f32.mrb[0].mxu0
        %v1710 = vpop.f32.mrb[0].mxu0
        %v1711 = vadd.f32 0.0, %v1710
        %v1712 = vpop.f32.mrb[0].mxu0
        %1713 = vmatprep.mubr.bf16.mxu0 0
        %1714 = vmatmul.mubr.bf16.gmra.mrb[0].mxu0 %v1515
        %v1715 = vpop.f32.mrb[0].mxu0
        %v1716 = vadd.f32 0.0, %v1715
        %v1717 = vpop.f32.mrb[0].mxu0
        %v1718 = vpop.f32.mrb[0].mxu0
        %v1719 = vadd.f32 0.0, %v1718
        %v1720 = vpop.f32.mrb[0].mxu0
        %1721 = vmatprep.mubr.bf16.mxu0 0
        %1722 = vmatmul.mubr.bf16.gmra.mrb[0].mxu0 %v1516
        %v1723 = vpop.f32.mrb[0].mxu0
        %v1724 = vadd.f32 0.0, %v1723
        %v1725 = vpop.f32.mrb[0].mxu0
        %v1726 = vpop.f32.mrb[0].mxu0
        %v1727 = vadd.f32 0.0, %v1726
        %v1728 = vpop.f32.mrb[0].mxu0
        %1729 = vmatprep.mubr.bf16.mxu0 0
        %1730 = vmatmul.mubr.bf16.gmra.mrb[0].mxu0 %v1517
        %v1731 = vpop.f32.mrb[0].mxu0
        %v1732 = vadd.f32 0.0, %v1731
        %v1733 = vpop.f32.mrb[0].mxu0
        %v1734 = vpop.f32.mrb[0].mxu0
        %v1735 = vadd.f32 0.0, %v1734
        %v1736 = vpop.f32.mrb[0].mxu0
        %1737 = vmatprep.mubr.bf16.mxu0 0
        %1738 = vmatmul.mubr.bf16.gmra.mrb[0].mxu0 %v1518
        %v1739 = vpop.f32.mrb[0].mxu0
        %v1740 = vadd.f32 0.0, %v1739
        %v1741 = vpop.f32.mrb[0].mxu0
        %v1742 = vpop.f32.mrb[0].mxu0
        %v1743 = vadd.f32 0.0, %v1742
        %v1744 = vpop.f32.mrb[0].mxu0
        %1745 = vmatprep.mubr.bf16.mxu0 0
        %1746 = vmatmul.mubr.bf16.gmra.mrb[0].mxu0 %v1519
        %v1747 = vpop.f32.mrb[0].mxu0
        %v1748 = vadd.f32 0.0, %v1747
        %v1749 = vpop.f32.mrb[0].mxu0
        %v1750 = vpop.f32.mrb[0].mxu0
        %v1751 = vadd.f32 0.0, %v1750
        %v1752 = vpop.f32.mrb[0].mxu0
        %1753 = vmatprep.mubr.bf16.mxu0 0
        %1754 = vmatmul.mubr.bf16.gmra.mrb[0].mxu0 %v1520
        %v1755 = vpop.f32.mrb[0].mxu0
        %v1756 = vadd.f32 0.0, %v1755
        %v1757 = vpop.f32.mrb[0].mxu0
        %v1758 = vpop.f32.mrb[0].mxu0
        %v1759 = vadd.f32 0.0, %v1758
        %v1760 = vpop.f32.mrb[0].mxu0
        %1761 = vmatprep.mubr.bf16.mxu0 0
        %1762 = vmatmul.mubr.bf16.gmra.mrb[0].mxu0 %v1521
        %v1763 = vpop.f32.mrb[0].mxu0
        %v1764 = vadd.f32 0.0, %v1763
        %v1765 = vpop.f32.mrb[0].mxu0
        %v1766 = vpop.f32.mrb[0].mxu0
        %v1767 = vadd.f32 0.0, %v1766
        %v1768 = vpop.f32.mrb[0].mxu0
        %1769 = vmatprep.mubr.bf16.mxu0 0
        %1770 = vmatmul.mubr.bf16.gmra.mrb[0].mxu0 %v1522
        %v1771 = vpop.f32.mrb[0].mxu0
        %v1772 = vadd.f32 0.0, %v1771
        %v1773 = vpop.f32.mrb[0].mxu0
        %v1774 = vpop.f32.mrb[0].mxu0
        %v1775 = vadd.f32 0.0, %v1774
        %v1776 = vpop.f32.mrb[0].mxu0
        %1777 = vmatprep.mubr.bf16.mxu0 0
        %1778 = vmatmul.mubr.bf16.gmra.mrb[0].mxu0 %v1523
        %v1779 = vpop.f32.mrb[0].mxu0
        %v1780 = vadd.f32 0.0, %v1779
        %v1781 = vpop.f32.mrb[0].mxu0
        %v1782 = vpop.f32.mrb[0].mxu0
        %v1783 = vadd.f32 0.0, %v1782
        %v1784 = vpop.f32.mrb[0].mxu0
        %1785 = vmatprep.mubr.bf16.mxu0 0
        %1786 = vmatmul.mubr.bf16.gmra.mrb[0].mxu0 %v1524
        %v1787 = vpop.f32.mrb[0].mxu0
        %v1788 = vadd.f32 0.0, %v1787
        %v1789 = vpop.f32.mrb[0].mxu0
        %v1790 = vpop.f32.mrb[0].mxu0
        %v1791 = vadd.f32 0.0, %v1790
        %v1792 = vpop.f32.mrb[0].mxu0
        %1793 = vmatprep.mubr.bf16.mxu0 0
        %1794 = vmatmul.mubr.bf16.gmra.mrb[0].mxu0 %v1525
        %v1795 = vpop.f32.mrb[0].mxu0
        %v1796 = vadd.f32 0.0, %v1795
        %v1797 = vpop.f32.mrb[0].mxu0
        %v1798 = vpop.f32.mrb[0].mxu0
        %v1799 = vadd.f32 0.0, %v1798
        %v1800 = vpop.f32.mrb[0].mxu0
        %1801 = vmatprep.mubr.bf16.mxu0 0
        %1802 = vmatmul.mubr.bf16.gmra.mrb[0].mxu0 %v1526
        %v1803 = vpop.f32.mrb[0].mxu0
        %v1804 = vadd.f32 0.0, %v1803
        %v1805 = vpop.f32.mrb[0].mxu0
        %v1806 = vpop.f32.mrb[0].mxu0
        %v1807 = vadd.f32 0.0, %v1806
        %v1808 = vpop.f32.mrb[0].mxu0
        %1809 = vmatprep.mubr.bf16.mxu0 0
        %1810 = vmatmul.mubr.bf16.gmra.mrb[0].mxu0 %v1527
        %v1811 = vpop.f32.mrb[0].mxu0
        %v1812 = vadd.f32 0.0, %v1811
        %v1813 = vpop.f32.mrb[0].mxu0
        %v1814 = vpop.f32.mrb[0].mxu0
        %v1815 = vadd.f32 0.0, %v1814
        %v1816 = vpop.f32.mrb[0].mxu0
        %1817 = vmatprep.mubr.bf16.mxu0 0
        %1818 = vmatmul.mubr.bf16.gmra.mrb[0].mxu0 %v1528
        %v1819 = vpop.f32.mrb[0].mxu0
        %v1820 = vadd.f32 0.0, %v1819
        %v1821 = vpop.f32.mrb[0].mxu0
        %v1822 = vpop.f32.mrb[0].mxu0
        %v1823 = vadd.f32 0.0, %v1822
        %v1824 = vpop.f32.mrb[0].mxu0
        %1825 = vmatprep.mubr.bf16.mxu0 0
        %1826 = vmatmul.mubr.bf16.gmra.mrb[0].mxu0 %v1529
        %v1827 = vpop.f32.mrb[0].mxu0
        %v1828 = vadd.f32 0.0, %v1827
        %v1829 = vpop.f32.mrb[0].mxu0
        %v1830 = vpop.f32.mrb[0].mxu0
        %v1831 = vadd.f32 0.0, %v1830
        %v1832 = vpop.f32.mrb[0].mxu0
        %1833 = vmatprep.mubr.bf16.mxu0 0
        %1834 = vmatmul.mubr.bf16.gmra.mrb[0].mxu0 %v1530
        %v1835 = vpop.f32.mrb[0].mxu0
        %v1836 = vadd.f32 0.0, %v1835
        %v1837 = vpop.f32.mrb[0].mxu0
        %v1838 = vpop.f32.mrb[0].mxu0
        %v1839 = vadd.f32 0.0, %v1838
        %v1840 = vpop.f32.mrb[0].mxu0
        %1841 = vmatprep.mubr.bf16.mxu0 0
        %1842 = vmatmul.mubr.bf16.gmra.mrb[0].mxu0 %v1531
        %v1843 = vpop.f32.mrb[0].mxu0
        %v1844 = vadd.f32 0.0, %v1843
        %v1845 = vpop.f32.mrb[0].mxu0
        %v1846 = vpop.f32.mrb[0].mxu0
        %v1847 = vadd.f32 0.0, %v1846
        %v1848 = vpop.f32.mrb[0].mxu0
        %1849 = vmatprep.mubr.bf16.mxu0 0
        %1850 = vmatmul.mubr.bf16.gmra.mrb[0].mxu0 %v1532
        %v1851 = vpop.f32.mrb[0].mxu0
        %v1852 = vadd.f32 0.0, %v1851
        %v1853 = vpop.f32.mrb[0].mxu0
        %v1854 = vpop.f32.mrb[0].mxu0
        %v1855 = vadd.f32 0.0, %v1854
        %v1856 = vpop.f32.mrb[0].mxu0
        %1857 = vmatprep.mubr.bf16.mxu0 0
        %1858 = vmatmul.mubr.bf16.gmra.mrb[0].mxu0 %v1533
        %v1859 = vpop.f32.mrb[0].mxu0
        %v1860 = vadd.f32 0.0, %v1859
        %v1861 = vpop.f32.mrb[0].mxu0
        %v1862 = vpop.f32.mrb[0].mxu0
        %v1863 = vadd.f32 0.0, %v1862
        %v1864 = vpop.f32.mrb[0].mxu0
        %1865 = vmatprep.mubr.bf16.mxu0 0
        %1866 = vmatmul.mubr.bf16.gmra.mrb[0].mxu0 %v1534
        %v1867 = vpop.f32.mrb[0].mxu0
        %v1868 = vadd.f32 0.0, %v1867
        %v1869 = vpop.f32.mrb[0].mxu0
        %v1870 = vpop.f32.mrb[0].mxu0
        %v1871 = vadd.f32 0.0, %v1870
        %v1872 = vpop.f32.mrb[0].mxu0
        %1873 = vmatprep.mubr.bf16.mxu0 0
        %1874 = vmatmul.mubr.bf16.gmra.mrb[0].mxu0 %v1535
        %v1875 = vpop.f32.mrb[0].mxu0
        %v1876 = vadd.f32 0.0, %v1875
        %v1877 = vpop.f32.mrb[0].mxu0
        %v1878 = vpop.f32.mrb[0].mxu0
        %v1879 = vadd.f32 0.0, %v1878
        %v1880 = vpop.f32.mrb[0].mxu0
        %1881 = vmatprep.mubr.bf16.mxu0 0
        %1882 = vmatmul.mubr.bf16.gmra.mrb[0].mxu0 %v1536
        %v1883 = vpop.f32.mrb[0].mxu0
        %v1884 = vadd.f32 0.0, %v1883
        %v1885 = vpop.f32.mrb[0].mxu0
        %v1886 = vpop.f32.mrb[0].mxu0
        %v1887 = vadd.f32 0.0, %v1886
        %v1888 = vpop.f32.mrb[0].mxu0
        %1889 = vdwg.mxu0
        %v1890 = vlaneseq
        %v1891 = vshrl.u32 %v1890, 7
        %v1892 = vadd.s32 %v1891, 8
        %vm1893 = vcmp.ge.s32.totalorder %v1891, 5
        %vm1894 = vcmp.ge.s32.totalorder %v1892, 5
        %vm1895 = vcmp.lt.s32.totalorder %v1891, 12
        %vm1896 = vcmp.lt.s32.totalorder %v1892, 12
        %vm1897 = vmand %vm1893, %vm1895
        %vm1898 = vmand %vm1894, %vm1896
        %v1899 = vsel %vm1897, 1, 0
        %v1900 = vsel %vm1898, 1, 0
        %vm1901 = vcmp.eq.s32.totalorder %v1899, 1
        %vm1902 = vcmp.eq.s32.totalorder %v1900, 1
        %v1903 = vsel %vm1901, %v1636, -1e+30
        %v1904 = vsel %vm1902, %v1639, -1e+30
        %v1905 = vsel %vm1901, %v1644, -1e+30
        %v1906 = vsel %vm1902, %v1647, -1e+30
        %v1907 = vsel %vm1901, %v1652, -1e+30
        %v1908 = vsel %vm1902, %v1655, -1e+30
        %v1909 = vsel %vm1901, %v1660, -1e+30
        %v1910 = vsel %vm1902, %v1663, -1e+30
        %v1911 = vsel %vm1901, %v1668, -1e+30
        %v1912 = vsel %vm1902, %v1671, -1e+30
        %v1913 = vsel %vm1901, %v1676, -1e+30
        %v1914 = vsel %vm1902, %v1679, -1e+30
        %v1915 = vsel %vm1901, %v1684, -1e+30
        %v1916 = vsel %vm1902, %v1687, -1e+30
        %v1917 = vsel %vm1901, %v1692, -1e+30
        %v1918 = vsel %vm1902, %v1695, -1e+30
        %v1919 = vsel %vm1901, %v1700, -1e+30
        %v1920 = vsel %vm1902, %v1703, -1e+30
        %v1921 = vsel %vm1901, %v1708, -1e+30
        %v1922 = vsel %vm1902, %v1711, -1e+30
        %v1923 = vsel %vm1901, %v1716, -1e+30
        %v1924 = vsel %vm1902, %v1719, -1e+30
        %v1925 = vsel %vm1901, %v1724, -1e+30
        %v1926 = vsel %vm1902, %v1727, -1e+30
        %v1927 = vsel %vm1901, %v1732, -1e+30
        %v1928 = vsel %vm1902, %v1735, -1e+30
        %v1929 = vsel %vm1901, %v1740, -1e+30
        %v1930 = vsel %vm1902, %v1743, -1e+30
        %v1931 = vsel %vm1901, %v1748, -1e+30
        %v1932 = vsel %vm1902, %v1751, -1e+30
        %v1933 = vsel %vm1901, %v1756, -1e+30
        %v1934 = vsel %vm1902, %v1759, -1e+30
        %v1935 = vsel %vm1901, %v1764, -1e+30
        %v1936 = vsel %vm1902, %v1767, -1e+30
        %v1937 = vsel %vm1901, %v1772, -1e+30
        %v1938 = vsel %vm1902, %v1775, -1e+30
        %v1939 = vsel %vm1901, %v1780, -1e+30
        %v1940 = vsel %vm1902, %v1783, -1e+30
        %v1941 = vsel %vm1901, %v1788, -1e+30
        %v1942 = vsel %vm1902, %v1791, -1e+30
        %v1943 = vsel %vm1901, %v1796, -1e+30
        %v1944 = vsel %vm1902, %v1799, -1e+30
        %v1945 = vsel %vm1901, %v1804, -1e+30
        %v1946 = vsel %vm1902, %v1807, -1e+30
        %v1947 = vsel %vm1901, %v1812, -1e+30
        %v1948 = vsel %vm1902, %v1815, -1e+30
        %v1949 = vsel %vm1901, %v1820, -1e+30
        %v1950 = vsel %vm1902, %v1823, -1e+30
        %v1951 = vsel %vm1901, %v1828, -1e+30
        %v1952 = vsel %vm1902, %v1831, -1e+30
        %v1953 = vsel %vm1901, %v1836, -1e+30
        %v1954 = vsel %vm1902, %v1839, -1e+30
        %v1955 = vsel %vm1901, %v1844, -1e+30
        %v1956 = vsel %vm1902, %v1847, -1e+30
        %v1957 = vsel %vm1901, %v1852, -1e+30
        %v1958 = vsel %vm1902, %v1855, -1e+30
        %v1959 = vsel %vm1901, %v1860, -1e+30
        %v1960 = vsel %vm1902, %v1863, -1e+30
        %v1961 = vsel %vm1901, %v1868, -1e+30
        %v1962 = vsel %vm1902, %v1871, -1e+30
        %v1963 = vsel %vm1901, %v1876, -1e+30
        %v1964 = vsel %vm1902, %v1879, -1e+30
        %v1965 = vsel %vm1901, %v1884, -1e+30
        %v1966 = vsel %vm1902, %v1887, -1e+30
        %vm1967 = vcmask 64512
        %v1968 = vsel %vm1967, %v1903, -inf
        %v1969 = vsel %vm1967, %v1904, -inf
        %v1970 = vmax.f32 %v1968, %v1969
        %v1971 = vrot.slane %v1970, 4
        %v1972 = vmax.f32 %v1970, %v1971
        %v1973 = vrot.slane %v1972, 2
        %v1974 = vmax.f32 %v1972, %v1973
        %v1975 = vrot.slane %v1974, 1
        %v1976 = vmax.f32 %v1974, %v1975
        %v1977 = vsel %vm1967, %v1905, -inf
        %v1978 = vsel %vm1967, %v1906, -inf
        %v1979 = vmax.f32 %v1977, %v1978
        %v1980 = vrot.slane %v1979, 4
        %v1981 = vmax.f32 %v1979, %v1980
        %v1982 = vrot.slane %v1981, 2
        %v1983 = vmax.f32 %v1981, %v1982
        %v1984 = vrot.slane %v1983, 1
        %v1985 = vmax.f32 %v1983, %v1984
        %v1986 = vsel %vm1967, %v1907, -inf
        %v1987 = vsel %vm1967, %v1908, -inf
        %v1988 = vmax.f32 %v1986, %v1987
        %v1989 = vrot.slane %v1988, 4
        %v1990 = vmax.f32 %v1988, %v1989
        %v1991 = vrot.slane %v1990, 2
        %v1992 = vmax.f32 %v1990, %v1991
        %v1993 = vrot.slane %v1992, 1
        %v1994 = vmax.f32 %v1992, %v1993
        %v1995 = vsel %vm1967, %v1909, -inf
        %v1996 = vsel %vm1967, %v1910, -inf
        %v1997 = vmax.f32 %v1995, %v1996
        %v1998 = vrot.slane %v1997, 4
        %v1999 = vmax.f32 %v1997, %v1998
        %v2000 = vrot.slane %v1999, 2
        %v2001 = vmax.f32 %v1999, %v2000
        %v2002 = vrot.slane %v2001, 1
        %v2003 = vmax.f32 %v2001, %v2002
        %v2004 = vsel %vm1967, %v1911, -inf
        %v2005 = vsel %vm1967, %v1912, -inf
        %v2006 = vmax.f32 %v2004, %v2005
        %v2007 = vrot.slane %v2006, 4
        %v2008 = vmax.f32 %v2006, %v2007
        %v2009 = vrot.slane %v2008, 2
        %v2010 = vmax.f32 %v2008, %v2009
        %v2011 = vrot.slane %v2010, 1
        %v2012 = vmax.f32 %v2010, %v2011
        %v2013 = vsel %vm1967, %v1913, -inf
        %v2014 = vsel %vm1967, %v1914, -inf
        %v2015 = vmax.f32 %v2013, %v2014
        %v2016 = vrot.slane %v2015, 4
        %v2017 = vmax.f32 %v2015, %v2016
        %v2018 = vrot.slane %v2017, 2
        %v2019 = vmax.f32 %v2017, %v2018
        %v2020 = vrot.slane %v2019, 1
        %v2021 = vmax.f32 %v2019, %v2020
        %v2022 = vsel %vm1967, %v1915, -inf
        %v2023 = vsel %vm1967, %v1916, -inf
        %v2024 = vmax.f32 %v2022, %v2023
        %v2025 = vrot.slane %v2024, 4
        %v2026 = vmax.f32 %v2024, %v2025
        %v2027 = vrot.slane %v2026, 2
        %v2028 = vmax.f32 %v2026, %v2027
        %v2029 = vrot.slane %v2028, 1
        %v2030 = vmax.f32 %v2028, %v2029
        %v2031 = vsel %vm1967, %v1917, -inf
        %v2032 = vsel %vm1967, %v1918, -inf
        %v2033 = vmax.f32 %v2031, %v2032
        %v2034 = vrot.slane %v2033, 4
        %v2035 = vmax.f32 %v2033, %v2034
        %v2036 = vrot.slane %v2035, 2
        %v2037 = vmax.f32 %v2035, %v2036
        %v2038 = vrot.slane %v2037, 1
        %v2039 = vmax.f32 %v2037, %v2038
        %v2040 = vsel %vm1967, %v1919, -inf
        %v2041 = vsel %vm1967, %v1920, -inf
        %v2042 = vmax.f32 %v2040, %v2041
        %v2043 = vrot.slane %v2042, 4
        %v2044 = vmax.f32 %v2042, %v2043
        %v2045 = vrot.slane %v2044, 2
        %v2046 = vmax.f32 %v2044, %v2045
        %v2047 = vrot.slane %v2046, 1
        %v2048 = vmax.f32 %v2046, %v2047
        %v2049 = vsel %vm1967, %v1921, -inf
        %v2050 = vsel %vm1967, %v1922, -inf
        %v2051 = vmax.f32 %v2049, %v2050
        %v2052 = vrot.slane %v2051, 4
        %v2053 = vmax.f32 %v2051, %v2052
        %v2054 = vrot.slane %v2053, 2
        %v2055 = vmax.f32 %v2053, %v2054
        %v2056 = vrot.slane %v2055, 1
        %v2057 = vmax.f32 %v2055, %v2056
        %v2058 = vsel %vm1967, %v1923, -inf
        %v2059 = vsel %vm1967, %v1924, -inf
        %v2060 = vmax.f32 %v2058, %v2059
        %v2061 = vrot.slane %v2060, 4
        %v2062 = vmax.f32 %v2060, %v2061
        %v2063 = vrot.slane %v2062, 2
        %v2064 = vmax.f32 %v2062, %v2063
        %v2065 = vrot.slane %v2064, 1
        %v2066 = vmax.f32 %v2064, %v2065
        %v2067 = vsel %vm1967, %v1925, -inf
        %v2068 = vsel %vm1967, %v1926, -inf
        %v2069 = vmax.f32 %v2067, %v2068
        %v2070 = vrot.slane %v2069, 4
        %v2071 = vmax.f32 %v2069, %v2070
        %v2072 = vrot.slane %v2071, 2
        %v2073 = vmax.f32 %v2071, %v2072
        %v2074 = vrot.slane %v2073, 1
        %v2075 = vmax.f32 %v2073, %v2074
        %v2076 = vsel %vm1967, %v1927, -inf
        %v2077 = vsel %vm1967, %v1928, -inf
        %v2078 = vmax.f32 %v2076, %v2077
        %v2079 = vrot.slane %v2078, 4
        %v2080 = vmax.f32 %v2078, %v2079
        %v2081 = vrot.slane %v2080, 2
        %v2082 = vmax.f32 %v2080, %v2081
        %v2083 = vrot.slane %v2082, 1
        %v2084 = vmax.f32 %v2082, %v2083
        %v2085 = vsel %vm1967, %v1929, -inf
        %v2086 = vsel %vm1967, %v1930, -inf
        %v2087 = vmax.f32 %v2085, %v2086
        %v2088 = vrot.slane %v2087, 4
        %v2089 = vmax.f32 %v2087, %v2088
        %v2090 = vrot.slane %v2089, 2
        %v2091 = vmax.f32 %v2089, %v2090
        %v2092 = vrot.slane %v2091, 1
        %v2093 = vmax.f32 %v2091, %v2092
        %v2094 = vsel %vm1967, %v1931, -inf
        %v2095 = vsel %vm1967, %v1932, -inf
        %v2096 = vmax.f32 %v2094, %v2095
        %v2097 = vrot.slane %v2096, 4
        %v2098 = vmax.f32 %v2096, %v2097
        %v2099 = vrot.slane %v2098, 2
        %v2100 = vmax.f32 %v2098, %v2099
        %v2101 = vrot.slane %v2100, 1
        %v2102 = vmax.f32 %v2100, %v2101
        %v2103 = vsel %vm1967, %v1933, -inf
        %v2104 = vsel %vm1967, %v1934, -inf
        %v2105 = vmax.f32 %v2103, %v2104
        %v2106 = vrot.slane %v2105, 4
        %v2107 = vmax.f32 %v2105, %v2106
        %v2108 = vrot.slane %v2107, 2
        %v2109 = vmax.f32 %v2107, %v2108
        %v2110 = vrot.slane %v2109, 1
        %v2111 = vmax.f32 %v2109, %v2110
        %v2112 = vsel %vm1967, %v1935, -inf
        %v2113 = vsel %vm1967, %v1936, -inf
        %v2114 = vmax.f32 %v2112, %v2113
        %v2115 = vrot.slane %v2114, 4
        %v2116 = vmax.f32 %v2114, %v2115
        %v2117 = vrot.slane %v2116, 2
        %v2118 = vmax.f32 %v2116, %v2117
        %v2119 = vrot.slane %v2118, 1
        %v2120 = vmax.f32 %v2118, %v2119
        %v2121 = vsel %vm1967, %v1937, -inf
        %v2122 = vsel %vm1967, %v1938, -inf
        %v2123 = vmax.f32 %v2121, %v2122
        %v2124 = vrot.slane %v2123, 4
        %v2125 = vmax.f32 %v2123, %v2124
        %v2126 = vrot.slane %v2125, 2
        %v2127 = vmax.f32 %v2125, %v2126
        %v2128 = vrot.slane %v2127, 1
        %v2129 = vmax.f32 %v2127, %v2128
        %v2130 = vsel %vm1967, %v1939, -inf
        %v2131 = vsel %vm1967, %v1940, -inf
        %v2132 = vmax.f32 %v2130, %v2131
        %v2133 = vrot.slane %v2132, 4
        %v2134 = vmax.f32 %v2132, %v2133
        %v2135 = vrot.slane %v2134, 2
        %v2136 = vmax.f32 %v2134, %v2135
        %v2137 = vrot.slane %v2136, 1
        %v2138 = vmax.f32 %v2136, %v2137
        %v2139 = vsel %vm1967, %v1941, -inf
        %v2140 = vsel %vm1967, %v1942, -inf
        %v2141 = vmax.f32 %v2139, %v2140
        %v2142 = vrot.slane %v2141, 4
        %v2143 = vmax.f32 %v2141, %v2142
        %v2144 = vrot.slane %v2143, 2
        %v2145 = vmax.f32 %v2143, %v2144
        %v2146 = vrot.slane %v2145, 1
        %v2147 = vmax.f32 %v2145, %v2146
        %v2148 = vsel %vm1967, %v1943, -inf
        %v2149 = vsel %vm1967, %v1944, -inf
        %v2150 = vmax.f32 %v2148, %v2149
        %v2151 = vrot.slane %v2150, 4
        %v2152 = vmax.f32 %v2150, %v2151
        %v2153 = vrot.slane %v2152, 2
        %v2154 = vmax.f32 %v2152, %v2153
        %v2155 = vrot.slane %v2154, 1
        %v2156 = vmax.f32 %v2154, %v2155
        %v2157 = vsel %vm1967, %v1945, -inf
        %v2158 = vsel %vm1967, %v1946, -inf
        %v2159 = vmax.f32 %v2157, %v2158
        %v2160 = vrot.slane %v2159, 4
        %v2161 = vmax.f32 %v2159, %v2160
        %v2162 = vrot.slane %v2161, 2
        %v2163 = vmax.f32 %v2161, %v2162
        %v2164 = vrot.slane %v2163, 1
        %v2165 = vmax.f32 %v2163, %v2164
        %v2166 = vsel %vm1967, %v1947, -inf
        %v2167 = vsel %vm1967, %v1948, -inf
        %v2168 = vmax.f32 %v2166, %v2167
        %v2169 = vrot.slane %v2168, 4
        %v2170 = vmax.f32 %v2168, %v2169
        %v2171 = vrot.slane %v2170, 2
        %v2172 = vmax.f32 %v2170, %v2171
        %v2173 = vrot.slane %v2172, 1
        %v2174 = vmax.f32 %v2172, %v2173
        %v2175 = vsel %vm1967, %v1949, -inf
        %v2176 = vsel %vm1967, %v1950, -inf
        %v2177 = vmax.f32 %v2175, %v2176
        %v2178 = vrot.slane %v2177, 4
        %v2179 = vmax.f32 %v2177, %v2178
        %v2180 = vrot.slane %v2179, 2
        %v2181 = vmax.f32 %v2179, %v2180
        %v2182 = vrot.slane %v2181, 1
        %v2183 = vmax.f32 %v2181, %v2182
        %v2184 = vsel %vm1967, %v1951, -inf
        %v2185 = vsel %vm1967, %v1952, -inf
        %v2186 = vmax.f32 %v2184, %v2185
        %v2187 = vrot.slane %v2186, 4
        %v2188 = vmax.f32 %v2186, %v2187
        %v2189 = vrot.slane %v2188, 2
        %v2190 = vmax.f32 %v2188, %v2189
        %v2191 = vrot.slane %v2190, 1
        %v2192 = vmax.f32 %v2190, %v2191
        %v2193 = vsel %vm1967, %v1953, -inf
        %v2194 = vsel %vm1967, %v1954, -inf
        %v2195 = vmax.f32 %v2193, %v2194
        %v2196 = vrot.slane %v2195, 4
        %v2197 = vmax.f32 %v2195, %v2196
        %v2198 = vrot.slane %v2197, 2
        %v2199 = vmax.f32 %v2197, %v2198
        %v2200 = vrot.slane %v2199, 1
        %v2201 = vmax.f32 %v2199, %v2200
        %v2202 = vsel %vm1967, %v1955, -inf
        %v2203 = vsel %vm1967, %v1956, -inf
        %v2204 = vmax.f32 %v2202, %v2203
        %v2205 = vrot.slane %v2204, 4
        %v2206 = vmax.f32 %v2204, %v2205
        %v2207 = vrot.slane %v2206, 2
        %v2208 = vmax.f32 %v2206, %v2207
        %v2209 = vrot.slane %v2208, 1
        %v2210 = vmax.f32 %v2208, %v2209
        %v2211 = vsel %vm1967, %v1957, -inf
        %v2212 = vsel %vm1967, %v1958, -inf
        %v2213 = vmax.f32 %v2211, %v2212
        %v2214 = vrot.slane %v2213, 4
        %v2215 = vmax.f32 %v2213, %v2214
        %v2216 = vrot.slane %v2215, 2
        %v2217 = vmax.f32 %v2215, %v2216
        %v2218 = vrot.slane %v2217, 1
        %v2219 = vmax.f32 %v2217, %v2218
        %v2220 = vsel %vm1967, %v1959, -inf
        %v2221 = vsel %vm1967, %v1960, -inf
        %v2222 = vmax.f32 %v2220, %v2221
        %v2223 = vrot.slane %v2222, 4
        %v2224 = vmax.f32 %v2222, %v2223
        %v2225 = vrot.slane %v2224, 2
        %v2226 = vmax.f32 %v2224, %v2225
        %v2227 = vrot.slane %v2226, 1
        %v2228 = vmax.f32 %v2226, %v2227
        %v2229 = vsel %vm1967, %v1961, -inf
        %v2230 = vsel %vm1967, %v1962, -inf
        %v2231 = vmax.f32 %v2229, %v2230
        %v2232 = vrot.slane %v2231, 4
        %v2233 = vmax.f32 %v2231, %v2232
        %v2234 = vrot.slane %v2233, 2
        %v2235 = vmax.f32 %v2233, %v2234
        %v2236 = vrot.slane %v2235, 1
        %v2237 = vmax.f32 %v2235, %v2236
        %v2238 = vsel %vm1967, %v1963, -inf
        %v2239 = vsel %vm1967, %v1964, -inf
        %v2240 = vmax.f32 %v2238, %v2239
        %v2241 = vrot.slane %v2240, 4
        %v2242 = vmax.f32 %v2240, %v2241
        %v2243 = vrot.slane %v2242, 2
        %v2244 = vmax.f32 %v2242, %v2243
        %v2245 = vrot.slane %v2244, 1
        %v2246 = vmax.f32 %v2244, %v2245
        %v2247 = vsel %vm1967, %v1965, -inf
        %v2248 = vsel %vm1967, %v1966, -inf
        %v2249 = vmax.f32 %v2247, %v2248
        %v2250 = vrot.slane %v2249, 4
        %v2251 = vmax.f32 %v2249, %v2250
        %v2252 = vrot.slane %v2251, 2
        %v2253 = vmax.f32 %v2251, %v2252
        %v2254 = vrot.slane %v2253, 1
        %v2255 = vmax.f32 %v2253, %v2254
        %v2256 = vsub.f32 %v1903, %v1976
        %v2257 = vsub.f32 %v1904, %v1976
        %v2258 = vsub.f32 %v1905, %v1985
        %v2259 = vsub.f32 %v1906, %v1985
        %v2260 = vsub.f32 %v1907, %v1994
        %v2261 = vsub.f32 %v1908, %v1994
        %v2262 = vsub.f32 %v1909, %v2003
        %v2263 = vsub.f32 %v1910, %v2003
        %v2264 = vsub.f32 %v1911, %v2012
        %v2265 = vsub.f32 %v1912, %v2012
        %v2266 = vsub.f32 %v1913, %v2021
        %v2267 = vsub.f32 %v1914, %v2021
        %v2268 = vsub.f32 %v1915, %v2030
        %v2269 = vsub.f32 %v1916, %v2030
        %v2270 = vsub.f32 %v1917, %v2039
        %v2271 = vsub.f32 %v1918, %v2039
        %v2272 = vsub.f32 %v1919, %v2048
        %v2273 = vsub.f32 %v1920, %v2048
        %v2274 = vsub.f32 %v1921, %v2057
        %v2275 = vsub.f32 %v1922, %v2057
        %v2276 = vsub.f32 %v1923, %v2066
        %v2277 = vsub.f32 %v1924, %v2066
        %v2278 = vsub.f32 %v1925, %v2075
        %v2279 = vsub.f32 %v1926, %v2075
        %v2280 = vsub.f32 %v1927, %v2084
        %v2281 = vsub.f32 %v1928, %v2084
        %v2282 = vsub.f32 %v1929, %v2093
        %v2283 = vsub.f32 %v1930, %v2093
        %v2284 = vsub.f32 %v1931, %v2102
        %v2285 = vsub.f32 %v1932, %v2102
        %v2286 = vsub.f32 %v1933, %v2111
        %v2287 = vsub.f32 %v1934, %v2111
        %v2288 = vsub.f32 %v1935, %v2120
        %v2289 = vsub.f32 %v1936, %v2120
        %v2290 = vsub.f32 %v1937, %v2129
        %v2291 = vsub.f32 %v1938, %v2129
        %v2292 = vsub.f32 %v1939, %v2138
        %v2293 = vsub.f32 %v1940, %v2138
        %v2294 = vsub.f32 %v1941, %v2147
        %v2295 = vsub.f32 %v1942, %v2147
        %v2296 = vsub.f32 %v1943, %v2156
        %v2297 = vsub.f32 %v1944, %v2156
        %v2298 = vsub.f32 %v1945, %v2165
        %v2299 = vsub.f32 %v1946, %v2165
        %v2300 = vsub.f32 %v1947, %v2174
        %v2301 = vsub.f32 %v1948, %v2174
        %v2302 = vsub.f32 %v1949, %v2183
        %v2303 = vsub.f32 %v1950, %v2183
        %v2304 = vsub.f32 %v1951, %v2192
        %v2305 = vsub.f32 %v1952, %v2192
        %v2306 = vsub.f32 %v1953, %v2201
        %v2307 = vsub.f32 %v1954, %v2201
        %v2308 = vsub.f32 %v1955, %v2210
        %v2309 = vsub.f32 %v1956, %v2210
        %v2310 = vsub.f32 %v1957, %v2219
        %v2311 = vsub.f32 %v1958, %v2219
        %v2312 = vsub.f32 %v1959, %v2228
        %v2313 = vsub.f32 %v1960, %v2228
        %v2314 = vsub.f32 %v1961, %v2237
        %v2315 = vsub.f32 %v1962, %v2237
        %v2316 = vsub.f32 %v1963, %v2246
        %v2317 = vsub.f32 %v1964, %v2246
        %v2318 = vsub.f32 %v1965, %v2255
        %v2319 = vsub.f32 %v1966, %v2255
        %v2320 = vmul.f32 %v2256, 1.442695
        %v2321 = vpow.pop %v2320
        %v2322 = vmul.f32 %v2257, 1.442695
        %v2323 = vpow.pop %v2322
        %v2324 = vmul.f32 %v2258, 1.442695
        %v2325 = vpow.pop %v2324
        %v2326 = vmul.f32 %v2259, 1.442695
        %v2327 = vpow.pop %v2326
        %v2328 = vmul.f32 %v2260, 1.442695
        %v2329 = vpow.pop %v2328
        %v2330 = vmul.f32 %v2261, 1.442695
        %v2331 = vpow.pop %v2330
        %v2332 = vmul.f32 %v2262, 1.442695
        %v2333 = vpow.pop %v2332
        %v2334 = vmul.f32 %v2263, 1.442695
        %v2335 = vpow.pop %v2334
        %v2336 = vmul.f32 %v2264, 1.442695
        %v2337 = vpow.pop %v2336
        %v2338 = vmul.f32 %v2265, 1.442695
        %v2339 = vpow.pop %v2338
        %v2340 = vmul.f32 %v2266, 1.442695
        %v2341 = vpow.pop %v2340
        %v2342 = vmul.f32 %v2267, 1.442695
        %v2343 = vpow.pop %v2342
        %v2344 = vmul.f32 %v2268, 1.442695
        %v2345 = vpow.pop %v2344
        %v2346 = vmul.f32 %v2269, 1.442695
        %v2347 = vpow.pop %v2346
        %v2348 = vmul.f32 %v2270, 1.442695
        %v2349 = vpow.pop %v2348
        %v2350 = vmul.f32 %v2271, 1.442695
        %v2351 = vpow.pop %v2350
        %v2352 = vmul.f32 %v2272, 1.442695
        %v2353 = vpow.pop %v2352
        %v2354 = vmul.f32 %v2273, 1.442695
        %v2355 = vpow.pop %v2354
        %v2356 = vmul.f32 %v2274, 1.442695
        %v2357 = vpow.pop %v2356
        %v2358 = vmul.f32 %v2275, 1.442695
        %v2359 = vpow.pop %v2358
        %v2360 = vmul.f32 %v2276, 1.442695
        %v2361 = vpow.pop %v2360
        %v2362 = vmul.f32 %v2277, 1.442695
        %v2363 = vpow.pop %v2362
        %v2364 = vmul.f32 %v2278, 1.442695
        %v2365 = vpow.pop %v2364
        %v2366 = vmul.f32 %v2279, 1.442695
        %v2367 = vpow.pop %v2366
        %v2368 = vmul.f32 %v2280, 1.442695
        %v2369 = vpow.pop %v2368
        %v2370 = vmul.f32 %v2281, 1.442695
        %v2371 = vpow.pop %v2370
        %v2372 = vmul.f32 %v2282, 1.442695
        %v2373 = vpow.pop %v2372
        %v2374 = vmul.f32 %v2283, 1.442695
        %v2375 = vpow.pop %v2374
        %v2376 = vmul.f32 %v2284, 1.442695
        %v2377 = vpow.pop %v2376
        %v2378 = vmul.f32 %v2285, 1.442695
        %v2379 = vpow.pop %v2378
        %v2380 = vmul.f32 %v2286, 1.442695
        %v2381 = vpow.pop %v2380
        %v2382 = vmul.f32 %v2287, 1.442695
        %v2383 = vpow.pop %v2382
        %v2384 = vmul.f32 %v2288, 1.442695
        %v2385 = vpow.pop %v2384
        %v2386 = vmul.f32 %v2289, 1.442695
        %v2387 = vpow.pop %v2386
        %v2388 = vmul.f32 %v2290, 1.442695
        %v2389 = vpow.pop %v2388
        %v2390 = vmul.f32 %v2291, 1.442695
        %v2391 = vpow.pop %v2390
        %v2392 = vmul.f32 %v2292, 1.442695
        %v2393 = vpow.pop %v2392
        %v2394 = vmul.f32 %v2293, 1.442695
        %v2395 = vpow.pop %v2394
        %v2396 = vmul.f32 %v2294, 1.442695
        %v2397 = vpow.pop %v2396
        %v2398 = vmul.f32 %v2295, 1.442695
        %v2399 = vpow.pop %v2398
        %v2400 = vmul.f32 %v2296, 1.442695
        %v2401 = vpow.pop %v2400
        %v2402 = vmul.f32 %v2297, 1.442695
        %v2403 = vpow.pop %v2402
        %v2404 = vmul.f32 %v2298, 1.442695
        %v2405 = vpow.pop %v2404
        %v2406 = vmul.f32 %v2299, 1.442695
        %v2407 = vpow.pop %v2406
        %v2408 = vmul.f32 %v2300, 1.442695
        %v2409 = vpow.pop %v2408
        %v2410 = vmul.f32 %v2301, 1.442695
        %v2411 = vpow.pop %v2410
        %v2412 = vmul.f32 %v2302, 1.442695
        %v2413 = vpow.pop %v2412
        %v2414 = vmul.f32 %v2303, 1.442695
        %v2415 = vpow.pop %v2414
        %v2416 = vmul.f32 %v2304, 1.442695
        %v2417 = vpow.pop %v2416
        %v2418 = vmul.f32 %v2305, 1.442695
        %v2419 = vpow.pop %v2418
        %v2420 = vmul.f32 %v2306, 1.442695
        %v2421 = vpow.pop %v2420
        %v2422 = vmul.f32 %v2307, 1.442695
        %v2423 = vpow.pop %v2422
        %v2424 = vmul.f32 %v2308, 1.442695
        %v2425 = vpow.pop %v2424
        %v2426 = vmul.f32 %v2309, 1.442695
        %v2427 = vpow.pop %v2426
        %v2428 = vmul.f32 %v2310, 1.442695
        %v2429 = vpow.pop %v2428
        %v2430 = vmul.f32 %v2311, 1.442695
        %v2431 = vpow.pop %v2430
        %v2432 = vmul.f32 %v2312, 1.442695
        %v2433 = vpow.pop %v2432
        %v2434 = vmul.f32 %v2313, 1.442695
        %v2435 = vpow.pop %v2434
        %v2436 = vmul.f32 %v2314, 1.442695
        %v2437 = vpow.pop %v2436
        %v2438 = vmul.f32 %v2315, 1.442695
        %v2439 = vpow.pop %v2438
        %v2440 = vmul.f32 %v2316, 1.442695
        %v2441 = vpow.pop %v2440
        %v2442 = vmul.f32 %v2317, 1.442695
        %v2443 = vpow.pop %v2442
        %v2444 = vmul.f32 %v2318, 1.442695
        %v2445 = vpow.pop %v2444
        %v2446 = vmul.f32 %v2319, 1.442695
        %v2447 = vpow.pop %v2446
        %v2448 = vsel %vm1967, %v2321, 0.0
        %v2449 = vsel %vm1967, %v2323, 0.0
        %v2450 = vadd.f32 %v2448, %v2449
        %v2451 = vrot.slane %v2450, 4
        %v2452 = vadd.f32 %v2450, %v2451
        %v2453 = vrot.slane %v2452, 2
        %v2454 = vadd.f32 %v2452, %v2453
        %v2455 = vrot.slane %v2454, 1
        %v2456 = vadd.f32 %v2454, %v2455
        %v2457 = vsel %vm1967, %v2325, 0.0
        %v2458 = vsel %vm1967, %v2327, 0.0
        %v2459 = vadd.f32 %v2457, %v2458
        %v2460 = vrot.slane %v2459, 4
        %v2461 = vadd.f32 %v2459, %v2460
        %v2462 = vrot.slane %v2461, 2
        %v2463 = vadd.f32 %v2461, %v2462
        %v2464 = vrot.slane %v2463, 1
        %v2465 = vadd.f32 %v2463, %v2464
        %v2466 = vsel %vm1967, %v2329, 0.0
        %v2467 = vsel %vm1967, %v2331, 0.0
        %v2468 = vadd.f32 %v2466, %v2467
        %v2469 = vrot.slane %v2468, 4
        %v2470 = vadd.f32 %v2468, %v2469
        %v2471 = vrot.slane %v2470, 2
        %v2472 = vadd.f32 %v2470, %v2471
        %v2473 = vrot.slane %v2472, 1
        %v2474 = vadd.f32 %v2472, %v2473
        %v2475 = vsel %vm1967, %v2333, 0.0
        %v2476 = vsel %vm1967, %v2335, 0.0
        %v2477 = vadd.f32 %v2475, %v2476
        %v2478 = vrot.slane %v2477, 4
        %v2479 = vadd.f32 %v2477, %v2478
        %v2480 = vrot.slane %v2479, 2
        %v2481 = vadd.f32 %v2479, %v2480
        %v2482 = vrot.slane %v2481, 1
        %v2483 = vadd.f32 %v2481, %v2482
        %v2484 = vsel %vm1967, %v2337, 0.0
        %v2485 = vsel %vm1967, %v2339, 0.0
        %v2486 = vadd.f32 %v2484, %v2485
        %v2487 = vrot.slane %v2486, 4
        %v2488 = vadd.f32 %v2486, %v2487
        %v2489 = vrot.slane %v2488, 2
        %v2490 = vadd.f32 %v2488, %v2489
        %v2491 = vrot.slane %v2490, 1
        %v2492 = vadd.f32 %v2490, %v2491
        %v2493 = vsel %vm1967, %v2341, 0.0
        %v2494 = vsel %vm1967, %v2343, 0.0
        %v2495 = vadd.f32 %v2493, %v2494
        %v2496 = vrot.slane %v2495, 4
        %v2497 = vadd.f32 %v2495, %v2496
        %v2498 = vrot.slane %v2497, 2
        %v2499 = vadd.f32 %v2497, %v2498
        %v2500 = vrot.slane %v2499, 1
        %v2501 = vadd.f32 %v2499, %v2500
        %v2502 = vsel %vm1967, %v2345, 0.0
        %v2503 = vsel %vm1967, %v2347, 0.0
        %v2504 = vadd.f32 %v2502, %v2503
        %v2505 = vrot.slane %v2504, 4
        %v2506 = vadd.f32 %v2504, %v2505
        %v2507 = vrot.slane %v2506, 2
        %v2508 = vadd.f32 %v2506, %v2507
        %v2509 = vrot.slane %v2508, 1
        %v2510 = vadd.f32 %v2508, %v2509
        %v2511 = vsel %vm1967, %v2349, 0.0
        %v2512 = vsel %vm1967, %v2351, 0.0
        %v2513 = vadd.f32 %v2511, %v2512
        %v2514 = vrot.slane %v2513, 4
        %v2515 = vadd.f32 %v2513, %v2514
        %v2516 = vrot.slane %v2515, 2
        %v2517 = vadd.f32 %v2515, %v2516
        %v2518 = vrot.slane %v2517, 1
        %v2519 = vadd.f32 %v2517, %v2518
        %v2520 = vsel %vm1967, %v2353, 0.0
        %v2521 = vsel %vm1967, %v2355, 0.0
        %v2522 = vadd.f32 %v2520, %v2521
        %v2523 = vrot.slane %v2522, 4
        %v2524 = vadd.f32 %v2522, %v2523
        %v2525 = vrot.slane %v2524, 2
        %v2526 = vadd.f32 %v2524, %v2525
        %v2527 = vrot.slane %v2526, 1
        %v2528 = vadd.f32 %v2526, %v2527
        %v2529 = vsel %vm1967, %v2357, 0.0
        %v2530 = vsel %vm1967, %v2359, 0.0
        %v2531 = vadd.f32 %v2529, %v2530
        %v2532 = vrot.slane %v2531, 4
        %v2533 = vadd.f32 %v2531, %v2532
        %v2534 = vrot.slane %v2533, 2
        %v2535 = vadd.f32 %v2533, %v2534
        %v2536 = vrot.slane %v2535, 1
        %v2537 = vadd.f32 %v2535, %v2536
        %v2538 = vsel %vm1967, %v2361, 0.0
        %v2539 = vsel %vm1967, %v2363, 0.0
        %v2540 = vadd.f32 %v2538, %v2539
        %v2541 = vrot.slane %v2540, 4
        %v2542 = vadd.f32 %v2540, %v2541
        %v2543 = vrot.slane %v2542, 2
        %v2544 = vadd.f32 %v2542, %v2543
        %v2545 = vrot.slane %v2544, 1
        %v2546 = vadd.f32 %v2544, %v2545
        %v2547 = vsel %vm1967, %v2365, 0.0
        %v2548 = vsel %vm1967, %v2367, 0.0
        %v2549 = vadd.f32 %v2547, %v2548
        %v2550 = vrot.slane %v2549, 4
        %v2551 = vadd.f32 %v2549, %v2550
        %v2552 = vrot.slane %v2551, 2
        %v2553 = vadd.f32 %v2551, %v2552
        %v2554 = vrot.slane %v2553, 1
        %v2555 = vadd.f32 %v2553, %v2554
        %v2556 = vsel %vm1967, %v2369, 0.0
        %v2557 = vsel %vm1967, %v2371, 0.0
        %v2558 = vadd.f32 %v2556, %v2557
        %v2559 = vrot.slane %v2558, 4
        %v2560 = vadd.f32 %v2558, %v2559
        %v2561 = vrot.slane %v2560, 2
        %v2562 = vadd.f32 %v2560, %v2561
        %v2563 = vrot.slane %v2562, 1
        %v2564 = vadd.f32 %v2562, %v2563
        %v2565 = vsel %vm1967, %v2373, 0.0
        %v2566 = vsel %vm1967, %v2375, 0.0
        %v2567 = vadd.f32 %v2565, %v2566
        %v2568 = vrot.slane %v2567, 4
        %v2569 = vadd.f32 %v2567, %v2568
        %v2570 = vrot.slane %v2569, 2
        %v2571 = vadd.f32 %v2569, %v2570
        %v2572 = vrot.slane %v2571, 1
        %v2573 = vadd.f32 %v2571, %v2572
        %v2574 = vsel %vm1967, %v2377, 0.0
        %v2575 = vsel %vm1967, %v2379, 0.0
        %v2576 = vadd.f32 %v2574, %v2575
        %v2577 = vrot.slane %v2576, 4
        %v2578 = vadd.f32 %v2576, %v2577
        %v2579 = vrot.slane %v2578, 2
        %v2580 = vadd.f32 %v2578, %v2579
        %v2581 = vrot.slane %v2580, 1
        %v2582 = vadd.f32 %v2580, %v2581
        %v2583 = vsel %vm1967, %v2381, 0.0
        %v2584 = vsel %vm1967, %v2383, 0.0
        %v2585 = vadd.f32 %v2583, %v2584
        %v2586 = vrot.slane %v2585, 4
        %v2587 = vadd.f32 %v2585, %v2586
        %v2588 = vrot.slane %v2587, 2
        %v2589 = vadd.f32 %v2587, %v2588
        %v2590 = vrot.slane %v2589, 1
        %v2591 = vadd.f32 %v2589, %v2590
        %v2592 = vsel %vm1967, %v2385, 0.0
        %v2593 = vsel %vm1967, %v2387, 0.0
        %v2594 = vadd.f32 %v2592, %v2593
        %v2595 = vrot.slane %v2594, 4
        %v2596 = vadd.f32 %v2594, %v2595
        %v2597 = vrot.slane %v2596, 2
        %v2598 = vadd.f32 %v2596, %v2597
        %v2599 = vrot.slane %v2598, 1
        %v2600 = vadd.f32 %v2598, %v2599
        %v2601 = vsel %vm1967, %v2389, 0.0
        %v2602 = vsel %vm1967, %v2391, 0.0
        %v2603 = vadd.f32 %v2601, %v2602
        %v2604 = vrot.slane %v2603, 4
        %v2605 = vadd.f32 %v2603, %v2604
        %v2606 = vrot.slane %v2605, 2
        %v2607 = vadd.f32 %v2605, %v2606
        %v2608 = vrot.slane %v2607, 1
        %v2609 = vadd.f32 %v2607, %v2608
        %v2610 = vsel %vm1967, %v2393, 0.0
        %v2611 = vsel %vm1967, %v2395, 0.0
        %v2612 = vadd.f32 %v2610, %v2611
        %v2613 = vrot.slane %v2612, 4
        %v2614 = vadd.f32 %v2612, %v2613
        %v2615 = vrot.slane %v2614, 2
        %v2616 = vadd.f32 %v2614, %v2615
        %v2617 = vrot.slane %v2616, 1
        %v2618 = vadd.f32 %v2616, %v2617
        %v2619 = vsel %vm1967, %v2397, 0.0
        %v2620 = vsel %vm1967, %v2399, 0.0
        %v2621 = vadd.f32 %v2619, %v2620
        %v2622 = vrot.slane %v2621, 4
        %v2623 = vadd.f32 %v2621, %v2622
        %v2624 = vrot.slane %v2623, 2
        %v2625 = vadd.f32 %v2623, %v2624
        %v2626 = vrot.slane %v2625, 1
        %v2627 = vadd.f32 %v2625, %v2626
        %v2628 = vsel %vm1967, %v2401, 0.0
        %v2629 = vsel %vm1967, %v2403, 0.0
        %v2630 = vadd.f32 %v2628, %v2629
        %v2631 = vrot.slane %v2630, 4
        %v2632 = vadd.f32 %v2630, %v2631
        %v2633 = vrot.slane %v2632, 2
        %v2634 = vadd.f32 %v2632, %v2633
        %v2635 = vrot.slane %v2634, 1
        %v2636 = vadd.f32 %v2634, %v2635
        %v2637 = vsel %vm1967, %v2405, 0.0
        %v2638 = vsel %vm1967, %v2407, 0.0
        %v2639 = vadd.f32 %v2637, %v2638
        %v2640 = vrot.slane %v2639, 4
        %v2641 = vadd.f32 %v2639, %v2640
        %v2642 = vrot.slane %v2641, 2
        %v2643 = vadd.f32 %v2641, %v2642
        %v2644 = vrot.slane %v2643, 1
        %v2645 = vadd.f32 %v2643, %v2644
        %v2646 = vsel %vm1967, %v2409, 0.0
        %v2647 = vsel %vm1967, %v2411, 0.0
        %v2648 = vadd.f32 %v2646, %v2647
        %v2649 = vrot.slane %v2648, 4
        %v2650 = vadd.f32 %v2648, %v2649
        %v2651 = vrot.slane %v2650, 2
        %v2652 = vadd.f32 %v2650, %v2651
        %v2653 = vrot.slane %v2652, 1
        %v2654 = vadd.f32 %v2652, %v2653
        %v2655 = vsel %vm1967, %v2413, 0.0
        %v2656 = vsel %vm1967, %v2415, 0.0
        %v2657 = vadd.f32 %v2655, %v2656
        %v2658 = vrot.slane %v2657, 4
        %v2659 = vadd.f32 %v2657, %v2658
        %v2660 = vrot.slane %v2659, 2
        %v2661 = vadd.f32 %v2659, %v2660
        %v2662 = vrot.slane %v2661, 1
        %v2663 = vadd.f32 %v2661, %v2662
        %v2664 = vsel %vm1967, %v2417, 0.0
        %v2665 = vsel %vm1967, %v2419, 0.0
        %v2666 = vadd.f32 %v2664, %v2665
        %v2667 = vrot.slane %v2666, 4
        %v2668 = vadd.f32 %v2666, %v2667
        %v2669 = vrot.slane %v2668, 2
        %v2670 = vadd.f32 %v2668, %v2669
        %v2671 = vrot.slane %v2670, 1
        %v2672 = vadd.f32 %v2670, %v2671
        %v2673 = vsel %vm1967, %v2421, 0.0
        %v2674 = vsel %vm1967, %v2423, 0.0
        %v2675 = vadd.f32 %v2673, %v2674
        %v2676 = vrot.slane %v2675, 4
        %v2677 = vadd.f32 %v2675, %v2676
        %v2678 = vrot.slane %v2677, 2
        %v2679 = vadd.f32 %v2677, %v2678
        %v2680 = vrot.slane %v2679, 1
        %v2681 = vadd.f32 %v2679, %v2680
        %v2682 = vsel %vm1967, %v2425, 0.0
        %v2683 = vsel %vm1967, %v2427, 0.0
        %v2684 = vadd.f32 %v2682, %v2683
        %v2685 = vrot.slane %v2684, 4
        %v2686 = vadd.f32 %v2684, %v2685
        %v2687 = vrot.slane %v2686, 2
        %v2688 = vadd.f32 %v2686, %v2687
        %v2689 = vrot.slane %v2688, 1
        %v2690 = vadd.f32 %v2688, %v2689
        %v2691 = vsel %vm1967, %v2429, 0.0
        %v2692 = vsel %vm1967, %v2431, 0.0
        %v2693 = vadd.f32 %v2691, %v2692
        %v2694 = vrot.slane %v2693, 4
        %v2695 = vadd.f32 %v2693, %v2694
        %v2696 = vrot.slane %v2695, 2
        %v2697 = vadd.f32 %v2695, %v2696
        %v2698 = vrot.slane %v2697, 1
        %v2699 = vadd.f32 %v2697, %v2698
        %v2700 = vsel %vm1967, %v2433, 0.0
        %v2701 = vsel %vm1967, %v2435, 0.0
        %v2702 = vadd.f32 %v2700, %v2701
        %v2703 = vrot.slane %v2702, 4
        %v2704 = vadd.f32 %v2702, %v2703
        %v2705 = vrot.slane %v2704, 2
        %v2706 = vadd.f32 %v2704, %v2705
        %v2707 = vrot.slane %v2706, 1
        %v2708 = vadd.f32 %v2706, %v2707
        %v2709 = vsel %vm1967, %v2437, 0.0
        %v2710 = vsel %vm1967, %v2439, 0.0
        %v2711 = vadd.f32 %v2709, %v2710
        %v2712 = vrot.slane %v2711, 4
        %v2713 = vadd.f32 %v2711, %v2712
        %v2714 = vrot.slane %v2713, 2
        %v2715 = vadd.f32 %v2713, %v2714
        %v2716 = vrot.slane %v2715, 1
        %v2717 = vadd.f32 %v2715, %v2716
        %v2718 = vsel %vm1967, %v2441, 0.0
        %v2719 = vsel %vm1967, %v2443, 0.0
        %v2720 = vadd.f32 %v2718, %v2719
        %v2721 = vrot.slane %v2720, 4
        %v2722 = vadd.f32 %v2720, %v2721
        %v2723 = vrot.slane %v2722, 2
        %v2724 = vadd.f32 %v2722, %v2723
        %v2725 = vrot.slane %v2724, 1
        %v2726 = vadd.f32 %v2724, %v2725
        %v2727 = vsel %vm1967, %v2445, 0.0
        %v2728 = vsel %vm1967, %v2447, 0.0
        %v2729 = vadd.f32 %v2727, %v2728
        %v2730 = vrot.slane %v2729, 4
        %v2731 = vadd.f32 %v2729, %v2730
        %v2732 = vrot.slane %v2731, 2
        %v2733 = vadd.f32 %v2731, %v2732
        %v2734 = vrot.slane %v2733, 1
        %v2735 = vadd.f32 %v2733, %v2734
        %v2736 = vrcp.pop %v2456
        %v2737 = vrcp.pop %v2465
        %v2738 = vrcp.pop %v2474
        %v2739 = vrcp.pop %v2483
        %v2740 = vrcp.pop %v2492
        %v2741 = vrcp.pop %v2501
        %v2742 = vrcp.pop %v2510
        %v2743 = vrcp.pop %v2519
        %v2744 = vrcp.pop %v2528
        %v2745 = vrcp.pop %v2537
        %v2746 = vrcp.pop %v2546
        %v2747 = vrcp.pop %v2555
        %v2748 = vrcp.pop %v2564
        %v2749 = vrcp.pop %v2573
        %v2750 = vrcp.pop %v2582
        %v2751 = vrcp.pop %v2591
        %v2752 = vrcp.pop %v2600
        %v2753 = vrcp.pop %v2609
        %v2754 = vrcp.pop %v2618
        %v2755 = vrcp.pop %v2627
        %v2756 = vrcp.pop %v2636
        %v2757 = vrcp.pop %v2645
        %v2758 = vrcp.pop %v2654
        %v2759 = vrcp.pop %v2663
        %v2760 = vrcp.pop %v2672
        %v2761 = vrcp.pop %v2681
        %v2762 = vrcp.pop %v2690
        %v2763 = vrcp.pop %v2699
        %v2764 = vrcp.pop %v2708
        %v2765 = vrcp.pop %v2717
        %v2766 = vrcp.pop %v2726
        %v2767 = vrcp.pop %v2735
        %v2768 = vmul.f32 %v2321, %v2736
        %v2769 = vmul.f32 %v2323, %v2736
        %v2770 = vmul.f32 %v2325, %v2737
        %v2771 = vmul.f32 %v2327, %v2737
        %v2772 = vmul.f32 %v2329, %v2738
        %v2773 = vmul.f32 %v2331, %v2738
        %v2774 = vmul.f32 %v2333, %v2739
        %v2775 = vmul.f32 %v2335, %v2739
        %v2776 = vmul.f32 %v2337, %v2740
        %v2777 = vmul.f32 %v2339, %v2740
        %v2778 = vmul.f32 %v2341, %v2741
        %v2779 = vmul.f32 %v2343, %v2741
        %v2780 = vmul.f32 %v2345, %v2742
        %v2781 = vmul.f32 %v2347, %v2742
        %v2782 = vmul.f32 %v2349, %v2743
        %v2783 = vmul.f32 %v2351, %v2743
        %v2784 = vmul.f32 %v2353, %v2744
        %v2785 = vmul.f32 %v2355, %v2744
        %v2786 = vmul.f32 %v2357, %v2745
        %v2787 = vmul.f32 %v2359, %v2745
        %v2788 = vmul.f32 %v2361, %v2746
        %v2789 = vmul.f32 %v2363, %v2746
        %v2790 = vmul.f32 %v2365, %v2747
        %v2791 = vmul.f32 %v2367, %v2747
        %v2792 = vmul.f32 %v2369, %v2748
        %v2793 = vmul.f32 %v2371, %v2748
        %v2794 = vmul.f32 %v2373, %v2749
        %v2795 = vmul.f32 %v2375, %v2749
        %v2796 = vmul.f32 %v2377, %v2750
        %v2797 = vmul.f32 %v2379, %v2750
        %v2798 = vmul.f32 %v2381, %v2751
        %v2799 = vmul.f32 %v2383, %v2751
        %v2800 = vmul.f32 %v2385, %v2752
        %v2801 = vmul.f32 %v2387, %v2752
        %v2802 = vmul.f32 %v2389, %v2753
        %v2803 = vmul.f32 %v2391, %v2753
        %v2804 = vmul.f32 %v2393, %v2754
        %v2805 = vmul.f32 %v2395, %v2754
        %v2806 = vmul.f32 %v2397, %v2755
        %v2807 = vmul.f32 %v2399, %v2755
        %v2808 = vmul.f32 %v2401, %v2756
        %v2809 = vmul.f32 %v2403, %v2756
        %v2810 = vmul.f32 %v2405, %v2757
        %v2811 = vmul.f32 %v2407, %v2757
        %v2812 = vmul.f32 %v2409, %v2758
        %v2813 = vmul.f32 %v2411, %v2758
        %v2814 = vmul.f32 %v2413, %v2759
        %v2815 = vmul.f32 %v2415, %v2759
        %v2816 = vmul.f32 %v2417, %v2760
        %v2817 = vmul.f32 %v2419, %v2760
        %v2818 = vmul.f32 %v2421, %v2761
        %v2819 = vmul.f32 %v2423, %v2761
        %v2820 = vmul.f32 %v2425, %v2762
        %v2821 = vmul.f32 %v2427, %v2762
        %v2822 = vmul.f32 %v2429, %v2763
        %v2823 = vmul.f32 %v2431, %v2763
        %v2824 = vmul.f32 %v2433, %v2764
        %v2825 = vmul.f32 %v2435, %v2764
        %v2826 = vmul.f32 %v2437, %v2765
        %v2827 = vmul.f32 %v2439, %v2765
        %v2828 = vmul.f32 %v2441, %v2766
        %v2829 = vmul.f32 %v2443, %v2766
        %v2830 = vmul.f32 %v2445, %v2767
        %v2831 = vmul.f32 %v2447, %v2767
        %v2832 = vpack.c.bf16 %v2769, %v2768
        %v2833 = vpack.c.bf16 %v2771, %v2770
        %v2834 = vpack.c.bf16 %v2773, %v2772
        %v2835 = vpack.c.bf16 %v2775, %v2774
        %v2836 = vpack.c.bf16 %v2777, %v2776
        %v2837 = vpack.c.bf16 %v2779, %v2778
        %v2838 = vpack.c.bf16 %v2781, %v2780
        %v2839 = vpack.c.bf16 %v2783, %v2782
        %v2840 = vpack.c.bf16 %v2785, %v2784
        %v2841 = vpack.c.bf16 %v2787, %v2786
        %v2842 = vpack.c.bf16 %v2789, %v2788
        %v2843 = vpack.c.bf16 %v2791, %v2790
        %v2844 = vpack.c.bf16 %v2793, %v2792
        %v2845 = vpack.c.bf16 %v2795, %v2794
        %v2846 = vpack.c.bf16 %v2797, %v2796
        %v2847 = vpack.c.bf16 %v2799, %v2798
        %v2848 = vpack.c.bf16 %v2801, %v2800
        %v2849 = vpack.c.bf16 %v2803, %v2802
        %v2850 = vpack.c.bf16 %v2805, %v2804
        %v2851 = vpack.c.bf16 %v2807, %v2806
        %v2852 = vpack.c.bf16 %v2809, %v2808
        %v2853 = vpack.c.bf16 %v2811, %v2810
        %v2854 = vpack.c.bf16 %v2813, %v2812
        %v2855 = vpack.c.bf16 %v2815, %v2814
        %v2856 = vpack.c.bf16 %v2817, %v2816
        %v2857 = vpack.c.bf16 %v2819, %v2818
        %v2858 = vpack.c.bf16 %v2821, %v2820
        %v2859 = vpack.c.bf16 %v2823, %v2822
        %v2860 = vpack.c.bf16 %v2825, %v2824
        %v2861 = vpack.c.bf16 %v2827, %v2826
        %v2862 = vpack.c.bf16 %v2829, %v2828
        %v2863 = vpack.c.bf16 %v2831, %v2830
        %v2864 = vld [vmem:[%s12] sm:$0xf]
        %v2866 = vsel %vm1967, %v2832, 0
        %v2869 = vsel %vm1967, %v2833, 0
        %v2872 = vsel %vm1967, %v2834, 0
        %v2875 = vsel %vm1967, %v2835, 0
        %v2878 = vsel %vm1967, %v2836, 0
        %v2881 = vsel %vm1967, %v2837, 0
        %v2884 = vsel %vm1967, %v2838, 0
        %v2887 = vsel %vm1967, %v2839, 0
        %v2890 = vsel %vm1967, %v2840, 0
        %v2893 = vsel %vm1967, %v2841, 0
        %v2896 = vsel %vm1967, %v2842, 0
        %v2899 = vsel %vm1967, %v2843, 0
        %v2902 = vsel %vm1967, %v2844, 0
        %v2905 = vsel %vm1967, %v2845, 0
        %v2908 = vsel %vm1967, %v2846, 0
        %v2911 = vsel %vm1967, %v2847, 0
        %v2914 = vsel %vm1967, %v2848, 0
        %v2917 = vsel %vm1967, %v2849, 0
        %v2920 = vsel %vm1967, %v2850, 0
        %v2923 = vsel %vm1967, %v2851, 0
        %v2926 = vsel %vm1967, %v2852, 0
        %v2929 = vsel %vm1967, %v2853, 0
        %v2932 = vsel %vm1967, %v2854, 0
        %v2935 = vsel %vm1967, %v2855, 0
        %v2938 = vsel %vm1967, %v2856, 0
        %v2941 = vsel %vm1967, %v2857, 0
        %v2944 = vsel %vm1967, %v2858, 0
        %v2947 = vsel %vm1967, %v2859, 0
        %v2950 = vsel %vm1967, %v2860, 0
        %v2953 = vsel %vm1967, %v2861, 0
        %v2956 = vsel %vm1967, %v2862, 0
        %v2959 = vsel %vm1967, %v2863, 0
        %vm2961 = vcmask 1043456
        %v2963 = vsel %vm2961, %v2864, 0
        %2965 = vmatprep.subr.bf16.mxu0 0
        %2966 = vmatpush1.bf16.msra.mxu0 %v2963
        %2967 = vmatprep.subr.bf16.mxu0 0
        %2968 = vmatpush1.bf16.msra.mxu0 0
        %2969 = vmatprep.subr.bf16.mxu0 0
        %2970 = vmatpush1.bf16.msra.mxu0 0
        %2971 = vmatprep.subr.bf16.mxu0 0
        %2972 = vmatpush1.bf16.msra.mxu0 0
        %2973 = vmatprep.subr.bf16.mxu0 0
        %2974 = vmatpush1.bf16.msra.mxu0 0
        %2975 = vmatprep.subr.bf16.mxu0 0
        %2976 = vmatpush1.bf16.msra.mxu0 0
        %2977 = vmatprep.subr.bf16.mxu0 0
        %2978 = vmatpush1.bf16.msra.mxu0 0
        %2979 = vmatprep.subr.bf16.mxu0 0
        %2980 = vmatpush1.bf16.msra.mxu0 0
        %2981 = vmatprep.subr.bf16.mxu0 0
        %2982 = vmatpush1.bf16.msra.mxu0 0
        %2983 = vmatprep.subr.bf16.mxu0 0
        %2984 = vmatpush1.bf16.msra.mxu0 0
        %2985 = vmatprep.subr.bf16.mxu0 0
        %2986 = vmatpush1.bf16.msra.mxu0 0
        %2987 = vmatprep.subr.bf16.mxu0 0
        %2988 = vmatpush1.bf16.msra.mxu0 0
        %2989 = vmatprep.subr.bf16.mxu0 0
        %2990 = vmatpush1.bf16.msra.mxu0 0
        %2991 = vmatprep.subr.bf16.mxu0 0
        %2992 = vmatpush1.bf16.msra.mxu0 0
        %2993 = vmatprep.subr.bf16.mxu0 0
        %2994 = vmatpush1.bf16.msra.mxu0 0
        %2995 = vmatprep.subr.bf16.mxu0 0
        %2996 = vmatpush1.bf16.msra.mxu0 0
        %2997 = vmatprep.mubr.bf16.mxu0 0
        %2998 = vmatmul.mubr.bf16.gmra.mrb[0].mxu0 %v2866
        %v2999 = vpop.f32.mrb[0].mxu0
        %v3000 = vadd.f32 0.0, %v2999
        %v3001 = vpop.f32.mrb[0].mxu0
        %v3002 = vpop.f32.mrb[0].mxu0
        %v3003 = vadd.f32 0.0, %v3002
        %v3004 = vpop.f32.mrb[0].mxu0
        %3005 = vmatprep.mubr.bf16.mxu0 0
        %3006 = vmatmul.mubr.bf16.gmra.mrb[0].mxu0 %v2869
        %v3007 = vpop.f32.mrb[0].mxu0
        %v3008 = vadd.f32 0.0, %v3007
        %v3009 = vpop.f32.mrb[0].mxu0
        %v3010 = vpop.f32.mrb[0].mxu0
        %v3011 = vadd.f32 0.0, %v3010
        %v3012 = vpop.f32.mrb[0].mxu0
        %3013 = vmatprep.mubr.bf16.mxu0 0
        %3014 = vmatmul.mubr.bf16.gmra.mrb[0].mxu0 %v2872
        %v3015 = vpop.f32.mrb[0].mxu0
        %v3016 = vadd.f32 0.0, %v3015
        %v3017 = vpop.f32.mrb[0].mxu0
        %v3018 = vpop.f32.mrb[0].mxu0
        %v3019 = vadd.f32 0.0, %v3018
        %v3020 = vpop.f32.mrb[0].mxu0
        %3021 = vmatprep.mubr.bf16.mxu0 0
        %3022 = vmatmul.mubr.bf16.gmra.mrb[0].mxu0 %v2875
        %v3023 = vpop.f32.mrb[0].mxu0
        %v3024 = vadd.f32 0.0, %v3023
        %v3025 = vpop.f32.mrb[0].mxu0
        %v3026 = vpop.f32.mrb[0].mxu0
        %v3027 = vadd.f32 0.0, %v3026
        %v3028 = vpop.f32.mrb[0].mxu0
        %3029 = vmatprep.mubr.bf16.mxu0 0
        %3030 = vmatmul.mubr.bf16.gmra.mrb[0].mxu0 %v2878
        %v3031 = vpop.f32.mrb[0].mxu0
        %v3032 = vadd.f32 0.0, %v3031
        %v3033 = vpop.f32.mrb[0].mxu0
        %v3034 = vpop.f32.mrb[0].mxu0
        %v3035 = vadd.f32 0.0, %v3034
        %v3036 = vpop.f32.mrb[0].mxu0
        %3037 = vmatprep.mubr.bf16.mxu0 0
        %3038 = vmatmul.mubr.bf16.gmra.mrb[0].mxu0 %v2881
        %v3039 = vpop.f32.mrb[0].mxu0
        %v3040 = vadd.f32 0.0, %v3039
        %v3041 = vpop.f32.mrb[0].mxu0
        %v3042 = vpop.f32.mrb[0].mxu0
        %v3043 = vadd.f32 0.0, %v3042
        %v3044 = vpop.f32.mrb[0].mxu0
        %3045 = vmatprep.mubr.bf16.mxu0 0
        %3046 = vmatmul.mubr.bf16.gmra.mrb[0].mxu0 %v2884
        %v3047 = vpop.f32.mrb[0].mxu0
        %v3048 = vadd.f32 0.0, %v3047
        %v3049 = vpop.f32.mrb[0].mxu0
        %v3050 = vpop.f32.mrb[0].mxu0
        %v3051 = vadd.f32 0.0, %v3050
        %v3052 = vpop.f32.mrb[0].mxu0
        %3053 = vmatprep.mubr.bf16.mxu0 0
        %3054 = vmatmul.mubr.bf16.gmra.mrb[0].mxu0 %v2887
        %v3055 = vpop.f32.mrb[0].mxu0
        %v3056 = vadd.f32 0.0, %v3055
        %v3057 = vpop.f32.mrb[0].mxu0
        %v3058 = vpop.f32.mrb[0].mxu0
        %v3059 = vadd.f32 0.0, %v3058
        %v3060 = vpop.f32.mrb[0].mxu0
        %3061 = vmatprep.mubr.bf16.mxu0 0
        %3062 = vmatmul.mubr.bf16.gmra.mrb[0].mxu0 %v2890
        %v3063 = vpop.f32.mrb[0].mxu0
        %v3064 = vadd.f32 0.0, %v3063
        %v3065 = vpop.f32.mrb[0].mxu0
        %v3066 = vpop.f32.mrb[0].mxu0
        %v3067 = vadd.f32 0.0, %v3066
        %v3068 = vpop.f32.mrb[0].mxu0
        %3069 = vmatprep.mubr.bf16.mxu0 0
        %3070 = vmatmul.mubr.bf16.gmra.mrb[0].mxu0 %v2893
        %v3071 = vpop.f32.mrb[0].mxu0
        %v3072 = vadd.f32 0.0, %v3071
        %v3073 = vpop.f32.mrb[0].mxu0
        %v3074 = vpop.f32.mrb[0].mxu0
        %v3075 = vadd.f32 0.0, %v3074
        %v3076 = vpop.f32.mrb[0].mxu0
        %3077 = vmatprep.mubr.bf16.mxu0 0
        %3078 = vmatmul.mubr.bf16.gmra.mrb[0].mxu0 %v2896
        %v3079 = vpop.f32.mrb[0].mxu0
        %v3080 = vadd.f32 0.0, %v3079
        %v3081 = vpop.f32.mrb[0].mxu0
        %v3082 = vpop.f32.mrb[0].mxu0
        %v3083 = vadd.f32 0.0, %v3082
        %v3084 = vpop.f32.mrb[0].mxu0
        %3085 = vmatprep.mubr.bf16.mxu0 0
        %3086 = vmatmul.mubr.bf16.gmra.mrb[0].mxu0 %v2899
        %v3087 = vpop.f32.mrb[0].mxu0
        %v3088 = vadd.f32 0.0, %v3087
        %v3089 = vpop.f32.mrb[0].mxu0
        %v3090 = vpop.f32.mrb[0].mxu0
        %v3091 = vadd.f32 0.0, %v3090
        %v3092 = vpop.f32.mrb[0].mxu0
        %3093 = vmatprep.mubr.bf16.mxu0 0
        %3094 = vmatmul.mubr.bf16.gmra.mrb[0].mxu0 %v2902
        %v3095 = vpop.f32.mrb[0].mxu0
        %v3096 = vadd.f32 0.0, %v3095
        %v3097 = vpop.f32.mrb[0].mxu0
        %v3098 = vpop.f32.mrb[0].mxu0
        %v3099 = vadd.f32 0.0, %v3098
        %v3100 = vpop.f32.mrb[0].mxu0
        %3101 = vmatprep.mubr.bf16.mxu0 0
        %3102 = vmatmul.mubr.bf16.gmra.mrb[0].mxu0 %v2905
        %v3103 = vpop.f32.mrb[0].mxu0
        %v3104 = vadd.f32 0.0, %v3103
        %v3105 = vpop.f32.mrb[0].mxu0
        %v3106 = vpop.f32.mrb[0].mxu0
        %v3107 = vadd.f32 0.0, %v3106
        %v3108 = vpop.f32.mrb[0].mxu0
        %3109 = vmatprep.mubr.bf16.mxu0 0
        %3110 = vmatmul.mubr.bf16.gmra.mrb[0].mxu0 %v2908
        %v3111 = vpop.f32.mrb[0].mxu0
        %v3112 = vadd.f32 0.0, %v3111
        %v3113 = vpop.f32.mrb[0].mxu0
        %v3114 = vpop.f32.mrb[0].mxu0
        %v3115 = vadd.f32 0.0, %v3114
        %v3116 = vpop.f32.mrb[0].mxu0
        %3117 = vmatprep.mubr.bf16.mxu0 0
        %3118 = vmatmul.mubr.bf16.gmra.mrb[0].mxu0 %v2911
        %v3119 = vpop.f32.mrb[0].mxu0
        %v3120 = vadd.f32 0.0, %v3119
        %v3121 = vpop.f32.mrb[0].mxu0
        %v3122 = vpop.f32.mrb[0].mxu0
        %v3123 = vadd.f32 0.0, %v3122
        %v3124 = vpop.f32.mrb[0].mxu0
        %3125 = vmatprep.mubr.bf16.mxu0 0
        %3126 = vmatmul.mubr.bf16.gmra.mrb[0].mxu0 %v2914
        %v3127 = vpop.f32.mrb[0].mxu0
        %v3128 = vadd.f32 0.0, %v3127
        %v3129 = vpop.f32.mrb[0].mxu0
        %v3130 = vpop.f32.mrb[0].mxu0
        %v3131 = vadd.f32 0.0, %v3130
        %v3132 = vpop.f32.mrb[0].mxu0
        %3133 = vmatprep.mubr.bf16.mxu0 0
        %3134 = vmatmul.mubr.bf16.gmra.mrb[0].mxu0 %v2917
        %v3135 = vpop.f32.mrb[0].mxu0
        %v3136 = vadd.f32 0.0, %v3135
        %v3137 = vpop.f32.mrb[0].mxu0
        %v3138 = vpop.f32.mrb[0].mxu0
        %v3139 = vadd.f32 0.0, %v3138
        %v3140 = vpop.f32.mrb[0].mxu0
        %3141 = vmatprep.mubr.bf16.mxu0 0
        %3142 = vmatmul.mubr.bf16.gmra.mrb[0].mxu0 %v2920
        %v3143 = vpop.f32.mrb[0].mxu0
        %v3144 = vadd.f32 0.0, %v3143
        %v3145 = vpop.f32.mrb[0].mxu0
        %v3146 = vpop.f32.mrb[0].mxu0
        %v3147 = vadd.f32 0.0, %v3146
        %v3148 = vpop.f32.mrb[0].mxu0
        %3149 = vmatprep.mubr.bf16.mxu0 0
        %3150 = vmatmul.mubr.bf16.gmra.mrb[0].mxu0 %v2923
        %v3151 = vpop.f32.mrb[0].mxu0
        %v3152 = vadd.f32 0.0, %v3151
        %v3153 = vpop.f32.mrb[0].mxu0
        %v3154 = vpop.f32.mrb[0].mxu0
        %v3155 = vadd.f32 0.0, %v3154
        %v3156 = vpop.f32.mrb[0].mxu0
        %3157 = vmatprep.mubr.bf16.mxu0 0
        %3158 = vmatmul.mubr.bf16.gmra.mrb[0].mxu0 %v2926
        %v3159 = vpop.f32.mrb[0].mxu0
        %v3160 = vadd.f32 0.0, %v3159
        %v3161 = vpop.f32.mrb[0].mxu0
        %v3162 = vpop.f32.mrb[0].mxu0
        %v3163 = vadd.f32 0.0, %v3162
        %v3164 = vpop.f32.mrb[0].mxu0
        %3165 = vmatprep.mubr.bf16.mxu0 0
        %3166 = vmatmul.mubr.bf16.gmra.mrb[0].mxu0 %v2929
        %v3167 = vpop.f32.mrb[0].mxu0
        %v3168 = vadd.f32 0.0, %v3167
        %v3169 = vpop.f32.mrb[0].mxu0
        %v3170 = vpop.f32.mrb[0].mxu0
        %v3171 = vadd.f32 0.0, %v3170
        %v3172 = vpop.f32.mrb[0].mxu0
        %3173 = vmatprep.mubr.bf16.mxu0 0
        %3174 = vmatmul.mubr.bf16.gmra.mrb[0].mxu0 %v2932
        %v3175 = vpop.f32.mrb[0].mxu0
        %v3176 = vadd.f32 0.0, %v3175
        %v3177 = vpop.f32.mrb[0].mxu0
        %v3178 = vpop.f32.mrb[0].mxu0
        %v3179 = vadd.f32 0.0, %v3178
        %v3180 = vpop.f32.mrb[0].mxu0
        %3181 = vmatprep.mubr.bf16.mxu0 0
        %3182 = vmatmul.mubr.bf16.gmra.mrb[0].mxu0 %v2935
        %v3183 = vpop.f32.mrb[0].mxu0
        %v3184 = vadd.f32 0.0, %v3183
        %v3185 = vpop.f32.mrb[0].mxu0
        %v3186 = vpop.f32.mrb[0].mxu0
        %v3187 = vadd.f32 0.0, %v3186
        %v3188 = vpop.f32.mrb[0].mxu0
        %3189 = vmatprep.mubr.bf16.mxu0 0
        %3190 = vmatmul.mubr.bf16.gmra.mrb[0].mxu0 %v2938
        %v3191 = vpop.f32.mrb[0].mxu0
        %v3192 = vadd.f32 0.0, %v3191
        %v3193 = vpop.f32.mrb[0].mxu0
        %v3194 = vpop.f32.mrb[0].mxu0
        %v3195 = vadd.f32 0.0, %v3194
        %v3196 = vpop.f32.mrb[0].mxu0
        %3197 = vmatprep.mubr.bf16.mxu0 0
        %3198 = vmatmul.mubr.bf16.gmra.mrb[0].mxu0 %v2941
        %v3199 = vpop.f32.mrb[0].mxu0
        %v3200 = vadd.f32 0.0, %v3199
        %v3201 = vpop.f32.mrb[0].mxu0
        %v3202 = vpop.f32.mrb[0].mxu0
        %v3203 = vadd.f32 0.0, %v3202
        %v3204 = vpop.f32.mrb[0].mxu0
        %3205 = vmatprep.mubr.bf16.mxu0 0
        %3206 = vmatmul.mubr.bf16.gmra.mrb[0].mxu0 %v2944
        %v3207 = vpop.f32.mrb[0].mxu0
        %v3208 = vadd.f32 0.0, %v3207
        %v3209 = vpop.f32.mrb[0].mxu0
        %v3210 = vpop.f32.mrb[0].mxu0
        %v3211 = vadd.f32 0.0, %v3210
        %v3212 = vpop.f32.mrb[0].mxu0
        %3213 = vmatprep.mubr.bf16.mxu0 0
        %3214 = vmatmul.mubr.bf16.gmra.mrb[0].mxu0 %v2947
        %v3215 = vpop.f32.mrb[0].mxu0
        %v3216 = vadd.f32 0.0, %v3215
        %v3217 = vpop.f32.mrb[0].mxu0
        %v3218 = vpop.f32.mrb[0].mxu0
        %v3219 = vadd.f32 0.0, %v3218
        %v3220 = vpop.f32.mrb[0].mxu0
        %3221 = vmatprep.mubr.bf16.mxu0 0
        %3222 = vmatmul.mubr.bf16.gmra.mrb[0].mxu0 %v2950
        %v3223 = vpop.f32.mrb[0].mxu0
        %v3224 = vadd.f32 0.0, %v3223
        %v3225 = vpop.f32.mrb[0].mxu0
        %v3226 = vpop.f32.mrb[0].mxu0
        %v3227 = vadd.f32 0.0, %v3226
        %v3228 = vpop.f32.mrb[0].mxu0
        %3229 = vmatprep.mubr.bf16.mxu0 0
        %3230 = vmatmul.mubr.bf16.gmra.mrb[0].mxu0 %v2953
        %v3231 = vpop.f32.mrb[0].mxu0
        %v3232 = vadd.f32 0.0, %v3231
        %v3233 = vpop.f32.mrb[0].mxu0
        %v3234 = vpop.f32.mrb[0].mxu0
        %v3235 = vadd.f32 0.0, %v3234
        %v3236 = vpop.f32.mrb[0].mxu0
        %3237 = vmatprep.mubr.bf16.mxu0 0
        %3238 = vmatmul.mubr.bf16.gmra.mrb[0].mxu0 %v2956
        %v3239 = vpop.f32.mrb[0].mxu0
        %v3240 = vadd.f32 0.0, %v3239
        %v3241 = vpop.f32.mrb[0].mxu0
        %v3242 = vpop.f32.mrb[0].mxu0
        %v3243 = vadd.f32 0.0, %v3242
        %v3244 = vpop.f32.mrb[0].mxu0
        %3245 = vmatprep.mubr.bf16.mxu0 0
        %3246 = vmatmul.mubr.bf16.gmra.mrb[0].mxu0 %v2959
        %v3247 = vpop.f32.mrb[0].mxu0
        %v3248 = vadd.f32 0.0, %v3247
        %v3249 = vpop.f32.mrb[0].mxu0
        %v3250 = vpop.f32.mrb[0].mxu0
        %v3251 = vadd.f32 0.0, %v3250
        %v3252 = vpop.f32.mrb[0].mxu0
        %3253 = vdwg.mxu0
        %v3254 = vmul.f32 %v3000, %v967
        %v3255 = vmul.f32 %v3003, %v970
        %v3256 = vmul.f32 %v3008, %v967
        %v3257 = vmul.f32 %v3011, %v970
        %v3258 = vmul.f32 %v3016, %v967
        %v3259 = vmul.f32 %v3019, %v970
        %v3260 = vmul.f32 %v3024, %v967
        %v3261 = vmul.f32 %v3027, %v970
        %v3262 = vmul.f32 %v3032, %v967
        %v3263 = vmul.f32 %v3035, %v970
        %v3264 = vmul.f32 %v3040, %v967
        %v3265 = vmul.f32 %v3043, %v970
        %v3266 = vmul.f32 %v3048, %v967
        %v3267 = vmul.f32 %v3051, %v970
        %v3268 = vmul.f32 %v3056, %v967
        %v3269 = vmul.f32 %v3059, %v970
        %v3270 = vmul.f32 %v3064, %v967
        %v3271 = vmul.f32 %v3067, %v970
        %v3272 = vmul.f32 %v3072, %v967
        %v3273 = vmul.f32 %v3075, %v970
        %v3274 = vmul.f32 %v3080, %v967
        %v3275 = vmul.f32 %v3083, %v970
        %v3276 = vmul.f32 %v3088, %v967
        %v3277 = vmul.f32 %v3091, %v970
        %v3278 = vmul.f32 %v3096, %v967
        %v3279 = vmul.f32 %v3099, %v970
        %v3280 = vmul.f32 %v3104, %v967
        %v3281 = vmul.f32 %v3107, %v970
        %v3282 = vmul.f32 %v3112, %v967
        %v3283 = vmul.f32 %v3115, %v970
        %v3284 = vmul.f32 %v3120, %v967
        %v3285 = vmul.f32 %v3123, %v970
        %v3286 = vmul.f32 %v3128, %v975
        %v3287 = vmul.f32 %v3131, %v978
        %v3288 = vmul.f32 %v3136, %v975
        %v3289 = vmul.f32 %v3139, %v978
        %v3290 = vmul.f32 %v3144, %v975
        %v3291 = vmul.f32 %v3147, %v978
        %v3292 = vmul.f32 %v3152, %v975
        %v3293 = vmul.f32 %v3155, %v978
        %v3294 = vmul.f32 %v3160, %v975
        %v3295 = vmul.f32 %v3163, %v978
        %v3296 = vmul.f32 %v3168, %v975
        %v3297 = vmul.f32 %v3171, %v978
        %v3298 = vmul.f32 %v3176, %v975
        %v3299 = vmul.f32 %v3179, %v978
        %v3300 = vmul.f32 %v3184, %v975
        %v3301 = vmul.f32 %v3187, %v978
        %v3302 = vmul.f32 %v3192, %v975
        %v3303 = vmul.f32 %v3195, %v978
        %v3304 = vmul.f32 %v3200, %v975
        %v3305 = vmul.f32 %v3203, %v978
        %v3306 = vmul.f32 %v3208, %v975
        %v3307 = vmul.f32 %v3211, %v978
        %v3308 = vmul.f32 %v3216, %v975
        %v3309 = vmul.f32 %v3219, %v978
        %v3310 = vmul.f32 %v3224, %v975
        %v3311 = vmul.f32 %v3227, %v978
        %v3312 = vmul.f32 %v3232, %v975
        %v3313 = vmul.f32 %v3235, %v978
        %v3314 = vmul.f32 %v3240, %v975
        %v3315 = vmul.f32 %v3243, %v978
        %v3316 = vmul.f32 %v3248, %v975
        %v3317 = vmul.f32 %v3251, %v978
        %v3318 = vadd.f32 %v3254, %v3255
        %v3319 = vrot.slane %v3318, 4
        %v3320 = vadd.f32 %v3318, %v3319
        %v3321 = vrot.slane %v3320, 2
        %v3322 = vadd.f32 %v3320, %v3321
        %v3323 = vrot.slane %v3322, 1
        %v3324 = vadd.f32 %v3322, %v3323
        %v3325 = vadd.f32 %v3256, %v3257
        %v3326 = vrot.slane %v3325, 4
        %v3327 = vadd.f32 %v3325, %v3326
        %v3328 = vrot.slane %v3327, 2
        %v3329 = vadd.f32 %v3327, %v3328
        %v3330 = vrot.slane %v3329, 1
        %v3331 = vadd.f32 %v3329, %v3330
        %v3332 = vadd.f32 %v3258, %v3259
        %v3333 = vrot.slane %v3332, 4
        %v3334 = vadd.f32 %v3332, %v3333
        %v3335 = vrot.slane %v3334, 2
        %v3336 = vadd.f32 %v3334, %v3335
        %v3337 = vrot.slane %v3336, 1
        %v3338 = vadd.f32 %v3336, %v3337
        %v3339 = vadd.f32 %v3260, %v3261
        %v3340 = vrot.slane %v3339, 4
        %v3341 = vadd.f32 %v3339, %v3340
        %v3342 = vrot.slane %v3341, 2
        %v3343 = vadd.f32 %v3341, %v3342
        %v3344 = vrot.slane %v3343, 1
        %v3345 = vadd.f32 %v3343, %v3344
        %v3346 = vadd.f32 %v3262, %v3263
        %v3347 = vrot.slane %v3346, 4
        %v3348 = vadd.f32 %v3346, %v3347
        %v3349 = vrot.slane %v3348, 2
        %v3350 = vadd.f32 %v3348, %v3349
        %v3351 = vrot.slane %v3350, 1
        %v3352 = vadd.f32 %v3350, %v3351
        %v3353 = vadd.f32 %v3264, %v3265
        %v3354 = vrot.slane %v3353, 4
        %v3355 = vadd.f32 %v3353, %v3354
        %v3356 = vrot.slane %v3355, 2
        %v3357 = vadd.f32 %v3355, %v3356
        %v3358 = vrot.slane %v3357, 1
        %v3359 = vadd.f32 %v3357, %v3358
        %v3360 = vadd.f32 %v3266, %v3267
        %v3361 = vrot.slane %v3360, 4
        %v3362 = vadd.f32 %v3360, %v3361
        %v3363 = vrot.slane %v3362, 2
        %v3364 = vadd.f32 %v3362, %v3363
        %v3365 = vrot.slane %v3364, 1
        %v3366 = vadd.f32 %v3364, %v3365
        %v3367 = vadd.f32 %v3268, %v3269
        %v3368 = vrot.slane %v3367, 4
        %v3369 = vadd.f32 %v3367, %v3368
        %v3370 = vrot.slane %v3369, 2
        %v3371 = vadd.f32 %v3369, %v3370
        %v3372 = vrot.slane %v3371, 1
        %v3373 = vadd.f32 %v3371, %v3372
        %v3374 = vadd.f32 %v3270, %v3271
        %v3375 = vrot.slane %v3374, 4
        %v3376 = vadd.f32 %v3374, %v3375
        %v3377 = vrot.slane %v3376, 2
        %v3378 = vadd.f32 %v3376, %v3377
        %v3379 = vrot.slane %v3378, 1
        %v3380 = vadd.f32 %v3378, %v3379
        %v3381 = vadd.f32 %v3272, %v3273
        %v3382 = vrot.slane %v3381, 4
        %v3383 = vadd.f32 %v3381, %v3382
        %v3384 = vrot.slane %v3383, 2
        %v3385 = vadd.f32 %v3383, %v3384
        %v3386 = vrot.slane %v3385, 1
        %v3387 = vadd.f32 %v3385, %v3386
        %v3388 = vadd.f32 %v3274, %v3275
        %v3389 = vrot.slane %v3388, 4
        %v3390 = vadd.f32 %v3388, %v3389
        %v3391 = vrot.slane %v3390, 2
        %v3392 = vadd.f32 %v3390, %v3391
        %v3393 = vrot.slane %v3392, 1
        %v3394 = vadd.f32 %v3392, %v3393
        %v3395 = vadd.f32 %v3276, %v3277
        %v3396 = vrot.slane %v3395, 4
        %v3397 = vadd.f32 %v3395, %v3396
        %v3398 = vrot.slane %v3397, 2
        %v3399 = vadd.f32 %v3397, %v3398
        %v3400 = vrot.slane %v3399, 1
        %v3401 = vadd.f32 %v3399, %v3400
        %v3402 = vadd.f32 %v3278, %v3279
        %v3403 = vrot.slane %v3402, 4
        %v3404 = vadd.f32 %v3402, %v3403
        %v3405 = vrot.slane %v3404, 2
        %v3406 = vadd.f32 %v3404, %v3405
        %v3407 = vrot.slane %v3406, 1
        %v3408 = vadd.f32 %v3406, %v3407
        %v3409 = vadd.f32 %v3280, %v3281
        %v3410 = vrot.slane %v3409, 4
        %v3411 = vadd.f32 %v3409, %v3410
        %v3412 = vrot.slane %v3411, 2
        %v3413 = vadd.f32 %v3411, %v3412
        %v3414 = vrot.slane %v3413, 1
        %v3415 = vadd.f32 %v3413, %v3414
        %v3416 = vadd.f32 %v3282, %v3283
        %v3417 = vrot.slane %v3416, 4
        %v3418 = vadd.f32 %v3416, %v3417
        %v3419 = vrot.slane %v3418, 2
        %v3420 = vadd.f32 %v3418, %v3419
        %v3421 = vrot.slane %v3420, 1
        %v3422 = vadd.f32 %v3420, %v3421
        %v3423 = vadd.f32 %v3284, %v3285
        %v3424 = vrot.slane %v3423, 4
        %v3425 = vadd.f32 %v3423, %v3424
        %v3426 = vrot.slane %v3425, 2
        %v3427 = vadd.f32 %v3425, %v3426
        %v3428 = vrot.slane %v3427, 1
        %v3429 = vadd.f32 %v3427, %v3428
        %v3430 = vadd.f32 %v3286, %v3287
        %v3431 = vrot.slane %v3430, 4
        %v3432 = vadd.f32 %v3430, %v3431
        %v3433 = vrot.slane %v3432, 2
        %v3434 = vadd.f32 %v3432, %v3433
        %v3435 = vrot.slane %v3434, 1
        %v3436 = vadd.f32 %v3434, %v3435
        %v3437 = vadd.f32 %v3288, %v3289
        %v3438 = vrot.slane %v3437, 4
        %v3439 = vadd.f32 %v3437, %v3438
        %v3440 = vrot.slane %v3439, 2
        %v3441 = vadd.f32 %v3439, %v3440
        %v3442 = vrot.slane %v3441, 1
        %v3443 = vadd.f32 %v3441, %v3442
        %v3444 = vadd.f32 %v3290, %v3291
        %v3445 = vrot.slane %v3444, 4
        %v3446 = vadd.f32 %v3444, %v3445
        %v3447 = vrot.slane %v3446, 2
        %v3448 = vadd.f32 %v3446, %v3447
        %v3449 = vrot.slane %v3448, 1
        %v3450 = vadd.f32 %v3448, %v3449
        %v3451 = vadd.f32 %v3292, %v3293
        %v3452 = vrot.slane %v3451, 4
        %v3453 = vadd.f32 %v3451, %v3452
        %v3454 = vrot.slane %v3453, 2
        %v3455 = vadd.f32 %v3453, %v3454
        %v3456 = vrot.slane %v3455, 1
        %v3457 = vadd.f32 %v3455, %v3456
        %v3458 = vadd.f32 %v3294, %v3295
        %v3459 = vrot.slane %v3458, 4
        %v3460 = vadd.f32 %v3458, %v3459
        %v3461 = vrot.slane %v3460, 2
        %v3462 = vadd.f32 %v3460, %v3461
        %v3463 = vrot.slane %v3462, 1
        %v3464 = vadd.f32 %v3462, %v3463
        %v3465 = vadd.f32 %v3296, %v3297
        %v3466 = vrot.slane %v3465, 4
        %v3467 = vadd.f32 %v3465, %v3466
        %v3468 = vrot.slane %v3467, 2
        %v3469 = vadd.f32 %v3467, %v3468
        %v3470 = vrot.slane %v3469, 1
        %v3471 = vadd.f32 %v3469, %v3470
        %v3472 = vadd.f32 %v3298, %v3299
        %v3473 = vrot.slane %v3472, 4
        %v3474 = vadd.f32 %v3472, %v3473
        %v3475 = vrot.slane %v3474, 2
        %v3476 = vadd.f32 %v3474, %v3475
        %v3477 = vrot.slane %v3476, 1
        %v3478 = vadd.f32 %v3476, %v3477
        %v3479 = vadd.f32 %v3300, %v3301
        %v3480 = vrot.slane %v3479, 4
        %v3481 = vadd.f32 %v3479, %v3480
        %v3482 = vrot.slane %v3481, 2
        %v3483 = vadd.f32 %v3481, %v3482
        %v3484 = vrot.slane %v3483, 1
        %v3485 = vadd.f32 %v3483, %v3484
        %v3486 = vadd.f32 %v3302, %v3303
        %v3487 = vrot.slane %v3486, 4
        %v3488 = vadd.f32 %v3486, %v3487
        %v3489 = vrot.slane %v3488, 2
        %v3490 = vadd.f32 %v3488, %v3489
        %v3491 = vrot.slane %v3490, 1
        %v3492 = vadd.f32 %v3490, %v3491
        %v3493 = vadd.f32 %v3304, %v3305
        %v3494 = vrot.slane %v3493, 4
        %v3495 = vadd.f32 %v3493, %v3494
        %v3496 = vrot.slane %v3495, 2
        %v3497 = vadd.f32 %v3495, %v3496
        %v3498 = vrot.slane %v3497, 1
        %v3499 = vadd.f32 %v3497, %v3498
        %v3500 = vadd.f32 %v3306, %v3307
        %v3501 = vrot.slane %v3500, 4
        %v3502 = vadd.f32 %v3500, %v3501
        %v3503 = vrot.slane %v3502, 2
        %v3504 = vadd.f32 %v3502, %v3503
        %v3505 = vrot.slane %v3504, 1
        %v3506 = vadd.f32 %v3504, %v3505
        %v3507 = vadd.f32 %v3308, %v3309
        %v3508 = vrot.slane %v3507, 4
        %v3509 = vadd.f32 %v3507, %v3508
        %v3510 = vrot.slane %v3509, 2
        %v3511 = vadd.f32 %v3509, %v3510
        %v3512 = vrot.slane %v3511, 1
        %v3513 = vadd.f32 %v3511, %v3512
        %v3514 = vadd.f32 %v3310, %v3311
        %v3515 = vrot.slane %v3514, 4
        %v3516 = vadd.f32 %v3514, %v3515
        %v3517 = vrot.slane %v3516, 2
        %v3518 = vadd.f32 %v3516, %v3517
        %v3519 = vrot.slane %v3518, 1
        %v3520 = vadd.f32 %v3518, %v3519
        %v3521 = vadd.f32 %v3312, %v3313
        %v3522 = vrot.slane %v3521, 4
        %v3523 = vadd.f32 %v3521, %v3522
        %v3524 = vrot.slane %v3523, 2
        %v3525 = vadd.f32 %v3523, %v3524
        %v3526 = vrot.slane %v3525, 1
        %v3527 = vadd.f32 %v3525, %v3526
        %v3528 = vadd.f32 %v3314, %v3315
        %v3529 = vrot.slane %v3528, 4
        %v3530 = vadd.f32 %v3528, %v3529
        %v3531 = vrot.slane %v3530, 2
        %v3532 = vadd.f32 %v3530, %v3531
        %v3533 = vrot.slane %v3532, 1
        %v3534 = vadd.f32 %v3532, %v3533
        %v3535 = vadd.f32 %v3316, %v3317
        %v3536 = vrot.slane %v3535, 4
        %v3537 = vadd.f32 %v3535, %v3536
        %v3538 = vrot.slane %v3537, 2
        %v3539 = vadd.f32 %v3537, %v3538
        %v3540 = vrot.slane %v3539, 1
        %v3541 = vadd.f32 %v3539, %v3540
        %v3542 = vcvt.s32.f32 %v1899
        %v3543 = vcvt.s32.f32 %v1900
        %v3546 = vrot.slane %v3542, 1
        %v3547 = vrot.slane %v3542, 2
        %v3548 = vrot.slane %v3542, 3
        %v3549 = vrot.slane %v3542, 4
        %v3550 = vrot.slane %v3542, 5
        %v3551 = vrot.slane %v3542, 6
        %v3552 = vrot.slane %v3542, 7
        %v3553 = vrot.slane %v3543, 1
        %v3554 = vrot.slane %v3543, 2
        %v3555 = vrot.slane %v3543, 3
        %v3556 = vrot.slane %v3543, 4
        %v3557 = vrot.slane %v3543, 5
        %v3558 = vrot.slane %v3543, 6
        %v3559 = vrot.slane %v3543, 7
        %v3576 = vmul.f32 %v3324, %v3542
        %v3577 = vmul.f32 %v3331, %v3546
        %v3578 = vmul.f32 %v3338, %v3547
        %v3579 = vmul.f32 %v3345, %v3548
        %v3580 = vmul.f32 %v3352, %v3549
        %v3581 = vmul.f32 %v3359, %v3550
        %v3582 = vmul.f32 %v3366, %v3551
        %v3583 = vmul.f32 %v3373, %v3552
        %v3584 = vmul.f32 %v3380, %v3543
        %v3585 = vmul.f32 %v3387, %v3553
        %v3586 = vmul.f32 %v3394, %v3554
        %v3587 = vmul.f32 %v3401, %v3555
        %v3588 = vmul.f32 %v3408, %v3556
        %v3589 = vmul.f32 %v3415, %v3557
        %v3590 = vmul.f32 %v3422, %v3558
        %v3591 = vmul.f32 %v3429, %v3559
        %v3592 = vmul.f32 %v3436, %v3542
        %v3593 = vmul.f32 %v3443, %v3546
        %v3594 = vmul.f32 %v3450, %v3547
        %v3595 = vmul.f32 %v3457, %v3548
        %v3596 = vmul.f32 %v3464, %v3549
        %v3597 = vmul.f32 %v3471, %v3550
        %v3598 = vmul.f32 %v3478, %v3551
        %v3599 = vmul.f32 %v3485, %v3552
        %v3600 = vmul.f32 %v3492, %v3543
        %v3601 = vmul.f32 %v3499, %v3553
        %v3602 = vmul.f32 %v3506, %v3554
        %v3603 = vmul.f32 %v3513, %v3555
        %v3604 = vmul.f32 %v3520, %v3556
        %v3605 = vmul.f32 %v3527, %v3557
        %v3606 = vmul.f32 %v3534, %v3558
        %v3607 = vmul.f32 %v3541, %v3559
        %v3640 = vrot.slane %v3577, 7
        %vm3641 = vcmask 1041409
        %v3642 = vsel %vm3641, %v3640, %v3576
        %v3643 = vrot.slane %v3578, 6
        %vm3644 = vcmask 1042434
        %v3645 = vsel %vm3644, %v3643, %v3642
        %v3646 = vrot.slane %v3579, 5
        %vm3647 = vcmask 1043459
        %v3648 = vsel %vm3647, %v3646, %v3645
        %v3649 = vrot.slane %v3580, 4
        %vm3650 = vcmask 1044484
        %v3651 = vsel %vm3650, %v3649, %v3648
        %v3652 = vrot.slane %v3581, 3
        %vm3653 = vcmask 1045509
        %v3654 = vsel %vm3653, %v3652, %v3651
        %v3655 = vrot.slane %v3582, 2
        %vm3656 = vcmask 1046534
        %v3657 = vsel %vm3656, %v3655, %v3654
        %v3658 = vrot.slane %v3583, 1
        %vm3659 = vcmask 1047559
        %v3660 = vsel %vm3659, %v3658, %v3657
        %v3661 = vrot.slane %v3585, 7
        %v3662 = vsel %vm3641, %v3661, %v3584
        %v3663 = vrot.slane %v3586, 6
        %v3664 = vsel %vm3644, %v3663, %v3662
        %v3665 = vrot.slane %v3587, 5
        %v3666 = vsel %vm3647, %v3665, %v3664
        %v3667 = vrot.slane %v3588, 4
        %v3668 = vsel %vm3650, %v3667, %v3666
        %v3669 = vrot.slane %v3589, 3
        %v3670 = vsel %vm3653, %v3669, %v3668
        %v3671 = vrot.slane %v3590, 2
        %v3672 = vsel %vm3656, %v3671, %v3670
        %v3673 = vrot.slane %v3591, 1
        %v3674 = vsel %vm3659, %v3673, %v3672
        %v3675 = vrot.slane %v3593, 7
        %v3676 = vsel %vm3641, %v3675, %v3592
        %v3677 = vrot.slane %v3594, 6
        %v3678 = vsel %vm3644, %v3677, %v3676
        %v3679 = vrot.slane %v3595, 5
        %v3680 = vsel %vm3647, %v3679, %v3678
        %v3681 = vrot.slane %v3596, 4
        %v3682 = vsel %vm3650, %v3681, %v3680
        %v3683 = vrot.slane %v3597, 3
        %v3684 = vsel %vm3653, %v3683, %v3682
        %v3685 = vrot.slane %v3598, 2
        %v3686 = vsel %vm3656, %v3685, %v3684
        %v3687 = vrot.slane %v3599, 1
        %v3688 = vsel %vm3659, %v3687, %v3686
        %v3689 = vrot.slane %v3601, 7
        %v3690 = vsel %vm3641, %v3689, %v3600
        %v3691 = vrot.slane %v3602, 6
        %v3692 = vsel %vm3644, %v3691, %v3690
        %v3693 = vrot.slane %v3603, 5
        %v3694 = vsel %vm3647, %v3693, %v3692
        %v3695 = vrot.slane %v3604, 4
        %v3696 = vsel %vm3650, %v3695, %v3694
        %v3697 = vrot.slane %v3605, 3
        %v3698 = vsel %vm3653, %v3697, %v3696
        %v3699 = vrot.slane %v3606, 2
        %v3700 = vsel %vm3656, %v3699, %v3698
        %v3701 = vrot.slane %v3607, 1
        %v3702 = vsel %vm3659, %v3701, %v3700
        %v3707 = vadd.f32 %v3660, %v3674
        %v3708 = vrot.slane %v3707, 4
        %v3709 = vadd.f32 %v3707, %v3708
        %v3710 = vrot.slane %v3709, 2
        %v3711 = vadd.f32 %v3709, %v3710
        %v3712 = vrot.slane %v3711, 1
        %v3713 = vadd.f32 %v3711, %v3712
        %v3714 = vadd.f32 %v3688, %v3702
        %v3715 = vrot.slane %v3714, 4
        %v3716 = vadd.f32 %v3714, %v3715
        %v3717 = vrot.slane %v3716, 2
        %v3718 = vadd.f32 %v3716, %v3717
        %v3719 = vrot.slane %v3718, 1
        %v3720 = vadd.f32 %v3718, %v3719
        %v3721 = vmul.f32 %v3713, 0.14285715
        %v3722 = vmul.f32 %v3720, 0.14285715
        %v3723 = vpack.c.bf16 %v3721, %v3721
        %v3724 = vpack.c.bf16 %v3722, %v3722
        %v3725 = vld [vmem:[%s3] sm:$0xf]
        %v3726 = vld [vmem:[%s3 + $0x4] sm:$0xf]
        %v3727 = vld [vmem:[%s3 + $0x8] sm:$0xf]
        %v3728 = vld [vmem:[%s3 + $0xc] sm:$0xf]
        %v3729 = vld [vmem:[%s3 + $0x10] sm:$0xf]
        %v3730 = vld [vmem:[%s3 + $0x14] sm:$0xf]
        %v3731 = vld [vmem:[%s3 + $0x18] sm:$0xf]
        %v3732 = vld [vmem:[%s3 + $0x1c] sm:$0xf]
        %v3733 = vld [vmem:[%s3 + $0x20] sm:$0xf]
        %v3734 = vld [vmem:[%s3 + $0x24] sm:$0xf]
        %v3735 = vld [vmem:[%s3 + $0x28] sm:$0xf]
        %v3736 = vld [vmem:[%s3 + $0x2c] sm:$0xf]
        %v3737 = vld [vmem:[%s3 + $0x30] sm:$0xf]
        %v3738 = vld [vmem:[%s3 + $0x34] sm:$0xf]
        %v3739 = vld [vmem:[%s3 + $0x38] sm:$0xf]
        %v3740 = vld [vmem:[%s3 + $0x3c] sm:$0xf]
        %v3741 = vld [vmem:[%s4] sm:$0x1]
        %v3743 = vlaneseq
        %v3744 = vshrl.u32 %v3743, 7
        %v3745 = vsub.s32 0, %v3744
        %v3746 = vrot.slane %v3741, %v3745
        %v3750 = vunpack.c.l.b16 %v3723
        %v3751 = vunpack.c.l.b16 %v3724
        %v3752 = vrot.slane %v3751, 7
        %v3753 = vsel %vm3641, %v3752, %v3750
        %v3754 = vpack.c.b16 %v3753, %v3753
        %v3772 = vunpack.c.l.b16 %v3725
        %v3773 = vunpack.c.l.b16 %v3726
        %v3774 = vunpack.c.l.b16 %v3727
        %v3775 = vunpack.c.l.b16 %v3728
        %v3776 = vunpack.c.l.b16 %v3729
        %v3777 = vunpack.c.l.b16 %v3730
        %v3778 = vunpack.c.l.b16 %v3731
        %v3779 = vunpack.c.l.b16 %v3732
        %v3780 = vunpack.c.l.b16 %v3733
        %v3781 = vunpack.c.l.b16 %v3734
        %v3782 = vunpack.c.l.b16 %v3735
        %v3783 = vunpack.c.l.b16 %v3736
        %v3784 = vunpack.c.l.b16 %v3737
        %v3785 = vunpack.c.l.b16 %v3738
        %v3786 = vunpack.c.l.b16 %v3739
        %v3787 = vunpack.c.l.b16 %v3740
        %v3788 = vpack.c.b16 %v3773, %v3772
        %v3789 = vpack.c.b16 %v3775, %v3774
        %v3790 = vpack.c.b16 %v3777, %v3776
        %v3791 = vpack.c.b16 %v3779, %v3778
        %v3792 = vpack.c.b16 %v3781, %v3780
        %v3793 = vpack.c.b16 %v3783, %v3782
        %v3794 = vpack.c.b16 %v3785, %v3784
        %v3795 = vpack.c.b16 %v3787, %v3786
        %3804 = vmatprep.subr.bf16.mxu0 0
        %3805 = vmatpush1.bf16.msra.mxu0 %v3788
        %3806 = vmatprep.subr.bf16.mxu0 0
        %3807 = vmatpush1.bf16.msra.mxu0 %v3789
        %3808 = vmatprep.subr.bf16.mxu0 0
        %3809 = vmatpush1.bf16.msra.mxu0 %v3790
        %3810 = vmatprep.subr.bf16.mxu0 0
        %3811 = vmatpush1.bf16.msra.mxu0 %v3791
        %3812 = vmatprep.subr.bf16.mxu0 0
        %3813 = vmatpush1.bf16.msra.mxu0 %v3792
        %3814 = vmatprep.subr.bf16.mxu0 0
        %3815 = vmatpush1.bf16.msra.mxu0 %v3793
        %3816 = vmatprep.subr.bf16.mxu0 0
        %3817 = vmatpush1.bf16.msra.mxu0 %v3794
        %3818 = vmatprep.subr.bf16.mxu0 0
        %3819 = vmatpush1.bf16.msra.mxu0 %v3795
        %3820 = vmatprep.subr.bf16.mxu0 0
        %3821 = vmatpush1.bf16.msra.mxu0 0
        %3822 = vmatprep.subr.bf16.mxu0 0
        %3823 = vmatpush1.bf16.msra.mxu0 0
        %3824 = vmatprep.subr.bf16.mxu0 0
        %3825 = vmatpush1.bf16.msra.mxu0 0
        %3826 = vmatprep.subr.bf16.mxu0 0
        %3827 = vmatpush1.bf16.msra.mxu0 0
        %3828 = vmatprep.subr.bf16.mxu0 0
        %3829 = vmatpush1.bf16.msra.mxu0 0
        %3830 = vmatprep.subr.bf16.mxu0 0
        %3831 = vmatpush1.bf16.msra.mxu0 0
        %3832 = vmatprep.subr.bf16.mxu0 0
        %3833 = vmatpush1.bf16.msra.mxu0 0
        %3834 = vmatprep.subr.bf16.mxu0 0
        %3835 = vmatpush1.bf16.msra.mxu0 0
        %3836 = vmatprep.mubr.bf16.mxu0 0
        %3837 = vmatmul.mubr.bf16.gmra.mrb[0].mxu0 %v3754
        %v3838 = vpop.f32.mrb[0].mxu0
        %v3839 = vadd.f32 %v3746, %v3838
        %v3840 = vpop.f32.mrb[0].mxu0
        %v3841 = vpop.f32.mrb[0].mxu0
        %v3842 = vpop.f32.mrb[0].mxu0
        %3843 = vdwg.mxu0
        %v3844 = vld [vmem:[#allocation9] sm:$0xff]
        %v3845 = vld [vmem:[#allocation9 + $0x8] sm:$0xff]
        %v3846 = vld [vmem:[#allocation9 + $0x10] sm:$0xff]
        %v3847 = vld [vmem:[#allocation9 + $0x18] sm:$0xff]
        %v3848 = vld [vmem:[#allocation9 + $0x20] sm:$0xff]
        %v3849 = vld [vmem:[#allocation9 + $0x28] sm:$0xff]
        %v3850 = vld [vmem:[#allocation9 + $0x30] sm:$0xff]
        %v3851 = vld [vmem:[#allocation9 + $0x38] sm:$0xff]
        %v3852 = vld [vmem:[#allocation9 + $0x40] sm:$0xff]
        %v3853 = vld [vmem:[#allocation9 + $0x48] sm:$0xff]
        %v3854 = vld [vmem:[#allocation9 + $0x50] sm:$0xff]
        %v3855 = vld [vmem:[#allocation9 + $0x58] sm:$0xff]
        %v3856 = vld [vmem:[#allocation9 + $0x60] sm:$0xff]
        %v3857 = vld [vmem:[#allocation9 + $0x68] sm:$0xff]
        %v3858 = vld [vmem:[#allocation9 + $0x70] sm:$0xff]
        %v3859 = vld [vmem:[#allocation9 + $0x78] sm:$0xff]
        %v3860 = vld [vmem:[%s8] sm:$0x3]
        %v3862 = vlaneseq
        %v3863 = vshrl.u32 %v3862, 7
        %v3864 = vsub.s32 0, %v3863
        %v3865 = vrot.slane %v3860, %v3864
        %v3866 = vlaneseq
        %v3867 = vshrl.u32 %v3866, 7
        %v3868 = vsub.s32 1, %v3867
        %v3869 = vrot.slane %v3860, %v3868
        %v3888 = vunpack.c.l.b16 %v3844
        %v3889 = vunpack.c.h.b16 %v3844
        %v3890 = vunpack.c.l.b16 %v3845
        %v3891 = vunpack.c.h.b16 %v3845
        %v3892 = vunpack.c.l.b16 %v3846
        %v3893 = vunpack.c.h.b16 %v3846
        %v3894 = vunpack.c.l.b16 %v3847
        %v3895 = vunpack.c.h.b16 %v3847
        %v3896 = vunpack.c.l.b16 %v3848
        %v3897 = vunpack.c.h.b16 %v3848
        %v3898 = vunpack.c.l.b16 %v3849
        %v3899 = vunpack.c.h.b16 %v3849
        %v3900 = vunpack.c.l.b16 %v3850
        %v3901 = vunpack.c.h.b16 %v3850
        %v3902 = vunpack.c.l.b16 %v3851
        %v3903 = vunpack.c.h.b16 %v3851
        %v3904 = vunpack.c.l.b16 %v3852
        %v3905 = vunpack.c.h.b16 %v3852
        %v3906 = vunpack.c.l.b16 %v3853
        %v3907 = vunpack.c.h.b16 %v3853
        %v3908 = vunpack.c.l.b16 %v3854
        %v3909 = vunpack.c.h.b16 %v3854
        %v3910 = vunpack.c.l.b16 %v3855
        %v3911 = vunpack.c.h.b16 %v3855
        %v3912 = vunpack.c.l.b16 %v3856
        %v3913 = vunpack.c.h.b16 %v3856
        %v3914 = vunpack.c.l.b16 %v3857
        %v3915 = vunpack.c.h.b16 %v3857
        %v3916 = vunpack.c.l.b16 %v3858
        %v3917 = vunpack.c.h.b16 %v3858
        %v3918 = vunpack.c.l.b16 %v3859
        %v3919 = vunpack.c.h.b16 %v3859
        %v3920 = vpack.c.b16 %v3890, %v3888
        %v3921 = vpack.c.b16 %v3891, %v3889
        %v3922 = vpack.c.b16 %v3894, %v3892
        %v3923 = vpack.c.b16 %v3895, %v3893
        %v3924 = vpack.c.b16 %v3898, %v3896
        %v3925 = vpack.c.b16 %v3899, %v3897
        %v3926 = vpack.c.b16 %v3902, %v3900
        %v3927 = vpack.c.b16 %v3903, %v3901
        %v3928 = vpack.c.b16 %v3906, %v3904
        %v3929 = vpack.c.b16 %v3907, %v3905
        %v3930 = vpack.c.b16 %v3910, %v3908
        %v3931 = vpack.c.b16 %v3911, %v3909
        %v3932 = vpack.c.b16 %v3914, %v3912
        %v3933 = vpack.c.b16 %v3915, %v3913
        %v3934 = vpack.c.b16 %v3918, %v3916
        %v3935 = vpack.c.b16 %v3919, %v3917
        %3952 = vmatprep.subr.bf16.mxu0 %v3921
        %3953 = vmatpush1.bf16.msra.mxu0 %v3920
        %3954 = vmatprep.subr.bf16.mxu0 %v3923
        %3955 = vmatpush1.bf16.msra.mxu0 %v3922
        %3956 = vmatprep.subr.bf16.mxu0 %v3925
        %3957 = vmatpush1.bf16.msra.mxu0 %v3924
        %3958 = vmatprep.subr.bf16.mxu0 %v3927
        %3959 = vmatpush1.bf16.msra.mxu0 %v3926
        %3960 = vmatprep.subr.bf16.mxu0 %v3929
        %3961 = vmatpush1.bf16.msra.mxu0 %v3928
        %3962 = vmatprep.subr.bf16.mxu0 %v3931
        %3963 = vmatpush1.bf16.msra.mxu0 %v3930
        %3964 = vmatprep.subr.bf16.mxu0 %v3933
        %3965 = vmatpush1.bf16.msra.mxu0 %v3932
        %3966 = vmatprep.subr.bf16.mxu0 %v3935
        %3967 = vmatpush1.bf16.msra.mxu0 %v3934
        %3968 = vmatprep.subr.bf16.mxu0 0
        %3969 = vmatpush1.bf16.msra.mxu0 0
        %3970 = vmatprep.subr.bf16.mxu0 0
        %3971 = vmatpush1.bf16.msra.mxu0 0
        %3972 = vmatprep.subr.bf16.mxu0 0
        %3973 = vmatpush1.bf16.msra.mxu0 0
        %3974 = vmatprep.subr.bf16.mxu0 0
        %3975 = vmatpush1.bf16.msra.mxu0 0
        %3976 = vmatprep.subr.bf16.mxu0 0
        %3977 = vmatpush1.bf16.msra.mxu0 0
        %3978 = vmatprep.subr.bf16.mxu0 0
        %3979 = vmatpush1.bf16.msra.mxu0 0
        %3980 = vmatprep.subr.bf16.mxu0 0
        %3981 = vmatpush1.bf16.msra.mxu0 0
        %3982 = vmatprep.subr.bf16.mxu0 0
        %3983 = vmatpush1.bf16.msra.mxu0 0
        %3984 = vmatprep.mubr.bf16.mxu0 0
        %3985 = vmatmul.mubr.bf16.gmra.mrb[0].mxu0 %v747
        %v3986 = vpop.f32.mrb[0].mxu0
        %v3987 = vadd.f32 %v3865, %v3986
        %v3988 = vpop.f32.mrb[0].mxu0
        %v3989 = vadd.f32 %v3869, %v3988
        %v3990 = vpop.f32.mrb[0].mxu0
        %v3991 = vadd.f32 %v3865, %v3990
        %v3992 = vpop.f32.mrb[0].mxu0
        %v3993 = vadd.f32 %v3869, %v3992
        %3994 = vmatprep.mubr.bf16.mxu0 0
        %3995 = vmatmul.mubr.bf16.gmra.mrb[0].mxu0 %v748
        %v3996 = vpop.f32.mrb[0].mxu0
        %v3997 = vadd.f32 %v3865, %v3996
        %v3998 = vpop.f32.mrb[0].mxu0
        %v3999 = vadd.f32 %v3869, %v3998
        %v4000 = vpop.f32.mrb[0].mxu0
        %v4001 = vadd.f32 %v3865, %v4000
        %v4002 = vpop.f32.mrb[0].mxu0
        %v4003 = vadd.f32 %v3869, %v4002
        %4004 = vdwg.mxu0
        %v4005 = vpack.c.bf16 %v3991, %v3987
        %v4006 = vpack.c.bf16 %v4001, %v3997
        %v4007 = vld [vmem:[%s607 + $0x4] sm:$0x1]
        %v4008 = vld [vmem:[%s607 + $0xc] sm:$0x1]
        %v4009 = vld [vmem:[#allocation8] sm:$0xf]
        %v4010 = vld [vmem:[#allocation8 + $0x4] sm:$0xf]
        %v4011 = vld [vmem:[#allocation8 + $0x8] sm:$0xf]
        %v4012 = vld [vmem:[#allocation8 + $0xc] sm:$0xf]
        %v4013 = vld [vmem:[#allocation8 + $0x10] sm:$0xf]
        %v4014 = vld [vmem:[#allocation8 + $0x14] sm:$0xf]
        %v4015 = vld [vmem:[#allocation8 + $0x18] sm:$0xf]
        %v4016 = vld [vmem:[#allocation8 + $0x1c] sm:$0xf]
        %v4017 = vld [vmem:[#allocation8 + $0x20] sm:$0xf]
        %v4018 = vld [vmem:[#allocation8 + $0x24] sm:$0xf]
        %v4019 = vld [vmem:[#allocation8 + $0x28] sm:$0xf]
        %v4020 = vld [vmem:[#allocation8 + $0x2c] sm:$0xf]
        %v4021 = vld [vmem:[#allocation8 + $0x30] sm:$0xf]
        %v4022 = vld [vmem:[#allocation8 + $0x34] sm:$0xf]
        %v4023 = vld [vmem:[#allocation8 + $0x38] sm:$0xf]
        %v4024 = vld [vmem:[#allocation8 + $0x3c] sm:$0xf]
        %v4025 = vld [vmem:[%s6] sm:$0x1]
        %v4027 = vlaneseq
        %v4028 = vshrl.u32 %v4027, 7
        %v4029 = vsub.s32 0, %v4028
        %v4030 = vrot.slane %v4025, %v4029
        %v4034 = vunpack.c.l.b16 %v4007
        %v4035 = vunpack.c.l.b16 %v4008
        %v4036 = vpack.c.b16 %v4034, %v4034
        %v4037 = vpack.c.b16 %v4035, %v4035
        %v4038 = vunpack.c.l.b16 %v4036
        %v4039 = vunpack.c.l.b16 %v4037
        %v4040 = vrot.slane %v4039, 7
        %v4041 = vsel %vm3641, %v4040, %v4038
        %v4042 = vpack.c.b16 %v4041, %v4041
        %v4060 = vunpack.c.l.b16 %v4009
        %v4061 = vunpack.c.l.b16 %v4010
        %v4062 = vunpack.c.l.b16 %v4011
        %v4063 = vunpack.c.l.b16 %v4012
        %v4064 = vunpack.c.l.b16 %v4013
        %v4065 = vunpack.c.l.b16 %v4014
        %v4066 = vunpack.c.l.b16 %v4015
        %v4067 = vunpack.c.l.b16 %v4016
        %v4068 = vunpack.c.l.b16 %v4017
        %v4069 = vunpack.c.l.b16 %v4018
        %v4070 = vunpack.c.l.b16 %v4019
        %v4071 = vunpack.c.l.b16 %v4020
        %v4072 = vunpack.c.l.b16 %v4021
        %v4073 = vunpack.c.l.b16 %v4022
        %v4074 = vunpack.c.l.b16 %v4023
        %v4075 = vunpack.c.l.b16 %v4024
        %v4076 = vpack.c.b16 %v4061, %v4060
        %v4077 = vpack.c.b16 %v4063, %v4062
        %v4078 = vpack.c.b16 %v4065, %v4064
        %v4079 = vpack.c.b16 %v4067, %v4066
        %v4080 = vpack.c.b16 %v4069, %v4068
        %v4081 = vpack.c.b16 %v4071, %v4070
        %v4082 = vpack.c.b16 %v4073, %v4072
        %v4083 = vpack.c.b16 %v4075, %v4074
        %4092 = vmatprep.subr.bf16.mxu0 0
        %4093 = vmatpush1.bf16.msra.mxu0 %v4076
        %4094 = vmatprep.subr.bf16.mxu0 0
        %4095 = vmatpush1.bf16.msra.mxu0 %v4077
        %4096 = vmatprep.subr.bf16.mxu0 0
        %4097 = vmatpush1.bf16.msra.mxu0 %v4078
        %4098 = vmatprep.subr.bf16.mxu0 0
        %4099 = vmatpush1.bf16.msra.mxu0 %v4079
        %4100 = vmatprep.subr.bf16.mxu0 0
        %4101 = vmatpush1.bf16.msra.mxu0 %v4080
        %4102 = vmatprep.subr.bf16.mxu0 0
        %4103 = vmatpush1.bf16.msra.mxu0 %v4081
        %4104 = vmatprep.subr.bf16.mxu0 0
        %4105 = vmatpush1.bf16.msra.mxu0 %v4082
        %4106 = vmatprep.subr.bf16.mxu0 0
        %4107 = vmatpush1.bf16.msra.mxu0 %v4083
        %4108 = vmatprep.subr.bf16.mxu0 0
        %4109 = vmatpush1.bf16.msra.mxu0 0
        %4110 = vmatprep.subr.bf16.mxu0 0
        %4111 = vmatpush1.bf16.msra.mxu0 0
        %4112 = vmatprep.subr.bf16.mxu0 0
        %4113 = vmatpush1.bf16.msra.mxu0 0
        %4114 = vmatprep.subr.bf16.mxu0 0
        %4115 = vmatpush1.bf16.msra.mxu0 0
        %4116 = vmatprep.subr.bf16.mxu0 0
        %4117 = vmatpush1.bf16.msra.mxu0 0
        %4118 = vmatprep.subr.bf16.mxu0 0
        %4119 = vmatpush1.bf16.msra.mxu0 0
        %4120 = vmatprep.subr.bf16.mxu0 0
        %4121 = vmatpush1.bf16.msra.mxu0 0
        %4122 = vmatprep.subr.bf16.mxu0 0
        %4123 = vmatpush1.bf16.msra.mxu0 0
        %4124 = vmatprep.mubr.bf16.mxu0 0
        %4125 = vmatmul.mubr.bf16.gmra.mrb[0].mxu0 %v4042
        %v4126 = vpop.f32.mrb[0].mxu0
        %v4127 = vadd.f32 %v4030, %v4126
        %v4128 = vpop.f32.mrb[0].mxu0
        %v4129 = vpop.f32.mrb[0].mxu0
        %v4130 = vpop.f32.mrb[0].mxu0
        %4131 = vdwg.mxu0
        %v4132 = vmul.f32 %v4127, 0.25
        %v4133 = vpack.c.bf16 %v4132, %v4132
        %v4136 = vunpack.c.l.s4 1966171168
        %v4137 = vunpack.c.0.s8 %v4136
        %v4138 = vlaneseq
        %v4139 = vshrl.u32 %v4138, 7
        %v4140 = vsub.s32 %v4137, %v4139
        %v4141 = vrot.slane %v4133, %v4140
        %v4143 = vunpack.c.l.s4 1966171168
        %v4144 = vunpack.c.0.s8 %v4143
        %v4145 = vlaneseq
        %v4146 = vshrl.u32 %v4145, 7
        %v4147 = vsub.s32 %v4144, %v4146
        %v4148 = vrot.slane %v4141, %v4147
        %v4149 = vunpack.i.l.s16 %v4148
        %v4150 = vunpack.i.h.s16 %v4148
        %v4151 = vpack.i.b16 %v4149, %v4149
        %v4152 = vpack.i.b16 %v4150, %v4150
        %v4153 = vlaneseq
        %v4154 = vshrl.u32 %v4153, 7
        %v4155 = vsub.s32 0, %v4154
        %v4156 = vrot.slane %v4151, %v4155
        %v4157 = vlaneseq
        %v4158 = vshrl.u32 %v4157, 7
        %v4159 = vsub.s32 0, %v4158
        %v4160 = vrot.slane %v4152, %v4159
        %v4162 = vpack.i.b16 %v4156, %v4156
        %v4164 = vlaneseq
        %v4165 = vshrl.u32 %v4164, 7
        %v4166 = vsub.s32 0, %v4165
        %v4167 = vrot.slane %v4162, %v4166
        %v4169 = vpack.i.b16 %v4160, %v4160
        %v4171 = vlaneseq
        %v4172 = vshrl.u32 %v4171, 7
        %v4173 = vsub.s32 0, %v4172
        %v4174 = vrot.slane %v4169, %v4173
        %v4175 = vmul.bf16 %v4167, %v4005
        %v4176 = vmul.bf16 %v4174, %v4006
        %4177 = vmatprep.subr.bf16.mxu0 0
        %4178 = vmatpush1.bf16.msra.mxu0 %v1585
        %4179 = vmatprep.subr.bf16.mxu0 0
        %4180 = vmatpush1.bf16.msra.mxu0 %v1586
        %4181 = vmatprep.subr.bf16.mxu0 0
        %4182 = vmatpush1.bf16.msra.mxu0 %v1587
        %4183 = vmatprep.subr.bf16.mxu0 0
        %4184 = vmatpush1.bf16.msra.mxu0 %v1588
        %4185 = vmatprep.subr.bf16.mxu0 0
        %4186 = vmatpush1.bf16.msra.mxu0 %v1589
        %4187 = vmatprep.subr.bf16.mxu0 0
        %4188 = vmatpush1.bf16.msra.mxu0 %v1590
        %4189 = vmatprep.subr.bf16.mxu0 0
        %4190 = vmatpush1.bf16.msra.mxu0 %v1591
        %4191 = vmatprep.subr.bf16.mxu0 0
        %4192 = vmatpush1.bf16.msra.mxu0 %v1592
        %4193 = vmatprep.subr.bf16.mxu0 0
        %4194 = vmatpush1.bf16.msra.mxu0 0
        %4195 = vmatprep.subr.bf16.mxu0 0
        %4196 = vmatpush1.bf16.msra.mxu0 0
        %4197 = vmatprep.subr.bf16.mxu0 0
        %4198 = vmatpush1.bf16.msra.mxu0 0
        %4199 = vmatprep.subr.bf16.mxu0 0
        %4200 = vmatpush1.bf16.msra.mxu0 0
        %4201 = vmatprep.subr.bf16.mxu0 0
        %4202 = vmatpush1.bf16.msra.mxu0 0
        %4203 = vmatprep.subr.bf16.mxu0 0
        %4204 = vmatpush1.bf16.msra.mxu0 0
        %4205 = vmatprep.subr.bf16.mxu0 0
        %4206 = vmatpush1.bf16.msra.mxu0 0
        %4207 = vmatprep.subr.bf16.mxu0 0
        %4208 = vmatpush1.bf16.msra.mxu0 0
        %4209 = vmatprep.mubr.bf16.mxu0 0
        %4210 = vmatmul.mubr.bf16.gmra.mrb[0].mxu0 %v4175
        %v4211 = vpop.f32.mrb[0].mxu0
        %v4212 = vadd.f32 0.0, %v4211
        %v4213 = vpop.f32.mrb[0].mxu0
        %v4214 = vpop.f32.mrb[0].mxu0
        %v4215 = vadd.f32 0.0, %v4214
        %v4216 = vpop.f32.mrb[0].mxu0
        %4217 = vmatprep.mubr.bf16.mxu0 0
        %4218 = vmatmul.mubr.bf16.gmra.mrb[0].mxu0 %v4176
        %v4219 = vpop.f32.mrb[0].mxu0
        %v4220 = vadd.f32 0.0, %v4219
        %v4221 = vpop.f32.mrb[0].mxu0
        %v4222 = vpop.f32.mrb[0].mxu0
        %v4223 = vadd.f32 0.0, %v4222
        %v4224 = vpop.f32.mrb[0].mxu0
        %4225 = vdwg.mxu0
        %v4226 = vsel %vm1967, %v4212, -inf
        %v4227 = vsel %vm1967, %v4215, -inf
        %v4228 = vmax.f32 %v4226, %v4227
        %v4229 = vrot.slane %v4228, 4
        %v4230 = vmax.f32 %v4228, %v4229
        %v4231 = vrot.slane %v4230, 2
        %v4232 = vmax.f32 %v4230, %v4231
        %v4233 = vrot.slane %v4232, 1
        %v4234 = vmax.f32 %v4232, %v4233
        %v4235 = vsel %vm1967, %v4220, -inf
        %v4236 = vsel %vm1967, %v4223, -inf
        %v4237 = vmax.f32 %v4235, %v4236
        %v4238 = vrot.slane %v4237, 4
        %v4239 = vmax.f32 %v4237, %v4238
        %v4240 = vrot.slane %v4239, 2
        %v4241 = vmax.f32 %v4239, %v4240
        %v4242 = vrot.slane %v4241, 1
        %v4243 = vmax.f32 %v4241, %v4242
        %v4244 = vsub.f32 %v4212, %v4234
        %v4245 = vsub.f32 %v4215, %v4234
        %v4246 = vsub.f32 %v4220, %v4243
        %v4247 = vsub.f32 %v4223, %v4243
        %v4248 = vmul.f32 %v4244, 1.442695
        %v4249 = vpow.pop %v4248
        %v4250 = vmul.f32 %v4245, 1.442695
        %v4251 = vpow.pop %v4250
        %v4252 = vmul.f32 %v4246, 1.442695
        %v4253 = vpow.pop %v4252
        %v4254 = vmul.f32 %v4247, 1.442695
        %v4255 = vpow.pop %v4254
        %v4256 = vsel %vm1967, %v4249, 0.0
        %v4257 = vsel %vm1967, %v4251, 0.0
        %v4258 = vadd.f32 %v4256, %v4257
        %v4259 = vrot.slane %v4258, 4
        %v4260 = vadd.f32 %v4258, %v4259
        %v4261 = vrot.slane %v4260, 2
        %v4262 = vadd.f32 %v4260, %v4261
        %v4263 = vrot.slane %v4262, 1
        %v4264 = vadd.f32 %v4262, %v4263
        %v4265 = vsel %vm1967, %v4253, 0.0
        %v4266 = vsel %vm1967, %v4255, 0.0
        %v4267 = vadd.f32 %v4265, %v4266
        %v4268 = vrot.slane %v4267, 4
        %v4269 = vadd.f32 %v4267, %v4268
        %v4270 = vrot.slane %v4269, 2
        %v4271 = vadd.f32 %v4269, %v4270
        %v4272 = vrot.slane %v4271, 1
        %v4273 = vadd.f32 %v4271, %v4272
        %v4274 = vrcp.pop %v4264
        %v4275 = vrcp.pop %v4273
        %v4276 = vmul.f32 %v4249, %v4274
        %v4277 = vmul.f32 %v4251, %v4274
        %v4278 = vmul.f32 %v4253, %v4275
        %v4279 = vmul.f32 %v4255, %v4275
        %v4280 = vpack.c.bf16 %v4277, %v4276
        %v4281 = vpack.c.bf16 %v4279, %v4278
        %v4283 = vsel %vm1967, %v4280, 0
        %v4286 = vsel %vm1967, %v4281, 0
        %4288 = vmatprep.subr.bf16.mxu0 0
        %4289 = vmatpush1.bf16.msra.mxu0 %v2963
        %4290 = vmatprep.subr.bf16.mxu0 0
        %4291 = vmatpush1.bf16.msra.mxu0 0
        %4292 = vmatprep.subr.bf16.mxu0 0
        %4293 = vmatpush1.bf16.msra.mxu0 0
        %4294 = vmatprep.subr.bf16.mxu0 0
        %4295 = vmatpush1.bf16.msra.mxu0 0
        %4296 = vmatprep.subr.bf16.mxu0 0
        %4297 = vmatpush1.bf16.msra.mxu0 0
        %4298 = vmatprep.subr.bf16.mxu0 0
        %4299 = vmatpush1.bf16.msra.mxu0 0
        %4300 = vmatprep.subr.bf16.mxu0 0
        %4301 = vmatpush1.bf16.msra.mxu0 0
        %4302 = vmatprep.subr.bf16.mxu0 0
        %4303 = vmatpush1.bf16.msra.mxu0 0
        %4304 = vmatprep.subr.bf16.mxu0 0
        %4305 = vmatpush1.bf16.msra.mxu0 0
        %4306 = vmatprep.subr.bf16.mxu0 0
        %4307 = vmatpush1.bf16.msra.mxu0 0
        %4308 = vmatprep.subr.bf16.mxu0 0
        %4309 = vmatpush1.bf16.msra.mxu0 0
        %4310 = vmatprep.subr.bf16.mxu0 0
        %4311 = vmatpush1.bf16.msra.mxu0 0
        %4312 = vmatprep.subr.bf16.mxu0 0
        %4313 = vmatpush1.bf16.msra.mxu0 0
        %4314 = vmatprep.subr.bf16.mxu0 0
        %4315 = vmatpush1.bf16.msra.mxu0 0
        %4316 = vmatprep.subr.bf16.mxu0 0
        %4317 = vmatpush1.bf16.msra.mxu0 0
        %4318 = vmatprep.subr.bf16.mxu0 0
        %4319 = vmatpush1.bf16.msra.mxu0 0
        %4320 = vmatprep.mubr.bf16.mxu0 0
        %4321 = vmatmul.mubr.bf16.gmra.mrb[0].mxu0 %v4283
        %v4322 = vpop.f32.mrb[0].mxu0
        %v4323 = vadd.f32 0.0, %v4322
        %v4324 = vpop.f32.mrb[0].mxu0
        %v4325 = vpop.f32.mrb[0].mxu0
        %v4326 = vadd.f32 0.0, %v4325
        %v4327 = vpop.f32.mrb[0].mxu0
        %4328 = vmatprep.mubr.bf16.mxu0 0
        %4329 = vmatmul.mubr.bf16.gmra.mrb[0].mxu0 %v4286
        %v4330 = vpop.f32.mrb[0].mxu0
        %v4331 = vadd.f32 0.0, %v4330
        %v4332 = vpop.f32.mrb[0].mxu0
        %v4333 = vpop.f32.mrb[0].mxu0
        %v4334 = vadd.f32 0.0, %v4333
        %v4335 = vpop.f32.mrb[0].mxu0
        %4336 = vdwg.mxu0
        %v4337 = vmul.f32 %v4323, %v3989
        %v4338 = vmul.f32 %v4326, %v3993
        %v4339 = vmul.f32 %v4331, %v3999
        %v4340 = vmul.f32 %v4334, %v4003
        %v4341 = vadd.f32 %v4337, %v4338
        %v4342 = vrot.slane %v4341, 4
        %v4343 = vadd.f32 %v4341, %v4342
        %v4344 = vrot.slane %v4343, 2
        %v4345 = vadd.f32 %v4343, %v4344
        %v4346 = vrot.slane %v4345, 1
        %v4347 = vadd.f32 %v4345, %v4346
        %v4348 = vadd.f32 %v4339, %v4340
        %v4349 = vrot.slane %v4348, 4
        %v4350 = vadd.f32 %v4348, %v4349
        %v4351 = vrot.slane %v4350, 2
        %v4352 = vadd.f32 %v4350, %v4351
        %v4353 = vrot.slane %v4352, 1
        %v4354 = vadd.f32 %v4352, %v4353
        %v4355 = vpack.c.bf16 %v4347, %v4347
        %v4356 = vpack.c.bf16 %v4354, %v4354
        %v4357 = vld [vmem:[#allocation11] sm:$0xf]
        %v4358 = vld [vmem:[#allocation11 + $0x4] sm:$0xf]
        %v4359 = vld [vmem:[#allocation11 + $0x8] sm:$0xf]
        %v4360 = vld [vmem:[#allocation11 + $0xc] sm:$0xf]
        %v4361 = vld [vmem:[#allocation11 + $0x10] sm:$0xf]
        %v4362 = vld [vmem:[#allocation11 + $0x14] sm:$0xf]
        %v4363 = vld [vmem:[#allocation11 + $0x18] sm:$0xf]
        %v4364 = vld [vmem:[#allocation11 + $0x1c] sm:$0xf]
        %v4365 = vld [vmem:[#allocation11 + $0x20] sm:$0xf]
        %v4366 = vld [vmem:[#allocation11 + $0x24] sm:$0xf]
        %v4367 = vld [vmem:[#allocation11 + $0x28] sm:$0xf]
        %v4368 = vld [vmem:[#allocation11 + $0x2c] sm:$0xf]
        %v4369 = vld [vmem:[#allocation11 + $0x30] sm:$0xf]
        %v4370 = vld [vmem:[#allocation11 + $0x34] sm:$0xf]
        %v4371 = vld [vmem:[#allocation11 + $0x38] sm:$0xf]
        %v4372 = vld [vmem:[#allocation11 + $0x3c] sm:$0xf]
        %v4373 = vld [vmem:[%s10] sm:$0x1]
        %v4375 = vlaneseq
        %v4376 = vshrl.u32 %v4375, 7
        %v4377 = vsub.s32 0, %v4376
        %v4378 = vrot.slane %v4373, %v4377
        %v4382 = vunpack.c.l.b16 %v4355
        %v4383 = vunpack.c.l.b16 %v4356
        %v4384 = vsel %vm3641, %v4383, %v4382
        %v4385 = vpack.c.b16 %v4384, %v4384
        %v4403 = vunpack.c.l.b16 %v4357
        %v4404 = vunpack.c.l.b16 %v4358
        %v4405 = vunpack.c.l.b16 %v4359
        %v4406 = vunpack.c.l.b16 %v4360
        %v4407 = vunpack.c.l.b16 %v4361
        %v4408 = vunpack.c.l.b16 %v4362
        %v4409 = vunpack.c.l.b16 %v4363
        %v4410 = vunpack.c.l.b16 %v4364
        %v4411 = vunpack.c.l.b16 %v4365
        %v4412 = vunpack.c.l.b16 %v4366
        %v4413 = vunpack.c.l.b16 %v4367
        %v4414 = vunpack.c.l.b16 %v4368
        %v4415 = vunpack.c.l.b16 %v4369
        %v4416 = vunpack.c.l.b16 %v4370
        %v4417 = vunpack.c.l.b16 %v4371
        %v4418 = vunpack.c.l.b16 %v4372
        %v4419 = vpack.c.b16 %v4404, %v4403
        %v4420 = vpack.c.b16 %v4406, %v4405
        %v4421 = vpack.c.b16 %v4408, %v4407
        %v4422 = vpack.c.b16 %v4410, %v4409
        %v4423 = vpack.c.b16 %v4412, %v4411
        %v4424 = vpack.c.b16 %v4414, %v4413
        %v4425 = vpack.c.b16 %v4416, %v4415
        %v4426 = vpack.c.b16 %v4418, %v4417
        %4435 = vmatprep.subr.bf16.mxu0 0
        %4436 = vmatpush1.bf16.msra.mxu0 %v4419
        %4437 = vmatprep.subr.bf16.mxu0 0
        %4438 = vmatpush1.bf16.msra.mxu0 %v4420
        %4439 = vmatprep.subr.bf16.mxu0 0
        %4440 = vmatpush1.bf16.msra.mxu0 %v4421
        %4441 = vmatprep.subr.bf16.mxu0 0
        %4442 = vmatpush1.bf16.msra.mxu0 %v4422
        %4443 = vmatprep.subr.bf16.mxu0 0
        %4444 = vmatpush1.bf16.msra.mxu0 %v4423
        %4445 = vmatprep.subr.bf16.mxu0 0
        %4446 = vmatpush1.bf16.msra.mxu0 %v4424
        %4447 = vmatprep.subr.bf16.mxu0 0
        %4448 = vmatpush1.bf16.msra.mxu0 %v4425
        %4449 = vmatprep.subr.bf16.mxu0 0
        %4450 = vmatpush1.bf16.msra.mxu0 %v4426
        %4451 = vmatprep.subr.bf16.mxu0 0
        %4452 = vmatpush1.bf16.msra.mxu0 0
        %4453 = vmatprep.subr.bf16.mxu0 0
        %4454 = vmatpush1.bf16.msra.mxu0 0
        %4455 = vmatprep.subr.bf16.mxu0 0
        %4456 = vmatpush1.bf16.msra.mxu0 0
        %4457 = vmatprep.subr.bf16.mxu0 0
        %4458 = vmatpush1.bf16.msra.mxu0 0
        %4459 = vmatprep.subr.bf16.mxu0 0
        %4460 = vmatpush1.bf16.msra.mxu0 0
        %4461 = vmatprep.subr.bf16.mxu0 0
        %4462 = vmatpush1.bf16.msra.mxu0 0
        %4463 = vmatprep.subr.bf16.mxu0 0
        %4464 = vmatpush1.bf16.msra.mxu0 0
        %4465 = vmatprep.subr.bf16.mxu0 0
        %4466 = vmatpush1.bf16.msra.mxu0 0
        %4467 = vmatprep.mubr.bf16.mxu0 0
        %4468 = vmatmul.mubr.bf16.gmra.mrb[0].mxu0 %v4385
        %v4469 = vpop.f32.mrb[0].mxu0
        %v4470 = vadd.f32 %v4378, %v4469
        %v4471 = vpop.f32.mrb[0].mxu0
        %v4472 = vpop.f32.mrb[0].mxu0
        %v4473 = vpop.f32.mrb[0].mxu0
        %4474 = vdwg.mxu0
        %v4475 = vpack.c.bf16 %v3839, %v3839
        %v4476 = vld [vmem:[#allocation12] sm:$0xff]
        %v4477 = vld [vmem:[#allocation12 + $0x8] sm:$0xff]
        %v4478 = vld [vmem:[#allocation12 + $0x10] sm:$0xff]
        %v4479 = vld [vmem:[#allocation12 + $0x18] sm:$0xff]
        %v4480 = vld [vmem:[#allocation12 + $0x20] sm:$0xff]
        %v4481 = vld [vmem:[#allocation12 + $0x28] sm:$0xff]
        %v4482 = vld [vmem:[#allocation12 + $0x30] sm:$0xff]
        %v4483 = vld [vmem:[#allocation12 + $0x38] sm:$0xff]
        %v4484 = vld [vmem:[#allocation12 + $0x40] sm:$0xff]
        %v4485 = vld [vmem:[#allocation12 + $0x48] sm:$0xff]
        %v4486 = vld [vmem:[#allocation12 + $0x50] sm:$0xff]
        %v4487 = vld [vmem:[#allocation12 + $0x58] sm:$0xff]
        %v4488 = vld [vmem:[#allocation12 + $0x60] sm:$0xff]
        %v4489 = vld [vmem:[#allocation12 + $0x68] sm:$0xff]
        %v4490 = vld [vmem:[#allocation12 + $0x70] sm:$0xff]
        %v4491 = vld [vmem:[#allocation12 + $0x78] sm:$0xff]
        %v4492 = vpack.c.bf16 %v4470, %v4470
        %v4493 = vld [vmem:[#allocation14] sm:$0xff]
        %v4494 = vld [vmem:[#allocation14 + $0x8] sm:$0xff]
        %v4495 = vld [vmem:[#allocation14 + $0x10] sm:$0xff]
        %v4496 = vld [vmem:[#allocation14 + $0x18] sm:$0xff]
        %v4497 = vld [vmem:[#allocation14 + $0x20] sm:$0xff]
        %v4498 = vld [vmem:[#allocation14 + $0x28] sm:$0xff]
        %v4499 = vld [vmem:[#allocation14 + $0x30] sm:$0xff]
        %v4500 = vld [vmem:[#allocation14 + $0x38] sm:$0xff]
        %v4501 = vld [vmem:[#allocation14 + $0x40] sm:$0xff]
        %v4502 = vld [vmem:[#allocation14 + $0x48] sm:$0xff]
        %v4503 = vld [vmem:[#allocation14 + $0x50] sm:$0xff]
        %v4504 = vld [vmem:[#allocation14 + $0x58] sm:$0xff]
        %v4505 = vld [vmem:[#allocation14 + $0x60] sm:$0xff]
        %v4506 = vld [vmem:[#allocation14 + $0x68] sm:$0xff]
        %v4507 = vld [vmem:[#allocation14 + $0x70] sm:$0xff]
        %v4508 = vld [vmem:[#allocation14 + $0x78] sm:$0xff]
        %v4525 = vunpack.c.l.b16 %v4493
        %v4526 = vunpack.c.h.b16 %v4493
        %v4527 = vunpack.c.l.b16 %v4494
        %v4528 = vunpack.c.h.b16 %v4494
        %v4529 = vunpack.c.l.b16 %v4495
        %v4530 = vunpack.c.h.b16 %v4495
        %v4531 = vunpack.c.l.b16 %v4496
        %v4532 = vunpack.c.h.b16 %v4496
        %v4533 = vunpack.c.l.b16 %v4497
        %v4534 = vunpack.c.h.b16 %v4497
        %v4535 = vunpack.c.l.b16 %v4498
        %v4536 = vunpack.c.h.b16 %v4498
        %v4537 = vunpack.c.l.b16 %v4499
        %v4538 = vunpack.c.h.b16 %v4499
        %v4539 = vunpack.c.l.b16 %v4500
        %v4540 = vunpack.c.h.b16 %v4500
        %v4541 = vunpack.c.l.b16 %v4501
        %v4542 = vunpack.c.h.b16 %v4501
        %v4543 = vunpack.c.l.b16 %v4502
        %v4544 = vunpack.c.h.b16 %v4502
        %v4545 = vunpack.c.l.b16 %v4503
        %v4546 = vunpack.c.h.b16 %v4503
        %v4547 = vunpack.c.l.b16 %v4504
        %v4548 = vunpack.c.h.b16 %v4504
        %v4549 = vunpack.c.l.b16 %v4505
        %v4550 = vunpack.c.h.b16 %v4505
        %v4551 = vunpack.c.l.b16 %v4506
        %v4552 = vunpack.c.h.b16 %v4506
        %v4553 = vunpack.c.l.b16 %v4507
        %v4554 = vunpack.c.h.b16 %v4507
        %v4555 = vunpack.c.l.b16 %v4508
        %v4556 = vunpack.c.h.b16 %v4508
        %v4557 = vpack.c.b16 %v4527, %v4525
        %v4558 = vpack.c.b16 %v4528, %v4526
        %v4559 = vpack.c.b16 %v4531, %v4529
        %v4560 = vpack.c.b16 %v4532, %v4530
        %v4561 = vpack.c.b16 %v4535, %v4533
        %v4562 = vpack.c.b16 %v4536, %v4534
        %v4563 = vpack.c.b16 %v4539, %v4537
        %v4564 = vpack.c.b16 %v4540, %v4538
        %v4565 = vpack.c.b16 %v4543, %v4541
        %v4566 = vpack.c.b16 %v4544, %v4542
        %v4567 = vpack.c.b16 %v4547, %v4545
        %v4568 = vpack.c.b16 %v4548, %v4546
        %v4569 = vpack.c.b16 %v4551, %v4549
        %v4570 = vpack.c.b16 %v4552, %v4550
        %v4571 = vpack.c.b16 %v4555, %v4553
        %v4572 = vpack.c.b16 %v4556, %v4554
        %4589 = vmatprep.subr.bf16.mxu0 %v4558
        %4590 = vmatpush1.bf16.msra.mxu0 %v4557
        %4591 = vmatprep.subr.bf16.mxu0 %v4560
        %4592 = vmatpush1.bf16.msra.mxu0 %v4559
        %4593 = vmatprep.subr.bf16.mxu0 %v4562
        %4594 = vmatpush1.bf16.msra.mxu0 %v4561
        %4595 = vmatprep.subr.bf16.mxu0 %v4564
        %4596 = vmatpush1.bf16.msra.mxu0 %v4563
        %4597 = vmatprep.subr.bf16.mxu0 %v4566
        %4598 = vmatpush1.bf16.msra.mxu0 %v4565
        %4599 = vmatprep.subr.bf16.mxu0 %v4568
        %4600 = vmatpush1.bf16.msra.mxu0 %v4567
        %4601 = vmatprep.subr.bf16.mxu0 %v4570
        %4602 = vmatpush1.bf16.msra.mxu0 %v4569
        %4603 = vmatprep.subr.bf16.mxu0 %v4572
        %4604 = vmatpush1.bf16.msra.mxu0 %v4571
        %4605 = vmatprep.subr.bf16.mxu0 0
        %4606 = vmatpush1.bf16.msra.mxu0 0
        %4607 = vmatprep.subr.bf16.mxu0 0
        %4608 = vmatpush1.bf16.msra.mxu0 0
        %4609 = vmatprep.subr.bf16.mxu0 0
        %4610 = vmatpush1.bf16.msra.mxu0 0
        %4611 = vmatprep.subr.bf16.mxu0 0
        %4612 = vmatpush1.bf16.msra.mxu0 0
        %4613 = vmatprep.subr.bf16.mxu0 0
        %4614 = vmatpush1.bf16.msra.mxu0 0
        %4615 = vmatprep.subr.bf16.mxu0 0
        %4616 = vmatpush1.bf16.msra.mxu0 0
        %4617 = vmatprep.subr.bf16.mxu0 0
        %4618 = vmatpush1.bf16.msra.mxu0 0
        %4619 = vmatprep.subr.bf16.mxu0 0
        %4620 = vmatpush1.bf16.msra.mxu0 0
        %4621 = vmatprep.mubr.bf16.mxu0 0
        %4622 = vmatmul.mubr.bf16.gmra.mrb[0].mxu0 %v4492
        %v4623 = vpop.f32.mrb[0].mxu0
        %v4624 = vadd.f32 0.0, %v4623
        %v4625 = vpop.f32.mrb[0].mxu0
        %v4626 = vadd.f32 0.0, %v4625
        %v4627 = vpop.f32.mrb[0].mxu0
        %v4628 = vpop.f32.mrb[0].mxu0
        %4629 = vdwg.mxu0
        %v4646 = vunpack.c.l.b16 %v4476
        %v4647 = vunpack.c.h.b16 %v4476
        %v4648 = vunpack.c.l.b16 %v4477
        %v4649 = vunpack.c.h.b16 %v4477
        %v4650 = vunpack.c.l.b16 %v4478
        %v4651 = vunpack.c.h.b16 %v4478
        %v4652 = vunpack.c.l.b16 %v4479
        %v4653 = vunpack.c.h.b16 %v4479
        %v4654 = vunpack.c.l.b16 %v4480
        %v4655 = vunpack.c.h.b16 %v4480
        %v4656 = vunpack.c.l.b16 %v4481
        %v4657 = vunpack.c.h.b16 %v4481
        %v4658 = vunpack.c.l.b16 %v4482
        %v4659 = vunpack.c.h.b16 %v4482
        %v4660 = vunpack.c.l.b16 %v4483
        %v4661 = vunpack.c.h.b16 %v4483
        %v4662 = vunpack.c.l.b16 %v4484
        %v4663 = vunpack.c.h.b16 %v4484
        %v4664 = vunpack.c.l.b16 %v4485
        %v4665 = vunpack.c.h.b16 %v4485
        %v4666 = vunpack.c.l.b16 %v4486
        %v4667 = vunpack.c.h.b16 %v4486
        %v4668 = vunpack.c.l.b16 %v4487
        %v4669 = vunpack.c.h.b16 %v4487
        %v4670 = vunpack.c.l.b16 %v4488
        %v4671 = vunpack.c.h.b16 %v4488
        %v4672 = vunpack.c.l.b16 %v4489
        %v4673 = vunpack.c.h.b16 %v4489
        %v4674 = vunpack.c.l.b16 %v4490
        %v4675 = vunpack.c.h.b16 %v4490
        %v4676 = vunpack.c.l.b16 %v4491
        %v4677 = vunpack.c.h.b16 %v4491
        %v4678 = vpack.c.b16 %v4648, %v4646
        %v4679 = vpack.c.b16 %v4649, %v4647
        %v4680 = vpack.c.b16 %v4652, %v4650
        %v4681 = vpack.c.b16 %v4653, %v4651
        %v4682 = vpack.c.b16 %v4656, %v4654
        %v4683 = vpack.c.b16 %v4657, %v4655
        %v4684 = vpack.c.b16 %v4660, %v4658
        %v4685 = vpack.c.b16 %v4661, %v4659
        %v4686 = vpack.c.b16 %v4664, %v4662
        %v4687 = vpack.c.b16 %v4665, %v4663
        %v4688 = vpack.c.b16 %v4668, %v4666
        %v4689 = vpack.c.b16 %v4669, %v4667
        %v4690 = vpack.c.b16 %v4672, %v4670
        %v4691 = vpack.c.b16 %v4673, %v4671
        %v4692 = vpack.c.b16 %v4676, %v4674
        %v4693 = vpack.c.b16 %v4677, %v4675
        %4710 = vmatprep.subr.bf16.mxu0 %v4679
        %4711 = vmatpush1.bf16.msra.mxu0 %v4678
        %4712 = vmatprep.subr.bf16.mxu0 %v4681
        %4713 = vmatpush1.bf16.msra.mxu0 %v4680
        %4714 = vmatprep.subr.bf16.mxu0 %v4683
        %4715 = vmatpush1.bf16.msra.mxu0 %v4682
        %4716 = vmatprep.subr.bf16.mxu0 %v4685
        %4717 = vmatpush1.bf16.msra.mxu0 %v4684
        %4718 = vmatprep.subr.bf16.mxu0 %v4687
        %4719 = vmatpush1.bf16.msra.mxu0 %v4686
        %4720 = vmatprep.subr.bf16.mxu0 %v4689
        %4721 = vmatpush1.bf16.msra.mxu0 %v4688
        %4722 = vmatprep.subr.bf16.mxu0 %v4691
        %4723 = vmatpush1.bf16.msra.mxu0 %v4690
        %4724 = vmatprep.subr.bf16.mxu0 %v4693
        %4725 = vmatpush1.bf16.msra.mxu0 %v4692
        %4726 = vmatprep.subr.bf16.mxu0 0
        %4727 = vmatpush1.bf16.msra.mxu0 0
        %4728 = vmatprep.subr.bf16.mxu0 0
        %4729 = vmatpush1.bf16.msra.mxu0 0
        %4730 = vmatprep.subr.bf16.mxu0 0
        %4731 = vmatpush1.bf16.msra.mxu0 0
        %4732 = vmatprep.subr.bf16.mxu0 0
        %4733 = vmatpush1.bf16.msra.mxu0 0
        %4734 = vmatprep.subr.bf16.mxu0 0
        %4735 = vmatpush1.bf16.msra.mxu0 0
        %4736 = vmatprep.subr.bf16.mxu0 0
        %4737 = vmatpush1.bf16.msra.mxu0 0
        %4738 = vmatprep.subr.bf16.mxu0 0
        %4739 = vmatpush1.bf16.msra.mxu0 0
        %4740 = vmatprep.subr.bf16.mxu0 0
        %4741 = vmatpush1.bf16.msra.mxu0 0
        %4742 = vmatprep.mubr.bf16.mxu0 0
        %4743 = vmatmul.mubr.bf16.gmra.mrb[0].mxu0 %v4475
        %v4744 = vpop.f32.mrb[0].mxu0
        %v4745 = vadd.f32 %v4624, %v4744
        %v4746 = vpop.f32.mrb[0].mxu0
        %v4747 = vadd.f32 %v4626, %v4746
        %v4748 = vpop.f32.mrb[0].mxu0
        %v4749 = vpop.f32.mrb[0].mxu0
        %4750 = vdwg.mxu0
        %v4751 = vld [vmem:[%s15] sm:$0x3]
        %v4753 = vlaneseq
        %v4754 = vshrl.u32 %v4753, 7
        %v4755 = vsub.s32 0, %v4754
        %v4756 = vrot.slane %v4751, %v4755
        %v4757 = vlaneseq
        %v4758 = vshrl.u32 %v4757, 7
        %v4759 = vsub.s32 1, %v4758
        %v4760 = vrot.slane %v4751, %v4759
        %v4763 = vadd.f32 %v4745, %v4756
        %v4764 = vadd.f32 %v4747, %v4760
        %v4765 = vmax.f32 %v4763, 0.0
        %v4766 = vmax.f32 %v4764, 0.0
        %v4767 = vld [vmem:[%s16] sm:$0x3]
        %v4769 = vlaneseq
        %v4770 = vshrl.u32 %v4769, 7
        %v4771 = vsub.s32 0, %v4770
        %v4772 = vrot.slane %v4767, %v4771
        %v4773 = vlaneseq
        %v4774 = vshrl.u32 %v4773, 7
        %v4775 = vsub.s32 1, %v4774
        %v4776 = vrot.slane %v4767, %v4775
        %v4779 = vmul.f32 %v4765, %v4772
        %v4780 = vmul.f32 %v4766, %v4776
        %vm4781 = vcmask 1041408
        %v4782 = vsel %vm4781, %v4779, 0.0
        %v4783 = vsel %vm4781, %v4780, 0.0
        %v4784 = vadd.f32 %v4782, %v4783
        %4785 = vadd.xlane.f32.xlu0 %v4784
        %v4786 = vpop.xlane.xlu0 %4785
        %v4787 = vld [vmem:[#allocation2] sm:$0x1]
        %v4789 = vlaneseq
        %v4790 = vshrl.u32 %v4789, 7
        %v4791 = vsub.s32 0, %v4790
        %v4792 = vrot.slane %v4787, %v4791
        %v4794 = vadd.f32 %v4786, %v4792
        %4796 = vset.pattern.permute.xlu0 0
        %4797 = vperm.xlu0 %4796, %v4794
        %v4798 = vpop.permute.xlu0 %4797
        %4800 = vst [vmem:[%s683] sm:$0x3] %v4798
        %s4801 = sand.u32 %s431, 1
        %s4802 = scalar_lea.sflag [#allocation5], %s4801
        %s4803 = sand.u32 %s431, 1
        %s4804 = smul.addr %s4803, 2
        %s4805 = scalar_lea.vmem [#allocation15], %s4804
        // Predicated region
        $region121: #{tpu_custom_call.1} parent=91 // pred_check
          %p4806 = pneg %p441
        $region122: #{tpu_custom_call.1} parent=91 // pred_check_branch
          %4808 = sbr.rel (%p4806) target = $region124
        $region123: #{tpu_custom_call.1} parent=91 // pred_region
          %s4810 = ssub.s32 32, 32
          %4811 = vsyncadd %s4802, %s4810
          %s4812 = smul.addr %s40, 32
          %s4813 = scalar_lea.hbm %s18, %s4812
          %s4815 = sshll.u32 %s4805, 4
          %s4816 = int_to_ptr.vmem [resolvable:$true] %s4815
          %4818 = dma.vmem_to_hbm [thread:$0]  %s4816, 32, %s4813, %s4802
        $region124: #{tpu_custom_call.1} parent=91 // pred_fallthru
          _
      $region92: #{tpu_custom_call.1} parent=5 // pred_fallthru
        _
      %p4819 = scmp.le.s32.totalorder 2, %s35
      // Predicated region
      $region125: #{tpu_custom_call.1} parent=5 // pred_check
        %p4820 = pneg %p4819
      $region126: #{tpu_custom_call.1} parent=5 // pred_check_branch
        %4822 = sbr.rel (%p4820) target = $region128
      $region127: #{tpu_custom_call.1} parent=5 // pred_region
        %s4823 = ssub.s32 %s35, 2
        // Predicated region
        $region129: #{tpu_custom_call.1} parent=127 // pred_check
          %p4824 = pneg %p447
        $region130: #{tpu_custom_call.1} parent=127 // pred_check_branch
          %4826 = sbr.rel (%p4824) target = $region132
        $region131: #{tpu_custom_call.1} parent=127 // pred_region
          %s4827 = sand.u32 %s432, 1
          %s4828 = scalar_lea.sflag [#allocation5], %s4827
          %s4829 = sand.u32 %s432, 1
          %s4830 = smul.addr %s4829, 2
          %s4831 = scalar_lea.vmem [#allocation15], %s4830
          %4832 = dma.done %s4828, 32
        $region132: #{tpu_custom_call.1} parent=127 // pred_fallthru
          _
      $region128: #{tpu_custom_call.1} parent=5 // pred_fallthru
        _
    $region6: #{tpu_custom_call.1} parent=1 // loop_footer
      %s39 = sadd.s32 1, %s35
    $region7: #{tpu_custom_call.1} parent=1 // loop_footer_branch
      %34 = sbr.rel target = $region3
    $region8: #{tpu_custom_call.1} parent=1 // loop_exit
      _
    %4833 = vsyncpa [#allocation4], 1
    %s4834 = scalar_lea.sflag [#allocation4], 1
    %4835 = vsyncpa %s4834, 1
    %4836 = vsyncpa [#allocation7], 1
    %4837 = vsyncpa [#allocation10], 1
    %4838 = vsyncpa [#allocation13], 1
    %4839 = vsyncpa [#allocation5], 1
    %s4840 = scalar_lea.sflag [#allocation5], 1
    %4841 = vsyncpa %s4840, 1

</llo_original>
